<compile_context>
chip_gen: v7x
topology: tpu7x:2x2x1
jax: 0.10.0
libtpu: 0.0.40
codegen_flags: <defaults>
</compile_context>

<pallas_src>
import functools

import jax
import jax.numpy as jnp
from jax import lax
from jax.experimental import pallas as pl
from jax.experimental.pallas import tpu as pltpu


def _round_up(v, m):
    return ((v + m - 1) // m) * m


def _pick_tile():
    # 256 matches the 256x256 MXU on v6e/v7x; v5e/v4 (128-wide MXU) keep 128.
    try:
        kind = jax.devices()[0].device_kind.lower()
    except Exception:
        return 128
    if ("v6" in kind) or ("v7" in kind) or ("7x" in kind):
        return 256
    return 128


# ---------------------------------------------------------------------------
# Pass A: SAGEConv layer 1 (+ the reassociated / fused halves of layer 2)
#   acc  = sum_k adj[i,k] @ x[k]                     (f32 accumulator over k)
#   agg  = acc * (1/deg[i])                          (mean aggregation)
#   h1   = ReLU(agg @ W1l + x[i] @ W1r + b1)         (chunked, never stored)
#   p    = h1 @ W2l          (pass B computes adj @ p instead of adj @ h1)
#   r    = h1 @ W2r + b2     (layer-2 root term, fused here so h1 never
#                             hits HBM)
# ---------------------------------------------------------------------------
def _layer1_kernel(a_ref, x_ref, invd_ref, w1l_ref, w1r_ref, b1_ref,
                   w2l_ref, w2r_ref, b2_ref, p_ref, r_ref, acc_ref, *, tile):
    i = pl.program_id(0)
    k = pl.program_id(1)

    @pl.when(k == 0)
    def _():
        acc_ref[...] = jnp.zeros_like(acc_ref)

    # int8 adjacency tile -> bf16 for the MXU (VPU upcast, hidden under DMA).
    a_bf = a_ref[...].astype(jnp.float32).astype(jnp.bfloat16)
    k0 = pl.multiple_of(k * tile, tile)
    xk = x_ref[pl.ds(k0, tile), :]                       # resident x row slice
    acc_ref[...] += jnp.dot(a_bf, xk, preferred_element_type=jnp.float32)

    @pl.when(k == pl.num_programs(1) - 1)
    def _():
        row0 = pl.multiple_of(i * tile, tile)
        inv = invd_ref[pl.ds(row0, tile), :]             # (tile, 1) 1/deg
        agg = (acc_ref[...] * inv).astype(jnp.bfloat16)  # mean aggregation
        xi = x_ref[pl.ds(row0, tile), :]                 # root features (bf16)

        # Chunk the 512-wide h1 over 128-lane column blocks so live f32 stays
        # at (tile, 128); h1 itself is never materialized in HBM.
        p_acc = jnp.zeros((tile, 128), jnp.float32)
        r_acc = jnp.zeros((tile, 128), jnp.float32)
        for c in range(512 // 128):                      # static, unrolled
            lo, hi = c * 128, (c + 1) * 128
            h1c = (jnp.dot(agg, w1l_ref[:, lo:hi],
                           preferred_element_type=jnp.float32)
                   + jnp.dot(xi, w1r_ref[:, lo:hi],
                             preferred_element_type=jnp.float32)
                   + b1_ref[:, lo:hi])
            h1c = jnp.maximum(h1c, 0.0).astype(jnp.bfloat16)   # ReLU (f32->bf16)
            p_acc = p_acc + jnp.dot(h1c, w2l_ref[lo:hi, :],
                                    preferred_element_type=jnp.float32)
            r_acc = r_acc + jnp.dot(h1c, w2r_ref[lo:hi, :],
                                    preferred_element_type=jnp.float32)

        p_ref[...] = p_acc.astype(jnp.bfloat16)          # p = h1 @ W2l
        r_ref[...] = r_acc + b2_ref[...]                 # r = h1 @ W2r + b2


# ---------------------------------------------------------------------------
# Pass B: SAGEConv layer 2 + global mean pool + Linear head + Sigmoid
#   agg  = sum_k adj[i,k] @ p[k]
#   h2   = ReLU(agg * (1/deg[i]) + r[i])             (padded rows masked)
#   pool += sum_rows(h2)   ;   final step:  sigmoid(pool/N @ Wc + bc)
# ---------------------------------------------------------------------------
def _layer2_kernel(a_ref, p_ref, r_ref, invd_ref, wc_ref, bc_ref,
                   o_ref, agg_ref, pool_ref, *, tile, n_true):
    i = pl.program_id(0)
    k = pl.program_id(1)
    n_i = pl.num_programs(0)
    n_k = pl.num_programs(1)

    @pl.when(jnp.logical_and(i == 0, k == 0))
    def _():
        pool_ref[...] = jnp.zeros_like(pool_ref)

    @pl.when(k == 0)
    def _():
        agg_ref[...] = jnp.zeros_like(agg_ref)

    a_bf = a_ref[...].astype(jnp.float32).astype(jnp.bfloat16)
    k0 = pl.multiple_of(k * tile, tile)
    pk = p_ref[pl.ds(k0, tile), :]                       # resident p row slice
    agg_ref[...] += jnp.dot(a_bf, pk, preferred_element_type=jnp.float32)

    @pl.when(k == n_k - 1)
    def _():
        row0 = pl.multiple_of(i * tile, tile)
        inv = invd_ref[pl.ds(row0, tile), :]             # (tile, 1)
        h2 = jnp.maximum(agg_ref[...] * inv + r_ref[...], 0.0)   # ReLU, f32
        # zero the padded rows so they do not bias the mean pool
        row = i * tile + lax.broadcasted_iota(jnp.int32, h2.shape, 0)
        h2 = jnp.where(row < n_true, h2, 0.0)
        pool_ref[...] += jnp.sum(h2, axis=0, keepdims=True)

    @pl.when(jnp.logical_and(i == n_i - 1, k == n_k - 1))
    def _():
        pooled = pool_ref[...] * (1.0 / float(n_true))   # divide by TRUE N
        logits = (jnp.dot(pooled.astype(jnp.bfloat16), wc_ref[...],
                          preferred_element_type=jnp.float32)
                  + bc_ref[...])
        o_ref[...] = 1.0 / (1.0 + jnp.exp(-logits))      # sigmoid (EUP exp)


def graphsage2_forward(x, edge_index, params, n_classes, tile=None):
    """x: (N, vocab) f32; edge_index: (2, E) int32 (row 0 = src, row 1 = dst)."""
    n_true, vocab = x.shape
    if tile is None:
        tile = _pick_tile()
    n_pad = _round_up(max(n_true, tile), tile)
    vp = _round_up(max(vocab, 128), 128)       # padded vocab (lane axis)
    cp = _round_up(max(n_classes, 128), 128)   # padded classes (lane axis)

    (w1l, w1r, b1, w2l, w2r, b2, wc, bc) = params

    # --- glue (plain JAX): unnormalized int8 adjacency + 1/deg -------------
    # Single int8 scatter-add (no N^2 f32 passes); deg from an O(E) scatter.
    src, dst = edge_index[0], edge_index[1]
    adj = jnp.zeros((n_pad, n_pad), jnp.int8).at[dst, src].add(1)
    deg = jnp.zeros((n_pad,), jnp.float32).at[dst].add(1.0)
    inv_deg = (1.0 / jnp.where(deg > 0.0, deg, 1.0)).reshape(n_pad, 1)

    xp = jnp.zeros((n_pad, vp), jnp.bfloat16).at[:n_true, :vocab].set(
        x.astype(jnp.bfloat16))

    w1l_p = jnp.zeros((vp, 512), jnp.bfloat16).at[:vocab].set(
        w1l.astype(jnp.bfloat16))
    w1r_p = jnp.zeros((vp, 512), jnp.bfloat16).at[:vocab].set(
        w1r.astype(jnp.bfloat16))
    w2l_b = w2l.astype(jnp.bfloat16)
    w2r_b = w2r.astype(jnp.bfloat16)
    wc_p = jnp.zeros((128, cp), jnp.bfloat16).at[:, :n_classes].set(
        wc.astype(jnp.bfloat16))
    bc_p = jnp.zeros((1, cp), jnp.float32).at[:, :n_classes].set(bc)

    gi = n_pad // tile
    gk = n_pad // tile
    const = lambda i, k: (0, 0)

    # ---------------- pass A: layer 1 (+ fused h1@W2l, h1@W2r+b2) -----------
    p, r = pl.pallas_call(
        functools.partial(_layer1_kernel, tile=tile),
        out_shape=(jax.ShapeDtypeStruct((n_pad, 128), jnp.bfloat16),   # p
                   jax.ShapeDtypeStruct((n_pad, 128), jnp.float32)),   # r
        grid_spec=pltpu.PrefetchScalarGridSpec(
            num_scalar_prefetch=0,
            grid=(gi, gk),
            in_specs=[
                pl.BlockSpec((tile, tile), lambda i, k: (i, k)),   # adj (int8)
                pl.BlockSpec((n_pad, vp), const),                  # x resident
                pl.BlockSpec((n_pad, 1), const),                   # 1/deg
                pl.BlockSpec((vp, 512), const),                    # W1l
                pl.BlockSpec((vp, 512), const),                    # W1r
                pl.BlockSpec((1, 512), const),                     # b1
                pl.BlockSpec((512, 128), const),                   # W2l
                pl.BlockSpec((512, 128), const),                   # W2r
                pl.BlockSpec((1, 128), const),                     # b2
            ],
            out_specs=[
                pl.BlockSpec((tile, 128), lambda i, k: (i, 0)),    # p
                pl.BlockSpec((tile, 128), lambda i, k: (i, 0)),    # r
            ],
            scratch_shapes=[pltpu.VMEM((tile, vp), jnp.float32)],
        ),
        compiler_params=pltpu.CompilerParams(
            dimension_semantics=("parallel", "arbitrary")),
    )(adj, xp, inv_deg, w1l_p, w1r_p, b1, w2l_b, w2r_b, b2)

    # ------------- pass B: layer 2 + mean pool + head + sigmoid -------------
    out = pl.pallas_call(
        functools.partial(_layer2_kernel, tile=tile, n_true=n_true),
        out_shape=jax.ShapeDtypeStruct((1, cp), jnp.float32),
        grid_spec=pltpu.PrefetchScalarGridSpec(
            num_scalar_prefetch=0,
            grid=(gi, gk),
            in_specs=[
                pl.BlockSpec((tile, tile), lambda i, k: (i, k)),   # adj (int8)
                pl.BlockSpec((n_pad, 128), const),                 # p resident
                pl.BlockSpec((tile, 128), lambda i, k: (i, 0)),    # r (per i)
                pl.BlockSpec((n_pad, 1), const),                   # 1/deg
                pl.BlockSpec((128, cp), const),                    # Wc
                pl.BlockSpec((1, cp), const),                      # bc
            ],
            out_specs=pl.BlockSpec((1, cp), const),
            scratch_shapes=[pltpu.VMEM((tile, 128), jnp.float32),  # agg2
                            pltpu.VMEM((1, 128), jnp.float32)],    # pool
        ),
        compiler_params=pltpu.CompilerParams(
            dimension_semantics=("arbitrary", "arbitrary")),
    )(adj, p, r, inv_deg, wc_p, bc_p)

    return out[:, :n_classes]


def init_params(key, vocab, n_classes):
    ks = jax.random.split(key, 8)

    def u(k, shape, fan_in):
        bound = 1.0 / jnp.sqrt(fan_in)
        return jax.random.uniform(k, shape, jnp.float32, -bound, bound)

    # SAGEConv(vocab, 512): lin_l (bias) on aggregated neighbors, lin_r on root
    w1l = u(ks[0], (vocab, 512), vocab)
    w1r = u(ks[1], (vocab, 512), vocab)
    b1 = u(ks[2], (1, 512), vocab)
    # SAGEConv(512, 128)
    w2l = u(ks[3], (512, 128), 512)
    w2r = u(ks[4], (512, 128), 512)
    b2 = u(ks[5], (1, 128), 512)
    # Linear(128, n_classes)
    wc = u(ks[6], (128, n_classes), 128)
    bc = u(ks[7], (1, n_classes), 128)
    return (w1l, w1r, b1, w2l, w2r, b2, wc, bc)


if __name__ == "__main__":
    key = jax.random.PRNGKey(0)
    N, VOCAB, N_CLASSES = 300, 32, 8

    k_x, k_p = jax.random.split(key)
    x = jax.random.normal(k_x, (N, VOCAB), jnp.float32)

    # Deterministic edge list: a ring (both directions) plus a few chords.
    idx = jnp.arange(N)
    src = jnp.concatenate([idx, (idx + 1) % N, idx[::3]])
    dst = jnp.concatenate([(idx + 1) % N, idx, (idx[::3] + 7) % N])
    edge_index = jnp.stack([src, dst]).astype(jnp.int32)   # (2, E)

    params = init_params(k_p, VOCAB, N_CLASSES)

    out = graphsage2_forward(x, edge_index, params, N_CLASSES)
    jax.block_until_ready(out)

    assert out.shape == (1, N_CLASSES)
    assert bool(jnp.all((out >= 0.0) & (out <= 1.0)))
    assert bool(jnp.all(jnp.isfinite(out)))
    print("KERNEL_OK")
</pallas_src>

<mosaic_0001>
module attributes {stable_mosaic.version = 11 : i64} {
  func.func @_layer1_kernel(%arg0: i32, %arg1: i32, %arg2: memref<128x128xi8, #tpu.memory_space<vmem>>, %arg3: memref<384x128xbf16, #tpu.memory_space<vmem>>, %arg4: memref<384x1xf32, #tpu.memory_space<vmem>>, %arg5: memref<128x512xbf16, #tpu.memory_space<vmem>>, %arg6: memref<128x512xbf16, #tpu.memory_space<vmem>>, %arg7: memref<1x512xf32, #tpu.memory_space<vmem>>, %arg8: memref<512x128xbf16, #tpu.memory_space<vmem>>, %arg9: memref<512x128xbf16, #tpu.memory_space<vmem>>, %arg10: memref<1x128xf32, #tpu.memory_space<vmem>>, %arg11: memref<128x128xbf16, #tpu.memory_space<vmem>>, %arg12: memref<128x128xf32, #tpu.memory_space<vmem>>, %arg13: memref<128x128xf32, #tpu.memory_space<vmem>>) attributes {dimension_semantics = [#tpu.dimension_semantics<parallel>, #tpu.dimension_semantics<arbitrary>], iteration_bounds = array<i64: 3, 3>, scalar_prefetch = 0 : i64, scratch_operands = 1 : i64, tpu.core_type = #tpu.core_type<tc>, window_params = [{transform_indices = @transform_0, window_bounds = array<i64: 128, 128>}, {pipeline_mode = #tpu.pipeline_mode<synchronous>, transform_indices = @transform_1, window_bounds = array<i64: 384, 128>}, {pipeline_mode = #tpu.pipeline_mode<synchronous>, transform_indices = @transform_2, window_bounds = array<i64: 384, 1>}, {pipeline_mode = #tpu.pipeline_mode<synchronous>, transform_indices = @transform_3, window_bounds = array<i64: 128, 512>}, {pipeline_mode = #tpu.pipeline_mode<synchronous>, transform_indices = @transform_4, window_bounds = array<i64: 128, 512>}, {pipeline_mode = #tpu.pipeline_mode<synchronous>, transform_indices = @transform_5, window_bounds = array<i64: 1, 512>}, {pipeline_mode = #tpu.pipeline_mode<synchronous>, transform_indices = @transform_6, window_bounds = array<i64: 512, 128>}, {pipeline_mode = #tpu.pipeline_mode<synchronous>, transform_indices = @transform_7, window_bounds = array<i64: 512, 128>}, {pipeline_mode = #tpu.pipeline_mode<synchronous>, transform_indices = @transform_8, window_bounds = array<i64: 1, 128>}, {transform_indices = @transform_9, window_bounds = array<i64: 128, 128>}, {transform_indices = @transform_10, window_bounds = array<i64: 128, 128>}]} {
    %c0_i32 = arith.constant 0 : i32
    %0 = arith.cmpi eq, %arg1, %c0_i32 : i32
    %1 = arith.extui %0 : i1 to i32
    %c0_i32_0 = arith.constant 0 : i32
    %2 = arith.cmpi ne, %1, %c0_i32_0 : i32
    scf.if %2 {
      %cst_8 = arith.constant 0.000000e+00 : f32
      %17 = vector.broadcast %cst_8 : f32 to vector<128x128xf32>
      %c0_9 = arith.constant 0 : index
      %c0_10 = arith.constant 0 : index
      %18 = vector.load %arg13[%c0_9, %c0_10] : memref<128x128xf32, #tpu.memory_space<vmem>>, vector<128x128xf32>
      tpu.vector_store %arg13[%c0_9, %c0_10], %17 {strides = array<i32>} : memref<128x128xf32, #tpu.memory_space<vmem>>, vector<128x128xf32>,
    } else {
    }
    %c0 = arith.constant 0 : index
    %c0_1 = arith.constant 0 : index
    %3 = vector.load %arg2[%c0, %c0_1] : memref<128x128xi8, #tpu.memory_space<vmem>>, vector<128x128xi8>
    %4 = arith.sitofp %3 : vector<128x128xi8> to vector<128x128xf32>
    %5 = arith.truncf %4 : vector<128x128xf32> to vector<128x128xbf16>
    %c128_i32 = arith.constant 128 : i32
    %6 = arith.muli %arg1, %c128_i32 : i32
    %7 = tpu.assume_multiple %6, 128 : i32
    %8 = arith.index_cast %7 : i32 to index
    %c0_2 = arith.constant 0 : index
    %9 = vector.load %arg3[%8, %c0_2] : memref<384x128xbf16, #tpu.memory_space<vmem>>, vector<128x128xbf16>
    %c0_3 = arith.constant 0 : index
    %c0_4 = arith.constant 0 : index
    %10 = vector.load %arg13[%c0_3, %c0_4] : memref<128x128xf32, #tpu.memory_space<vmem>>, vector<128x128xf32>
    %cst = arith.constant dense<0.000000e+00> : vector<128x128xf32>
    %11 = tpu.matmul %5, %9, %cst {dimension_numbers = #tpu.dot_dimension_numbers<[1], [0], [0], [1], [0, 0, 1, 1], [], []>} : vector<128x128xbf16>, vector<128x128xbf16>, vector<128x128xf32> -> vector<128x128xf32>
    %12 = arith.addf %10, %11 : vector<128x128xf32>
    %c0_5 = arith.constant 0 : index
    %c0_6 = arith.constant 0 : index
    %13 = vector.load %arg13[%c0_5, %c0_6] : memref<128x128xf32, #tpu.memory_space<vmem>>, vector<128x128xf32>
    tpu.vector_store %arg13[%c0_5, %c0_6], %12 {strides = array<i32>} : memref<128x128xf32, #tpu.memory_space<vmem>>, vector<128x128xf32>,
    %c2_i32 = arith.constant 2 : i32
    %14 = arith.cmpi eq, %arg1, %c2_i32 : i32
    %15 = arith.extui %14 : i1 to i32
    %c0_i32_7 = arith.constant 0 : i32
    %16 = arith.cmpi ne, %15, %c0_i32_7 : i32
    scf.if %16 {
      %c128_i32_8 = arith.constant 128 : i32
      %17 = arith.muli %arg0, %c128_i32_8 : i32
      %18 = tpu.assume_multiple %17, 128 : i32
      %19 = arith.index_cast %18 : i32 to index
      %c0_9 = arith.constant 0 : index
      %20 = vector.load %arg4[%19, %c0_9] : memref<384x1xf32, #tpu.memory_space<vmem>>, vector<128x1xf32>
      %c0_10 = arith.constant 0 : index
      %c0_11 = arith.constant 0 : index
      %21 = vector.load %arg13[%c0_10, %c0_11] : memref<128x128xf32, #tpu.memory_space<vmem>>, vector<128x128xf32>
      %22 = vector.broadcast %20 : vector<128x1xf32> to vector<128x128xf32>
      %23 = arith.mulf %21, %22 : vector<128x128xf32>
      %24 = arith.truncf %23 : vector<128x128xf32> to vector<128x128xbf16>
      %25 = arith.index_cast %18 : i32 to index
      %c0_12 = arith.constant 0 : index
      %26 = vector.load %arg3[%25, %c0_12] : memref<384x128xbf16, #tpu.memory_space<vmem>>, vector<128x128xbf16>
      %cst_13 = arith.constant 0.000000e+00 : f32
      %27 = vector.broadcast %cst_13 : f32 to vector<128x128xf32>
      %cst_14 = arith.constant 0.000000e+00 : f32
      %28 = vector.broadcast %cst_14 : f32 to vector<128x128xf32>
      %c0_15 = arith.constant 0 : index
      %c0_16 = arith.constant 0 : index
      %29 = vector.load %arg5[%c0_15, %c0_16] : memref<128x512xbf16, #tpu.memory_space<vmem>>, vector<128x128xbf16>
      %cst_17 = arith.constant dense<0.000000e+00> : vector<128x128xf32>
      %30 = tpu.matmul %24, %29, %cst_17 {dimension_numbers = #tpu.dot_dimension_numbers<[1], [0], [0], [1], [0, 0, 1, 1], [], []>} : vector<128x128xbf16>, vector<128x128xbf16>, vector<128x128xf32> -> vector<128x128xf32>
      %c0_18 = arith.constant 0 : index
      %c0_19 = arith.constant 0 : index
      %31 = vector.load %arg6[%c0_18, %c0_19] : memref<128x512xbf16, #tpu.memory_space<vmem>>, vector<128x128xbf16>
      %cst_20 = arith.constant dense<0.000000e+00> : vector<128x128xf32>
      %32 = tpu.matmul %26, %31, %cst_20 {dimension_numbers = #tpu.dot_dimension_numbers<[1], [0], [0], [1], [0, 0, 1, 1], [], []>} : vector<128x128xbf16>, vector<128x128xbf16>, vector<128x128xf32> -> vector<128x128xf32>
      %33 = arith.addf %30, %32 : vector<128x128xf32>
      %c0_21 = arith.constant 0 : index
      %c0_22 = arith.constant 0 : index
      %34 = vector.load %arg7[%c0_21, %c0_22] : memref<1x512xf32, #tpu.memory_space<vmem>>, vector<1x128xf32>
      %35 = vector.broadcast %34 : vector<1x128xf32> to vector<128x128xf32>
      %36 = arith.addf %33, %35 : vector<128x128xf32>
      %cst_23 = arith.constant 0.000000e+00 : f32
      %37 = vector.broadcast %cst_23 : f32 to vector<128x128xf32>
      %38 = arith.maximumf %36, %37 : vector<128x128xf32>
      %39 = arith.truncf %38 : vector<128x128xf32> to vector<128x128xbf16>
      %c0_24 = arith.constant 0 : index
      %c0_25 = arith.constant 0 : index
      %40 = vector.load %arg8[%c0_24, %c0_25] : memref<512x128xbf16, #tpu.memory_space<vmem>>, vector<128x128xbf16>
      %cst_26 = arith.constant dense<0.000000e+00> : vector<128x128xf32>
      %41 = tpu.matmul %39, %40, %cst_26 {dimension_numbers = #tpu.dot_dimension_numbers<[1], [0], [0], [1], [0, 0, 1, 1], [], []>} : vector<128x128xbf16>, vector<128x128xbf16>, vector<128x128xf32> -> vector<128x128xf32>
      %42 = arith.addf %27, %41 : vector<128x128xf32>
      %c0_27 = arith.constant 0 : index
      %c0_28 = arith.constant 0 : index
      %43 = vector.load %arg9[%c0_27, %c0_28] : memref<512x128xbf16, #tpu.memory_space<vmem>>, vector<128x128xbf16>
      %cst_29 = arith.constant dense<0.000000e+00> : vector<128x128xf32>
      %44 = tpu.matmul %39, %43, %cst_29 {dimension_numbers = #tpu.dot_dimension_numbers<[1], [0], [0], [1], [0, 0, 1, 1], [], []>} : vector<128x128xbf16>, vector<128x128xbf16>, vector<128x128xf32> -> vector<128x128xf32>
      %45 = arith.addf %28, %44 : vector<128x128xf32>
      %c0_30 = arith.constant 0 : index
      %c128 = arith.constant 128 : index
      %46 = vector.load %arg5[%c0_30, %c128] : memref<128x512xbf16, #tpu.memory_space<vmem>>, vector<128x128xbf16>
      %cst_31 = arith.constant dense<0.000000e+00> : vector<128x128xf32>
      %47 = tpu.matmul %24, %46, %cst_31 {dimension_numbers = #tpu.dot_dimension_numbers<[1], [0], [0], [1], [0, 0, 1, 1], [], []>} : vector<128x128xbf16>, vector<128x128xbf16>, vector<128x128xf32> -> vector<128x128xf32>
      %c0_32 = arith.constant 0 : index
      %c128_33 = arith.constant 128 : index
      %48 = vector.load %arg6[%c0_32, %c128_33] : memref<128x512xbf16, #tpu.memory_space<vmem>>, vector<128x128xbf16>
      %cst_34 = arith.constant dense<0.000000e+00> : vector<128x128xf32>
      %49 = tpu.matmul %26, %48, %cst_34 {dimension_numbers = #tpu.dot_dimension_numbers<[1], [0], [0], [1], [0, 0, 1, 1], [], []>} : vector<128x128xbf16>, vector<128x128xbf16>, vector<128x128xf32> -> vector<128x128xf32>
      %50 = arith.addf %47, %49 : vector<128x128xf32>
      %c0_35 = arith.constant 0 : index
      %c128_36 = arith.constant 128 : index
      %51 = vector.load %arg7[%c0_35, %c128_36] : memref<1x512xf32, #tpu.memory_space<vmem>>, vector<1x128xf32>
      %52 = vector.broadcast %51 : vector<1x128xf32> to vector<128x128xf32>
      %53 = arith.addf %50, %52 : vector<128x128xf32>
      %cst_37 = arith.constant 0.000000e+00 : f32
      %54 = vector.broadcast %cst_37 : f32 to vector<128x128xf32>
      %55 = arith.maximumf %53, %54 : vector<128x128xf32>
      %56 = arith.truncf %55 : vector<128x128xf32> to vector<128x128xbf16>
      %c128_38 = arith.constant 128 : index
      %c0_39 = arith.constant 0 : index
      %57 = vector.load %arg8[%c128_38, %c0_39] : memref<512x128xbf16, #tpu.memory_space<vmem>>, vector<128x128xbf16>
      %cst_40 = arith.constant dense<0.000000e+00> : vector<128x128xf32>
      %58 = tpu.matmul %56, %57, %cst_40 {dimension_numbers = #tpu.dot_dimension_numbers<[1], [0], [0], [1], [0, 0, 1, 1], [], []>} : vector<128x128xbf16>, vector<128x128xbf16>, vector<128x128xf32> -> vector<128x128xf32>
      %59 = arith.addf %42, %58 : vector<128x128xf32>
      %c128_41 = arith.constant 128 : index
      %c0_42 = arith.constant 0 : index
      %60 = vector.load %arg9[%c128_41, %c0_42] : memref<512x128xbf16, #tpu.memory_space<vmem>>, vector<128x128xbf16>
      %cst_43 = arith.constant dense<0.000000e+00> : vector<128x128xf32>
      %61 = tpu.matmul %56, %60, %cst_43 {dimension_numbers = #tpu.dot_dimension_numbers<[1], [0], [0], [1], [0, 0, 1, 1], [], []>} : vector<128x128xbf16>, vector<128x128xbf16>, vector<128x128xf32> -> vector<128x128xf32>
      %62 = arith.addf %45, %61 : vector<128x128xf32>
      %c0_44 = arith.constant 0 : index
      %c256 = arith.constant 256 : index
      %63 = vector.load %arg5[%c0_44, %c256] : memref<128x512xbf16, #tpu.memory_space<vmem>>, vector<128x128xbf16>
      %cst_45 = arith.constant dense<0.000000e+00> : vector<128x128xf32>
      %64 = tpu.matmul %24, %63, %cst_45 {dimension_numbers = #tpu.dot_dimension_numbers<[1], [0], [0], [1], [0, 0, 1, 1], [], []>} : vector<128x128xbf16>, vector<128x128xbf16>, vector<128x128xf32> -> vector<128x128xf32>
      %c0_46 = arith.constant 0 : index
      %c256_47 = arith.constant 256 : index
      %65 = vector.load %arg6[%c0_46, %c256_47] : memref<128x512xbf16, #tpu.memory_space<vmem>>, vector<128x128xbf16>
      %cst_48 = arith.constant dense<0.000000e+00> : vector<128x128xf32>
      %66 = tpu.matmul %26, %65, %cst_48 {dimension_numbers = #tpu.dot_dimension_numbers<[1], [0], [0], [1], [0, 0, 1, 1], [], []>} : vector<128x128xbf16>, vector<128x128xbf16>, vector<128x128xf32> -> vector<128x128xf32>
      %67 = arith.addf %64, %66 : vector<128x128xf32>
      %c0_49 = arith.constant 0 : index
      %c256_50 = arith.constant 256 : index
      %68 = vector.load %arg7[%c0_49, %c256_50] : memref<1x512xf32, #tpu.memory_space<vmem>>, vector<1x128xf32>
      %69 = vector.broadcast %68 : vector<1x128xf32> to vector<128x128xf32>
      %70 = arith.addf %67, %69 : vector<128x128xf32>
      %cst_51 = arith.constant 0.000000e+00 : f32
      %71 = vector.broadcast %cst_51 : f32 to vector<128x128xf32>
      %72 = arith.maximumf %70, %71 : vector<128x128xf32>
      %73 = arith.truncf %72 : vector<128x128xf32> to vector<128x128xbf16>
      %c256_52 = arith.constant 256 : index
      %c0_53 = arith.constant 0 : index
      %74 = vector.load %arg8[%c256_52, %c0_53] : memref<512x128xbf16, #tpu.memory_space<vmem>>, vector<128x128xbf16>
      %cst_54 = arith.constant dense<0.000000e+00> : vector<128x128xf32>
      %75 = tpu.matmul %73, %74, %cst_54 {dimension_numbers = #tpu.dot_dimension_numbers<[1], [0], [0], [1], [0, 0, 1, 1], [], []>} : vector<128x128xbf16>, vector<128x128xbf16>, vector<128x128xf32> -> vector<128x128xf32>
      %76 = arith.addf %59, %75 : vector<128x128xf32>
      %c256_55 = arith.constant 256 : index
      %c0_56 = arith.constant 0 : index
      %77 = vector.load %arg9[%c256_55, %c0_56] : memref<512x128xbf16, #tpu.memory_space<vmem>>, vector<128x128xbf16>
      %cst_57 = arith.constant dense<0.000000e+00> : vector<128x128xf32>
      %78 = tpu.matmul %73, %77, %cst_57 {dimension_numbers = #tpu.dot_dimension_numbers<[1], [0], [0], [1], [0, 0, 1, 1], [], []>} : vector<128x128xbf16>, vector<128x128xbf16>, vector<128x128xf32> -> vector<128x128xf32>
      %79 = arith.addf %62, %78 : vector<128x128xf32>
      %c0_58 = arith.constant 0 : index
      %c384 = arith.constant 384 : index
      %80 = vector.load %arg5[%c0_58, %c384] : memref<128x512xbf16, #tpu.memory_space<vmem>>, vector<128x128xbf16>
      %cst_59 = arith.constant dense<0.000000e+00> : vector<128x128xf32>
      %81 = tpu.matmul %24, %80, %cst_59 {dimension_numbers = #tpu.dot_dimension_numbers<[1], [0], [0], [1], [0, 0, 1, 1], [], []>} : vector<128x128xbf16>, vector<128x128xbf16>, vector<128x128xf32> -> vector<128x128xf32>
      %c0_60 = arith.constant 0 : index
      %c384_61 = arith.constant 384 : index
      %82 = vector.load %arg6[%c0_60, %c384_61] : memref<128x512xbf16, #tpu.memory_space<vmem>>, vector<128x128xbf16>
      %cst_62 = arith.constant dense<0.000000e+00> : vector<128x128xf32>
      %83 = tpu.matmul %26, %82, %cst_62 {dimension_numbers = #tpu.dot_dimension_numbers<[1], [0], [0], [1], [0, 0, 1, 1], [], []>} : vector<128x128xbf16>, vector<128x128xbf16>, vector<128x128xf32> -> vector<128x128xf32>
      %84 = arith.addf %81, %83 : vector<128x128xf32>
      %c0_63 = arith.constant 0 : index
      %c384_64 = arith.constant 384 : index
      %85 = vector.load %arg7[%c0_63, %c384_64] : memref<1x512xf32, #tpu.memory_space<vmem>>, vector<1x128xf32>
      %86 = vector.broadcast %85 : vector<1x128xf32> to vector<128x128xf32>
      %87 = arith.addf %84, %86 : vector<128x128xf32>
      %cst_65 = arith.constant 0.000000e+00 : f32
      %88 = vector.broadcast %cst_65 : f32 to vector<128x128xf32>
      %89 = arith.maximumf %87, %88 : vector<128x128xf32>
      %90 = arith.truncf %89 : vector<128x128xf32> to vector<128x128xbf16>
      %c384_66 = arith.constant 384 : index
      %c0_67 = arith.constant 0 : index
      %91 = vector.load %arg8[%c384_66, %c0_67] : memref<512x128xbf16, #tpu.memory_space<vmem>>, vector<128x128xbf16>
      %cst_68 = arith.constant dense<0.000000e+00> : vector<128x128xf32>
      %92 = tpu.matmul %90, %91, %cst_68 {dimension_numbers = #tpu.dot_dimension_numbers<[1], [0], [0], [1], [0, 0, 1, 1], [], []>} : vector<128x128xbf16>, vector<128x128xbf16>, vector<128x128xf32> -> vector<128x128xf32>
      %93 = arith.addf %76, %92 : vector<128x128xf32>
      %c384_69 = arith.constant 384 : index
      %c0_70 = arith.constant 0 : index
      %94 = vector.load %arg9[%c384_69, %c0_70] : memref<512x128xbf16, #tpu.memory_space<vmem>>, vector<128x128xbf16>
      %cst_71 = arith.constant dense<0.000000e+00> : vector<128x128xf32>
      %95 = tpu.matmul %90, %94, %cst_71 {dimension_numbers = #tpu.dot_dimension_numbers<[1], [0], [0], [1], [0, 0, 1, 1], [], []>} : vector<128x128xbf16>, vector<128x128xbf16>, vector<128x128xf32> -> vector<128x128xf32>
      %96 = arith.addf %79, %95 : vector<128x128xf32>
      %97 = arith.truncf %93 : vector<128x128xf32> to vector<128x128xbf16>
      %c0_72 = arith.constant 0 : index
      %c0_73 = arith.constant 0 : index
      %98 = vector.load %arg11[%c0_72, %c0_73] : memref<128x128xbf16, #tpu.memory_space<vmem>>, vector<128x128xbf16>
      tpu.vector_store %arg11[%c0_72, %c0_73], %97 {strides = array<i32>} : memref<128x128xbf16, #tpu.memory_space<vmem>>, vector<128x128xbf16>,
      %c0_74 = arith.constant 0 : index
      %c0_75 = arith.constant 0 : index
      %99 = vector.load %arg10[%c0_74, %c0_75] : memref<1x128xf32, #tpu.memory_space<vmem>>, vector<1x128xf32>
      %100 = vector.broadcast %99 : vector<1x128xf32> to vector<128x128xf32>
      %101 = arith.addf %96, %100 : vector<128x128xf32>
      %c0_76 = arith.constant 0 : index
      %c0_77 = arith.constant 0 : index
      %102 = vector.load %arg12[%c0_76, %c0_77] : memref<128x128xf32, #tpu.memory_space<vmem>>, vector<128x128xf32>
      tpu.vector_store %arg12[%c0_76, %c0_77], %101 {strides = array<i32>} : memref<128x128xf32, #tpu.memory_space<vmem>>, vector<128x128xf32>,
    } else {
    }
    return
  }
  func.func @transform_0(%arg0: i32, %arg1: i32) -> (i32, i32) {
    %c0_i32 = arith.constant 0 : i32
    return %arg0, %arg1 : i32, i32
  }
  func.func @transform_1(%arg0: i32, %arg1: i32) -> (i32, i32) {
    %c0_i32 = arith.constant 0 : i32
    %c0_i32_0 = arith.constant 0 : i32
    %c0_i32_1 = arith.constant 0 : i32
    return %c0_i32, %c0_i32_0 : i32, i32
  }
  func.func @transform_2(%arg0: i32, %arg1: i32) -> (i32, i32) {
    %c0_i32 = arith.constant 0 : i32
    %c0_i32_0 = arith.constant 0 : i32
    %c0_i32_1 = arith.constant 0 : i32
    return %c0_i32, %c0_i32_0 : i32, i32
  }
  func.func @transform_3(%arg0: i32, %arg1: i32) -> (i32, i32) {
    %c0_i32 = arith.constant 0 : i32
    %c0_i32_0 = arith.constant 0 : i32
    %c0_i32_1 = arith.constant 0 : i32
    return %c0_i32, %c0_i32_0 : i32, i32
  }
  func.func @transform_4(%arg0: i32, %arg1: i32) -> (i32, i32) {
    %c0_i32 = arith.constant 0 : i32
    %c0_i32_0 = arith.constant 0 : i32
    %c0_i32_1 = arith.constant 0 : i32
    return %c0_i32, %c0_i32_0 : i32, i32
  }
  func.func @transform_5(%arg0: i32, %arg1: i32) -> (i32, i32) {
    %c0_i32 = arith.constant 0 : i32
    %c0_i32_0 = arith.constant 0 : i32
    %c0_i32_1 = arith.constant 0 : i32
    return %c0_i32, %c0_i32_0 : i32, i32
  }
  func.func @transform_6(%arg0: i32, %arg1: i32) -> (i32, i32) {
    %c0_i32 = arith.constant 0 : i32
    %c0_i32_0 = arith.constant 0 : i32
    %c0_i32_1 = arith.constant 0 : i32
    return %c0_i32, %c0_i32_0 : i32, i32
  }
  func.func @transform_7(%arg0: i32, %arg1: i32) -> (i32, i32) {
    %c0_i32 = arith.constant 0 : i32
    %c0_i32_0 = arith.constant 0 : i32
    %c0_i32_1 = arith.constant 0 : i32
    return %c0_i32, %c0_i32_0 : i32, i32
  }
  func.func @transform_8(%arg0: i32, %arg1: i32) -> (i32, i32) {
    %c0_i32 = arith.constant 0 : i32
    %c0_i32_0 = arith.constant 0 : i32
    %c0_i32_1 = arith.constant 0 : i32
    return %c0_i32, %c0_i32_0 : i32, i32
  }
  func.func @transform_9(%arg0: i32, %arg1: i32) -> (i32, i32) {
    %c0_i32 = arith.constant 0 : i32
    %c0_i32_0 = arith.constant 0 : i32
    return %arg0, %c0_i32 : i32, i32
  }
  func.func @transform_10(%arg0: i32, %arg1: i32) -> (i32, i32) {
    %c0_i32 = arith.constant 0 : i32
    %c0_i32_0 = arith.constant 0 : i32
    return %arg0, %c0_i32 : i32, i32
  }
}

</mosaic_0001>

<llo_original>
// kernel: tpu_custom_call.1
$region0: #{tpu_custom_call.1}
  #allocation0 [shape = 'u32[]', space=smem, size = 0x4, offset = 0x4, fixed_abs, tag = 'smem constant byte address 0x4 - core index']
  #allocation1 [shape = 'u32[144,128]{1,0:T(1,128)}', space=vmem, size = 0x12000, scoped, tag = 'internal scratch']
  #allocation2 [shape = 'f32[128,128]{1,0:T(8,128)}', space=vmem, size = 0x10000, scoped, tag = 'scratch operand']
  %s0 = inlined_call_operand.vmem [shape: s8[384,384], index: 0, kind: input, shape index: {}]
  %s1 = inlined_call_operand.hbm [shape: bf16[384,128], index: 1, kind: input, shape index: {}]
  %s2 = inlined_call_operand.vmem [shape: f32[384,1], index: 2, kind: input, shape index: {}]
  %s3 = inlined_call_operand.hbm [shape: bf16[128,512], index: 3, kind: input, shape index: {}]
  %s4 = inlined_call_operand.hbm [shape: bf16[128,512], index: 4, kind: input, shape index: {}]
  %s5 = inlined_call_operand.vmem [shape: f32[1,512], index: 5, kind: input, shape index: {}]
  %s6 = inlined_call_operand.hbm [shape: bf16[512,128], index: 6, kind: input, shape index: {}]
  %s7 = inlined_call_operand.hbm [shape: bf16[512,128], index: 7, kind: input, shape index: {}]
  %s8 = inlined_call_operand.vmem [shape: f32[1,128], index: 8, kind: input, shape index: {}]
  %s9 = inlined_call_operand.hbm [shape: bf16[384,128], index: 9, kind: output, shape index: {0}]
  %s10 = inlined_call_operand.hbm [shape: f32[384,128], index: 10, kind: output, shape index: {1}]
  %11 = xla_tuple %s9, %s10
  %s12 = sld [smem:[#allocation0]]
  $region143: #{tpu_custom_call.1} parent=0
    _
  %s14 = ssub.s32 1, %s12
  %s15 = scalar_select 0, %s14, %s12
  $region1: #{tpu_custom_call.1} parent=0
    #allocation3 [shape = 'u8[32768]{0}', space=vmem, size = 0x8000, scoped, tag = 'input window, operand 0']
    #allocation4 [shape = 'u8[98304]{0}', space=vmem, size = 0x18000, scoped, tag = 'input window, operand 1, single buffered']
    #allocation5 [shape = 's32[2]{0}', space=sflag, size = 0x8, scoped, tag = 'scoped memory for tpu_custom_call.1']
    #allocation6 [shape = 's32[2]{0}', space=sflag, size = 0x8, scoped, tag = 'scoped memory for tpu_custom_call.1']
    #allocation7 [shape = 'u8[131072]{0}', space=vmem, size = 0x20000, scoped, tag = 'input window, operand 3, single buffered']
    #allocation8 [shape = 's32[1]{0}', space=sflag, size = 0x4, scoped, tag = 'scoped memory for tpu_custom_call.1']
    #allocation9 [shape = 'u8[131072]{0}', space=vmem, size = 0x20000, scoped, tag = 'input window, operand 4, single buffered']
    #allocation10 [shape = 'u8[131072]{0}', space=vmem, size = 0x20000, scoped, tag = 'input window, operand 6, single buffered']
    #allocation11 [shape = 's32[1]{0}', space=sflag, size = 0x4, scoped, tag = 'scoped memory for tpu_custom_call.1']
    #allocation12 [shape = 'u8[131072]{0}', space=vmem, size = 0x20000, scoped, tag = 'input window, operand 7, single buffered']
    #allocation13 [shape = 'u8[65536]{0}', space=vmem, size = 0x10000, scoped, tag = 'output window, operand 0']
    #allocation14 [shape = 'u8[131072]{0}', space=vmem, size = 0x20000, scoped, tag = 'output window, operand 1']
    #allocation15 [shape = 's32[2]{0}', space=sflag, size = 0x8, scoped, tag = 'scoped memory for tpu_custom_call.1']
    %16 = vsyncpa [#allocation5], 0
    %17 = vsyncpa [#allocation8], 0
    %18 = vsyncpa [#allocation11], 0
    %19 = vsyncpa [#allocation6], 0
    %s20 = scalar_lea.sflag [#allocation6], 1
    %21 = vsyncpa %s20, 0
    %22 = vsyncpa [#allocation15], 0
    %s23 = scalar_lea.sflag [#allocation15], 1
    %24 = vsyncpa %s23, 0
    loop: start=0, step=1, limit=11
    $region2: #{tpu_custom_call.1} parent=1 // loop_pre_header
      _
    $region3: #{tpu_custom_call.1} parent=1 // loop_header
      %s26 = sphi 0, %s30
      %p27 = scmp.ge.s32.totalorder %s26, 11
      %s33 = sphi 0, %s45
      %s34 = sphi 0, %s41
      %s35 = sphi 0, %s33
      %s36 = sphi 0, %s34
      %s37 = sphi 0, %s35
      %s38 = sphi 0, %s36
      %s50 = sphi 0, %s52
      %s53 = sphi 0, %s50
      %s54 = sphi 0, %s53
      %s70 = sphi 0, %s54
      %s74 = sphi 0, %s74
      %s76 = sphi 0, %s74
      %s77 = sphi 0, %s76
      %s91 = sphi 0, %s77
      %s95 = sphi 0, %s95
      %s97 = sphi 0, %s95
      %s98 = sphi 0, %s97
      %s112 = sphi 0, %s98
      %s116 = sphi 0, %s116
      %s118 = sphi 0, %s116
      %s119 = sphi 0, %s118
      %s133 = sphi 0, %s119
      %s137 = sphi 0, %s137
      %s139 = sphi 0, %s137
      %s140 = sphi 0, %s139
      %s154 = sphi 0, %s140
      %s158 = sphi 0, %s158
      %s160 = sphi 0, %s158
      %s161 = sphi 0, %s160
      %s175 = sphi 0, %s161
      %s179 = sphi 0, %s179
      %s181 = sphi 0, %s179
      %s182 = sphi 0, %s181
      %s196 = sphi 0, %s182
      %s200 = sphi 0, %s200
      %s202 = sphi 0, %s200
      %s203 = sphi 0, %s202
      %s217 = sphi 0, %s203
      %s221 = sphi 0, %s221
      %s223 = sphi 0, %s221
      %s224 = sphi 0, %s223
      %s238 = sphi 0, %s224
      %s244 = sphi 0, %s246
      %s247 = sphi 0, %s244
      %s248 = sphi 0, %s247
      %s264 = sphi 0, %s248
      %s270 = sphi 0, %s272
      %s273 = sphi 0, %s270
      %s274 = sphi 0, %s273
      %s290 = sphi 0, %s274
    $region4: #{tpu_custom_call.1} parent=1 // loop_header_branch
      %29 = sbr.rel (%p27) target = $region8
    $region5: #{tpu_custom_call.1} parent=1 // loop_body
      %s31 = ssub.s32 %s26, 1
      %s32 = ssub.s32 %s26, 2
      %s39 = sadd.s32 1, %s34
      %p40 = scmp.ge.s32.totalorder %s39, 3
      %s41 = scalar_select %p40, 0, %s39
      %s42 = sadd.s32 1, %s33
      %s43 = scalar_select %p40, %s42, %s33
      %p44 = scmp.ge.s32.totalorder %s43, 3
      %s45 = scalar_select %p44, 0, %s43
      %s46 = ssub.s32 %s33, %s45
      %s47 = ssub.s32 %s34, %s41
      %s48 = sor.u32 %s46, %s47
      %p49 = scmp.eq.s32.totalorder %s48, 0
      %s51 = sadd.s32 %s50, 1
      %s52 = scalar_select %p49, %s50, %s51
      %p55 = pneg %p49
      %p56 = scmp.eq.s32.totalorder %s26, 8
      %p57 = por %p55, %p56
      %p58 = scmp.ne.s32.totalorder %s50, %s53
      %p59 = scmp.eq.s32.totalorder %s26, 0
      %p60 = por %p58, %p59
      %p61 = scmp.ne.s32.totalorder %s50, %s53
      %p62 = scmp.eq.s32.totalorder %s31, 8
      %p63 = por %p61, %p62
      %p64 = scmp.ne.s32.totalorder %s53, %s54
      %p65 = scmp.eq.s32.totalorder %s31, 0
      %p66 = por %p64, %p65
      %p67 = scmp.ne.s32.totalorder %s53, %s54
      %p68 = scmp.eq.s32.totalorder %s32, 8
      %p69 = por %p67, %p68
      %p71 = scmp.ne.s32.totalorder %s54, %s70
      %p72 = scmp.eq.s32.totalorder %s32, 0
      %p73 = por %p71, %p72
      %s75 = sadd.s32 %s74, 1
      %p78 = scmp.eq.s32.totalorder %s26, 8
      %p79 = scmp.ne.s32.totalorder %s74, %s76
      %p80 = scmp.eq.s32.totalorder %s26, 0
      %p81 = por %p79, %p80
      %p82 = scmp.ne.s32.totalorder %s74, %s76
      %p83 = scmp.eq.s32.totalorder %s31, 8
      %p84 = por %p82, %p83
      %p85 = scmp.ne.s32.totalorder %s76, %s77
      %p86 = scmp.eq.s32.totalorder %s31, 0
      %p87 = por %p85, %p86
      %p88 = scmp.ne.s32.totalorder %s76, %s77
      %p89 = scmp.eq.s32.totalorder %s32, 8
      %p90 = por %p88, %p89
      %p92 = scmp.ne.s32.totalorder %s77, %s91
      %p93 = scmp.eq.s32.totalorder %s32, 0
      %p94 = por %p92, %p93
      %s96 = sadd.s32 %s95, 1
      %p99 = scmp.eq.s32.totalorder %s26, 8
      %p100 = scmp.ne.s32.totalorder %s95, %s97
      %p101 = scmp.eq.s32.totalorder %s26, 0
      %p102 = por %p100, %p101
      %p103 = scmp.ne.s32.totalorder %s95, %s97
      %p104 = scmp.eq.s32.totalorder %s31, 8
      %p105 = por %p103, %p104
      %p106 = scmp.ne.s32.totalorder %s97, %s98
      %p107 = scmp.eq.s32.totalorder %s31, 0
      %p108 = por %p106, %p107
      %p109 = scmp.ne.s32.totalorder %s97, %s98
      %p110 = scmp.eq.s32.totalorder %s32, 8
      %p111 = por %p109, %p110
      %p113 = scmp.ne.s32.totalorder %s98, %s112
      %p114 = scmp.eq.s32.totalorder %s32, 0
      %p115 = por %p113, %p114
      %s117 = sadd.s32 %s116, 1
      %p120 = scmp.eq.s32.totalorder %s26, 8
      %p121 = scmp.ne.s32.totalorder %s116, %s118
      %p122 = scmp.eq.s32.totalorder %s26, 0
      %p123 = por %p121, %p122
      %p124 = scmp.ne.s32.totalorder %s116, %s118
      %p125 = scmp.eq.s32.totalorder %s31, 8
      %p126 = por %p124, %p125
      %p127 = scmp.ne.s32.totalorder %s118, %s119
      %p128 = scmp.eq.s32.totalorder %s31, 0
      %p129 = por %p127, %p128
      %p130 = scmp.ne.s32.totalorder %s118, %s119
      %p131 = scmp.eq.s32.totalorder %s32, 8
      %p132 = por %p130, %p131
      %p134 = scmp.ne.s32.totalorder %s119, %s133
      %p135 = scmp.eq.s32.totalorder %s32, 0
      %p136 = por %p134, %p135
      %s138 = sadd.s32 %s137, 1
      %p141 = scmp.eq.s32.totalorder %s26, 8
      %p142 = scmp.ne.s32.totalorder %s137, %s139
      %p143 = scmp.eq.s32.totalorder %s26, 0
      %p144 = por %p142, %p143
      %p145 = scmp.ne.s32.totalorder %s137, %s139
      %p146 = scmp.eq.s32.totalorder %s31, 8
      %p147 = por %p145, %p146
      %p148 = scmp.ne.s32.totalorder %s139, %s140
      %p149 = scmp.eq.s32.totalorder %s31, 0
      %p150 = por %p148, %p149
      %p151 = scmp.ne.s32.totalorder %s139, %s140
      %p152 = scmp.eq.s32.totalorder %s32, 8
      %p153 = por %p151, %p152
      %p155 = scmp.ne.s32.totalorder %s140, %s154
      %p156 = scmp.eq.s32.totalorder %s32, 0
      %p157 = por %p155, %p156
      %s159 = sadd.s32 %s158, 1
      %p162 = scmp.eq.s32.totalorder %s26, 8
      %p163 = scmp.ne.s32.totalorder %s158, %s160
      %p164 = scmp.eq.s32.totalorder %s26, 0
      %p165 = por %p163, %p164
      %p166 = scmp.ne.s32.totalorder %s158, %s160
      %p167 = scmp.eq.s32.totalorder %s31, 8
      %p168 = por %p166, %p167
      %p169 = scmp.ne.s32.totalorder %s160, %s161
      %p170 = scmp.eq.s32.totalorder %s31, 0
      %p171 = por %p169, %p170
      %p172 = scmp.ne.s32.totalorder %s160, %s161
      %p173 = scmp.eq.s32.totalorder %s32, 8
      %p174 = por %p172, %p173
      %p176 = scmp.ne.s32.totalorder %s161, %s175
      %p177 = scmp.eq.s32.totalorder %s32, 0
      %p178 = por %p176, %p177
      %s180 = sadd.s32 %s179, 1
      %p183 = scmp.eq.s32.totalorder %s26, 8
      %p184 = scmp.ne.s32.totalorder %s179, %s181
      %p185 = scmp.eq.s32.totalorder %s26, 0
      %p186 = por %p184, %p185
      %p187 = scmp.ne.s32.totalorder %s179, %s181
      %p188 = scmp.eq.s32.totalorder %s31, 8
      %p189 = por %p187, %p188
      %p190 = scmp.ne.s32.totalorder %s181, %s182
      %p191 = scmp.eq.s32.totalorder %s31, 0
      %p192 = por %p190, %p191
      %p193 = scmp.ne.s32.totalorder %s181, %s182
      %p194 = scmp.eq.s32.totalorder %s32, 8
      %p195 = por %p193, %p194
      %p197 = scmp.ne.s32.totalorder %s182, %s196
      %p198 = scmp.eq.s32.totalorder %s32, 0
      %p199 = por %p197, %p198
      %s201 = sadd.s32 %s200, 1
      %p204 = scmp.eq.s32.totalorder %s26, 8
      %p205 = scmp.ne.s32.totalorder %s200, %s202
      %p206 = scmp.eq.s32.totalorder %s26, 0
      %p207 = por %p205, %p206
      %p208 = scmp.ne.s32.totalorder %s200, %s202
      %p209 = scmp.eq.s32.totalorder %s31, 8
      %p210 = por %p208, %p209
      %p211 = scmp.ne.s32.totalorder %s202, %s203
      %p212 = scmp.eq.s32.totalorder %s31, 0
      %p213 = por %p211, %p212
      %p214 = scmp.ne.s32.totalorder %s202, %s203
      %p215 = scmp.eq.s32.totalorder %s32, 8
      %p216 = por %p214, %p215
      %p218 = scmp.ne.s32.totalorder %s203, %s217
      %p219 = scmp.eq.s32.totalorder %s32, 0
      %p220 = por %p218, %p219
      %s222 = sadd.s32 %s221, 1
      %p225 = scmp.eq.s32.totalorder %s26, 8
      %p226 = scmp.ne.s32.totalorder %s221, %s223
      %p227 = scmp.eq.s32.totalorder %s26, 0
      %p228 = por %p226, %p227
      %p229 = scmp.ne.s32.totalorder %s221, %s223
      %p230 = scmp.eq.s32.totalorder %s31, 8
      %p231 = por %p229, %p230
      %p232 = scmp.ne.s32.totalorder %s223, %s224
      %p233 = scmp.eq.s32.totalorder %s31, 0
      %p234 = por %p232, %p233
      %p235 = scmp.ne.s32.totalorder %s223, %s224
      %p236 = scmp.eq.s32.totalorder %s32, 8
      %p237 = por %p235, %p236
      %p239 = scmp.ne.s32.totalorder %s224, %s238
      %p240 = scmp.eq.s32.totalorder %s32, 0
      %p241 = por %p239, %p240
      %s242 = ssub.s32 %s33, %s45
      %p243 = scmp.eq.s32.totalorder %s242, 0
      %s245 = sadd.s32 %s244, 1
      %s246 = scalar_select %p243, %s244, %s245
      %p249 = pneg %p243
      %p250 = scmp.eq.s32.totalorder %s26, 8
      %p251 = por %p249, %p250
      %p252 = scmp.ne.s32.totalorder %s244, %s247
      %p253 = scmp.eq.s32.totalorder %s26, 0
      %p254 = por %p252, %p253
      %p255 = scmp.ne.s32.totalorder %s244, %s247
      %p256 = scmp.eq.s32.totalorder %s31, 8
      %p257 = por %p255, %p256
      %p258 = scmp.ne.s32.totalorder %s247, %s248
      %p259 = scmp.eq.s32.totalorder %s31, 0
      %p260 = por %p258, %p259
      %p261 = scmp.ne.s32.totalorder %s247, %s248
      %p262 = scmp.eq.s32.totalorder %s32, 8
      %p263 = por %p261, %p262
      %p265 = scmp.ne.s32.totalorder %s248, %s264
      %p266 = scmp.eq.s32.totalorder %s32, 0
      %p267 = por %p265, %p266
      %s268 = ssub.s32 %s33, %s45
      %p269 = scmp.eq.s32.totalorder %s268, 0
      %s271 = sadd.s32 %s270, 1
      %s272 = scalar_select %p269, %s270, %s271
      %p275 = pneg %p269
      %p276 = scmp.eq.s32.totalorder %s26, 8
      %p277 = por %p275, %p276
      %p278 = scmp.ne.s32.totalorder %s270, %s273
      %p279 = scmp.eq.s32.totalorder %s26, 0
      %p280 = por %p278, %p279
      %p281 = scmp.ne.s32.totalorder %s270, %s273
      %p282 = scmp.eq.s32.totalorder %s31, 8
      %p283 = por %p281, %p282
      %p284 = scmp.ne.s32.totalorder %s273, %s274
      %p285 = scmp.eq.s32.totalorder %s31, 0
      %p286 = por %p284, %p285
      %p287 = scmp.ne.s32.totalorder %s273, %s274
      %p288 = scmp.eq.s32.totalorder %s32, 8
      %p289 = por %p287, %p288
      %p291 = scmp.ne.s32.totalorder %s274, %s290
      %p292 = scmp.eq.s32.totalorder %s32, 0
      %p293 = por %p291, %p292
      %p294 = scmp.le.s32.totalorder 1, %s26
      %p295 = scmp.lt.s32.totalorder %s26, 10
      %p296 = pnand %p294, %p295
      %p297 = pneg %p296
      // Predicated region
      $region9: #{tpu_custom_call.1} parent=5 // pred_check
        _
      $region10: #{tpu_custom_call.1} parent=5 // pred_check_branch
        %299 = sbr.rel (%p296) target = $region12
      $region11: #{tpu_custom_call.1} parent=5 // pred_region
        %s300 = ssub.s32 %s26, 1
        // Predicated region
        $region13: #{tpu_custom_call.1} parent=11 // pred_check
          %p301 = pneg %p87
        $region14: #{tpu_custom_call.1} parent=11 // pred_check_branch
          %303 = sbr.rel (%p301) target = $region16
        $region15: #{tpu_custom_call.1} parent=11 // pred_region
          %s305 = ssub.s32 3072, 3072
          %306 = vsyncadd [#allocation5], %s305
          %s307 = sshll.u32 [#allocation4], 4
          %s308 = int_to_ptr.vmem [resolvable:$true] %s307
          %313 = dma.hbm_to_vmem [thread:$0]  %s1, 3072, %s308, [#allocation5], 64, 64, 4
        $region16: #{tpu_custom_call.1} parent=11 // pred_fallthru
          _
        // Predicated region
        $region17: #{tpu_custom_call.1} parent=11 // pred_check
          %p314 = pneg %p108
        $region18: #{tpu_custom_call.1} parent=11 // pred_check_branch
          %316 = sbr.rel (%p314) target = $region20
        $region19: #{tpu_custom_call.1} parent=11 // pred_region
          _
        $region20: #{tpu_custom_call.1} parent=11 // pred_fallthru
          _
        // Predicated region
        $region21: #{tpu_custom_call.1} parent=11 // pred_check
          %p317 = pneg %p129
        $region22: #{tpu_custom_call.1} parent=11 // pred_check_branch
          %319 = sbr.rel (%p317) target = $region24
        $region23: #{tpu_custom_call.1} parent=11 // pred_region
          %s321 = ssub.s32 4096, 4096
          %322 = vsyncadd [#allocation8], %s321
          %s323 = sshll.u32 [#allocation7], 4
          %s324 = int_to_ptr.vmem [resolvable:$true] %s323
          %329 = dma.hbm_to_vmem [thread:$0]  %s3, 4096, %s324, [#allocation8], 256, 256, 16
        $region24: #{tpu_custom_call.1} parent=11 // pred_fallthru
          _
        // Predicated region
        $region25: #{tpu_custom_call.1} parent=11 // pred_check
          %p330 = pneg %p150
        $region26: #{tpu_custom_call.1} parent=11 // pred_check_branch
          %332 = sbr.rel (%p330) target = $region28
        $region27: #{tpu_custom_call.1} parent=11 // pred_region
          %s334 = ssub.s32 4096, 4096
          %335 = vsyncadd [#allocation8], %s334
          %s336 = sshll.u32 [#allocation9], 4
          %s337 = int_to_ptr.vmem [resolvable:$true] %s336
          %342 = dma.hbm_to_vmem [thread:$0]  %s4, 4096, %s337, [#allocation8], 256, 256, 16
        $region28: #{tpu_custom_call.1} parent=11 // pred_fallthru
          _
        // Predicated region
        $region29: #{tpu_custom_call.1} parent=11 // pred_check
          %p343 = pneg %p171
        $region30: #{tpu_custom_call.1} parent=11 // pred_check_branch
          %345 = sbr.rel (%p343) target = $region32
        $region31: #{tpu_custom_call.1} parent=11 // pred_region
          _
        $region32: #{tpu_custom_call.1} parent=11 // pred_fallthru
          _
        // Predicated region
        $region33: #{tpu_custom_call.1} parent=11 // pred_check
          %p346 = pneg %p192
        $region34: #{tpu_custom_call.1} parent=11 // pred_check_branch
          %348 = sbr.rel (%p346) target = $region36
        $region35: #{tpu_custom_call.1} parent=11 // pred_region
          %s350 = ssub.s32 4096, 4096
          %351 = vsyncadd [#allocation11], %s350
          %s352 = sshll.u32 [#allocation10], 4
          %s353 = int_to_ptr.vmem [resolvable:$true] %s352
          %358 = dma.hbm_to_vmem [thread:$0]  %s6, 4096, %s353, [#allocation11], 64, 64, 4
        $region36: #{tpu_custom_call.1} parent=11 // pred_fallthru
          _
        // Predicated region
        $region37: #{tpu_custom_call.1} parent=11 // pred_check
          %p359 = pneg %p213
        $region38: #{tpu_custom_call.1} parent=11 // pred_check_branch
          %361 = sbr.rel (%p359) target = $region40
        $region39: #{tpu_custom_call.1} parent=11 // pred_region
          %s363 = ssub.s32 4096, 4096
          %364 = vsyncadd [#allocation11], %s363
          %s365 = sshll.u32 [#allocation12], 4
          %s366 = int_to_ptr.vmem [resolvable:$true] %s365
          %371 = dma.hbm_to_vmem [thread:$0]  %s7, 4096, %s366, [#allocation11], 64, 64, 4
        $region40: #{tpu_custom_call.1} parent=11 // pred_fallthru
          _
        // Predicated region
        $region41: #{tpu_custom_call.1} parent=11 // pred_check
          %p372 = pneg %p234
        $region42: #{tpu_custom_call.1} parent=11 // pred_check_branch
          %374 = sbr.rel (%p372) target = $region44
        $region43: #{tpu_custom_call.1} parent=11 // pred_region
          _
        $region44: #{tpu_custom_call.1} parent=11 // pred_fallthru
          _
      $region12: #{tpu_custom_call.1} parent=5 // pred_fallthru
        _
      %p375 = scmp.lt.s32.totalorder %s26, 9
      // Predicated region
      $region45: #{tpu_custom_call.1} parent=5 // pred_check
        %p376 = pneg %p375
      $region46: #{tpu_custom_call.1} parent=5 // pred_check_branch
        %378 = sbr.rel (%p376) target = $region48
      $region47: #{tpu_custom_call.1} parent=5 // pred_region
        // Predicated region
        $region49: #{tpu_custom_call.1} parent=47 // pred_check
          %p379 = pneg %p60
        $region50: #{tpu_custom_call.1} parent=47 // pred_check_branch
          %381 = sbr.rel (%p379) target = $region52
        $region51: #{tpu_custom_call.1} parent=47 // pred_region
          %s382 = sand.u32 %s50, 1
          %s383 = sand.u32 %s50, 1
          %s384 = smul.addr %s383, 32
          %s385 = scalar_lea.vmem [#allocation3], %s384
          %s386 = smul.u32 4, %s33
          %s387 = smul.addr %s386, 3
          %s388 = sadd.s32 %s34, %s387
          %s389 = smul.addr %s388, 8
          %s390 = scalar_lea.vmem %s0, %s389
          // Predicated region
          $region53: #{tpu_custom_call.1} parent=51 // pred_check
            _
          $region54: #{tpu_custom_call.1} parent=51 // pred_check_branch
            %392 = sbr.rel (0) target = $region56
          $region55: #{tpu_custom_call.1} parent=51 // pred_region
            // Predicated region
            $region57: #{tpu_custom_call.1} parent=55 // pred_check
              _
            $region58: #{tpu_custom_call.1} parent=55 // pred_check_branch
              %394 = sbr.rel (0) target = $region60
            $region59: #{tpu_custom_call.1} parent=55 // pred_region
              // Predicated region
              $region72: #{tpu_custom_call.1} parent=59 // pred_check
                _
              $region73: #{tpu_custom_call.1} parent=59 // pred_check_branch
                %415 = sbr.rel (0) target = $region75
              $region74: #{tpu_custom_call.1} parent=59 // pred_region
                loop: start=0, step=1, limit=1
                $region76: #{tpu_custom_call.1} parent=74 // loop_pre_header
                  _
                $region77: #{tpu_custom_call.1} parent=74 // loop_header
                  %s417 = sphi 0, %s421
                  %p418 = scmp.ge.s32.totalorder %s417, 1
                  %s422 = sphi %s390, %s390
                  %s423 = sphi %s385, %s385
                $region78: #{tpu_custom_call.1} parent=74 // loop_header_branch
                  %420 = sbr.rel (%p418) target = $region82
                $region79: #{tpu_custom_call.1} parent=74 // loop_body
                  %v424 = vld [vmem:[%s422] sm:$0xff]
                  %425 = vst [vmem:[%s423] sm:$0xff] %v424
                  %v426 = vld [vmem:[%s422 + $0x18] sm:$0xff]
                  %427 = vst [vmem:[%s423 + $0x8] sm:$0xff] %v426
                  %v428 = vld [vmem:[%s422 + $0x30] sm:$0xff]
                  %429 = vst [vmem:[%s423 + $0x10] sm:$0xff] %v428
                  %v430 = vld [vmem:[%s422 + $0x48] sm:$0xff]
                  %431 = vst [vmem:[%s423 + $0x18] sm:$0xff] %v430
                $region80: #{tpu_custom_call.1} parent=74 // loop_footer
                  %s421 = sadd.s32 1, %s417
                $region81: #{tpu_custom_call.1} parent=74 // loop_footer_branch
                  %416 = sbr.rel target = $region77
                $region82: #{tpu_custom_call.1} parent=74 // loop_exit
                  _
              $region75: #{tpu_custom_call.1} parent=59 // pred_fallthru
                _
              // Predicated region
              $region83: #{tpu_custom_call.1} parent=59 // pred_check
                _
              $region84: #{tpu_custom_call.1} parent=59 // pred_check_branch
                %433 = sbr.rel target = $region86
              $region85: #{tpu_custom_call.1} parent=59 // pred_region
                _
              $region86: #{tpu_custom_call.1} parent=59 // pred_fallthru
                _
            $region60: #{tpu_custom_call.1} parent=55 // pred_fallthru
              _
            // Predicated region
            $region61: #{tpu_custom_call.1} parent=55 // pred_check
              _
            $region62: #{tpu_custom_call.1} parent=55 // pred_check_branch
              %396 = sbr.rel target = $region64
            $region63: #{tpu_custom_call.1} parent=55 // pred_region
              loop: start=0, step=1, limit=1
              $region65: #{tpu_custom_call.1} parent=63 // loop_pre_header
                _
              $region66: #{tpu_custom_call.1} parent=63 // loop_header
                %s399 = sphi 0, %s403
                %p400 = scmp.ge.s32.totalorder %s399, 1
                %s404 = sphi %s390, %s390
                %s405 = sphi %s385, %s385
              $region67: #{tpu_custom_call.1} parent=63 // loop_header_branch
                %402 = sbr.rel (%p400) target = $region71
              $region68: #{tpu_custom_call.1} parent=63 // loop_body
                %v406 = vld [vmem:[%s404] sm:$0xff]
                %407 = vst [vmem:[%s405] sm:$0xff] %v406
                %v408 = vld [vmem:[%s404 + $0x18] sm:$0xff]
                %409 = vst [vmem:[%s405 + $0x8] sm:$0xff] %v408
                %v410 = vld [vmem:[%s404 + $0x30] sm:$0xff]
                %411 = vst [vmem:[%s405 + $0x10] sm:$0xff] %v410
                %v412 = vld [vmem:[%s404 + $0x48] sm:$0xff]
                %413 = vst [vmem:[%s405 + $0x18] sm:$0xff] %v412
              $region69: #{tpu_custom_call.1} parent=63 // loop_footer
                %s403 = sadd.s32 1, %s399
              $region70: #{tpu_custom_call.1} parent=63 // loop_footer_branch
                %398 = sbr.rel target = $region66
              $region71: #{tpu_custom_call.1} parent=63 // loop_exit
                _
            $region64: #{tpu_custom_call.1} parent=55 // pred_fallthru
              _
          $region56: #{tpu_custom_call.1} parent=51 // pred_fallthru
            _
          %434 = vnop
        $region52: #{tpu_custom_call.1} parent=47 // pred_fallthru
          _
      $region48: #{tpu_custom_call.1} parent=5 // pred_fallthru
        _
      %p435 = scmp.le.s32.totalorder 1, %s26
      %p436 = scmp.lt.s32.totalorder %s26, 10
      %p437 = pnand %p435, %p436
      %p438 = pneg %p437
      // Predicated region
      $region87: #{tpu_custom_call.1} parent=5 // pred_check
        _
      $region88: #{tpu_custom_call.1} parent=5 // pred_check_branch
        %440 = sbr.rel (%p437) target = $region90
      $region89: #{tpu_custom_call.1} parent=5 // pred_region
        %s441 = ssub.s32 %s26, 1
        %s442 = sand.u32 %s53, 1
        %s443 = sand.u32 %s53, 1
        %s444 = smul.addr %s443, 32
        %s445 = scalar_lea.vmem [#allocation3], %s444
        // Predicated region
        $region91: #{tpu_custom_call.1} parent=89 // pred_check
          %p446 = pneg %p66
        $region92: #{tpu_custom_call.1} parent=89 // pred_check_branch
          %448 = sbr.rel (%p446) target = $region94
        $region93: #{tpu_custom_call.1} parent=89 // pred_region
          _
        $region94: #{tpu_custom_call.1} parent=89 // pred_fallthru
          _
        // Predicated region
        $region95: #{tpu_custom_call.1} parent=89 // pred_check
          %p449 = pneg %p87
        $region96: #{tpu_custom_call.1} parent=89 // pred_check_branch
          %451 = sbr.rel (%p449) target = $region98
        $region97: #{tpu_custom_call.1} parent=89 // pred_region
          %452 = dma.done [#allocation5], 3072
        $region98: #{tpu_custom_call.1} parent=89 // pred_fallthru
          _
        // Predicated region
        $region99: #{tpu_custom_call.1} parent=89 // pred_check
          %p453 = pneg %p129
        $region100: #{tpu_custom_call.1} parent=89 // pred_check_branch
          %455 = sbr.rel (%p453) target = $region102
        $region101: #{tpu_custom_call.1} parent=89 // pred_region
          %456 = dma.done [#allocation8], 4096
        $region102: #{tpu_custom_call.1} parent=89 // pred_fallthru
          _
        // Predicated region
        $region103: #{tpu_custom_call.1} parent=89 // pred_check
          %p457 = pneg %p150
        $region104: #{tpu_custom_call.1} parent=89 // pred_check_branch
          %459 = sbr.rel (%p457) target = $region106
        $region105: #{tpu_custom_call.1} parent=89 // pred_region
          %460 = dma.done [#allocation8], 4096
        $region106: #{tpu_custom_call.1} parent=89 // pred_fallthru
          _
        // Predicated region
        $region107: #{tpu_custom_call.1} parent=89 // pred_check
          %p461 = pneg %p192
        $region108: #{tpu_custom_call.1} parent=89 // pred_check_branch
          %463 = sbr.rel (%p461) target = $region110
        $region109: #{tpu_custom_call.1} parent=89 // pred_region
          %464 = dma.done [#allocation11], 4096
        $region110: #{tpu_custom_call.1} parent=89 // pred_fallthru
          _
        // Predicated region
        $region111: #{tpu_custom_call.1} parent=89 // pred_check
          %p465 = pneg %p213
        $region112: #{tpu_custom_call.1} parent=89 // pred_check_branch
          %467 = sbr.rel (%p465) target = $region114
        $region113: #{tpu_custom_call.1} parent=89 // pred_region
          %468 = dma.done [#allocation11], 4096
        $region114: #{tpu_custom_call.1} parent=89 // pred_fallthru
          _
        %s469 = sand.u32 %s53, 1
        %s470 = sand.u32 %s53, 1
        %s471 = smul.addr %s470, 32
        %s472 = scalar_lea.vmem [#allocation3], %s471
        %p473 = pneg %p66
        %p474 = pneg %p63
        %p475 = pneg %p87
        %p476 = pneg %p84
        %p477 = pneg %p108
        %p478 = pneg %p105
        %p479 = pneg %p129
        %p480 = pneg %p126
        %p481 = pneg %p150
        %p482 = pneg %p147
        %p483 = pneg %p171
        %p484 = pneg %p168
        %p485 = pneg %p192
        %p486 = pneg %p189
        %p487 = pneg %p213
        %p488 = pneg %p210
        %p489 = pneg %p234
        %p490 = pneg %p231
        %p491 = pneg %p260
        %p492 = pneg %p257
        %s493 = sand.u32 %s247, 1
        %s494 = scalar_lea.sflag [#allocation6], %s493
        %s495 = sand.u32 %s247, 1
        %s496 = smul.addr %s495, 64
        %s497 = scalar_lea.vmem [#allocation13], %s496
        %p498 = pneg %p286
        %p499 = pneg %p283
        %s500 = sand.u32 %s273, 1
        %s501 = scalar_lea.sflag [#allocation15], %s500
        %s502 = sand.u32 %s273, 1
        %s503 = smul.addr %s502, 128
        %s504 = scalar_lea.vmem [#allocation14], %s503
        %s505 = smul.u32 4, %s35
        %s506 = smul.u32 16, %s35
        %s507 = smul.u32 16, %s35
        %p509 = scmp.eq.s32.totalorder %s36, 0
        // Predicated region
        $region115: #{tpu_custom_call.1} parent=89 // pred_check
          %p510 = pneg %p509
        $region116: #{tpu_custom_call.1} parent=89 // pred_check_branch
          %512 = sbr.rel (%p510) target = $region118
        $region117: #{tpu_custom_call.1} parent=89 // pred_region
          %513 = vst [vmem:[#allocation2] sm:$0xff] 0.0
          %514 = vst [vmem:[#allocation2 + $0x8] sm:$0xff] 0.0
          %515 = vst [vmem:[#allocation2 + $0x10] sm:$0xff] 0.0
          %516 = vst [vmem:[#allocation2 + $0x18] sm:$0xff] 0.0
          %517 = vst [vmem:[#allocation2 + $0x20] sm:$0xff] 0.0
          %518 = vst [vmem:[#allocation2 + $0x28] sm:$0xff] 0.0
          %519 = vst [vmem:[#allocation2 + $0x30] sm:$0xff] 0.0
          %520 = vst [vmem:[#allocation2 + $0x38] sm:$0xff] 0.0
          %521 = vst [vmem:[#allocation2 + $0x40] sm:$0xff] 0.0
          %522 = vst [vmem:[#allocation2 + $0x48] sm:$0xff] 0.0
          %523 = vst [vmem:[#allocation2 + $0x50] sm:$0xff] 0.0
          %524 = vst [vmem:[#allocation2 + $0x58] sm:$0xff] 0.0
          %525 = vst [vmem:[#allocation2 + $0x60] sm:$0xff] 0.0
          %526 = vst [vmem:[#allocation2 + $0x68] sm:$0xff] 0.0
          %527 = vst [vmem:[#allocation2 + $0x70] sm:$0xff] 0.0
          %528 = vst [vmem:[#allocation2 + $0x78] sm:$0xff] 0.0
        $region118: #{tpu_custom_call.1} parent=89 // pred_fallthru
          _
        %v529 = vld [vmem:[%s445] sm:$0xff]
        %v530 = vld [vmem:[%s445 + $0x8] sm:$0xff]
        %v531 = vld [vmem:[%s445 + $0x10] sm:$0xff]
        %v532 = vld [vmem:[%s445 + $0x18] sm:$0xff]
        %v533 = vunpack.c.l.s8.bf16 %v529
        %v534 = vunpack.c.h.s8.bf16 %v529
        %v535 = vunpack.c.l.s8.bf16 %v530
        %v536 = vunpack.c.h.s8.bf16 %v530
        %v537 = vunpack.c.l.s8.bf16 %v531
        %v538 = vunpack.c.h.s8.bf16 %v531
        %v539 = vunpack.c.l.s8.bf16 %v532
        %v540 = vunpack.c.h.s8.bf16 %v532
        %s541 = smul.u32 %s36, 128
        %s542 = sshra.s32 %s541, 3
        %s543 = sand.u32 %s541, 7
        %s544 = smul.addr %s542, 4
        %s545 = scalar_lea.vmem [#allocation4], %s544
        %v546 = vld [vmem:[%s545] sm:$0xf]
        %v547 = vld [vmem:[%s545 + $0x4] sm:$0xf]
        %v548 = vld [vmem:[%s545 + $0x8] sm:$0xf]
        %v549 = vld [vmem:[%s545 + $0xc] sm:$0xf]
        %v550 = vld [vmem:[%s545 + $0x10] sm:$0xf]
        %v551 = vld [vmem:[%s545 + $0x14] sm:$0xf]
        %v552 = vld [vmem:[%s545 + $0x18] sm:$0xf]
        %v553 = vld [vmem:[%s545 + $0x1c] sm:$0xf]
        %v554 = vld [vmem:[%s545 + $0x20] sm:$0xf]
        %v555 = vld [vmem:[%s545 + $0x24] sm:$0xf]
        %v556 = vld [vmem:[%s545 + $0x28] sm:$0xf]
        %v557 = vld [vmem:[%s545 + $0x2c] sm:$0xf]
        %v558 = vld [vmem:[%s545 + $0x30] sm:$0xf]
        %v559 = vld [vmem:[%s545 + $0x34] sm:$0xf]
        %v560 = vld [vmem:[%s545 + $0x38] sm:$0xf]
        %v561 = vld [vmem:[%s545 + $0x3c] sm:$0xf]
        %v562 = vld [vmem:[#allocation2] sm:$0xff]
        %v563 = vld [vmem:[#allocation2 + $0x8] sm:$0xff]
        %v564 = vld [vmem:[#allocation2 + $0x10] sm:$0xff]
        %v565 = vld [vmem:[#allocation2 + $0x18] sm:$0xff]
        %v566 = vld [vmem:[#allocation2 + $0x20] sm:$0xff]
        %v567 = vld [vmem:[#allocation2 + $0x28] sm:$0xff]
        %v568 = vld [vmem:[#allocation2 + $0x30] sm:$0xff]
        %v569 = vld [vmem:[#allocation2 + $0x38] sm:$0xff]
        %v570 = vld [vmem:[#allocation2 + $0x40] sm:$0xff]
        %v571 = vld [vmem:[#allocation2 + $0x48] sm:$0xff]
        %v572 = vld [vmem:[#allocation2 + $0x50] sm:$0xff]
        %v573 = vld [vmem:[#allocation2 + $0x58] sm:$0xff]
        %v574 = vld [vmem:[#allocation2 + $0x60] sm:$0xff]
        %v575 = vld [vmem:[#allocation2 + $0x68] sm:$0xff]
        %v576 = vld [vmem:[#allocation2 + $0x70] sm:$0xff]
        %v577 = vld [vmem:[#allocation2 + $0x78] sm:$0xff]
        %v594 = vunpack.c.l.b16 %v546
        %v595 = vunpack.c.l.b16 %v547
        %v596 = vunpack.c.l.b16 %v548
        %v597 = vunpack.c.l.b16 %v549
        %v598 = vunpack.c.l.b16 %v550
        %v599 = vunpack.c.l.b16 %v551
        %v600 = vunpack.c.l.b16 %v552
        %v601 = vunpack.c.l.b16 %v553
        %v602 = vunpack.c.l.b16 %v554
        %v603 = vunpack.c.l.b16 %v555
        %v604 = vunpack.c.l.b16 %v556
        %v605 = vunpack.c.l.b16 %v557
        %v606 = vunpack.c.l.b16 %v558
        %v607 = vunpack.c.l.b16 %v559
        %v608 = vunpack.c.l.b16 %v560
        %v609 = vunpack.c.l.b16 %v561
        %v610 = vpack.c.b16 %v595, %v594
        %v611 = vpack.c.b16 %v597, %v596
        %v612 = vpack.c.b16 %v599, %v598
        %v613 = vpack.c.b16 %v601, %v600
        %v614 = vpack.c.b16 %v603, %v602
        %v615 = vpack.c.b16 %v605, %v604
        %v616 = vpack.c.b16 %v607, %v606
        %v617 = vpack.c.b16 %v609, %v608
        %626 = vmatprep.subr.bf16.mxu0 0
        %627 = vmatpush1.bf16.msra.mxu0 %v610
        %628 = vmatprep.subr.bf16.mxu0 0
        %629 = vmatpush1.bf16.msra.mxu0 %v611
        %630 = vmatprep.subr.bf16.mxu0 0
        %631 = vmatpush1.bf16.msra.mxu0 %v612
        %632 = vmatprep.subr.bf16.mxu0 0
        %633 = vmatpush1.bf16.msra.mxu0 %v613
        %634 = vmatprep.subr.bf16.mxu0 0
        %635 = vmatpush1.bf16.msra.mxu0 %v614
        %636 = vmatprep.subr.bf16.mxu0 0
        %637 = vmatpush1.bf16.msra.mxu0 %v615
        %638 = vmatprep.subr.bf16.mxu0 0
        %639 = vmatpush1.bf16.msra.mxu0 %v616
        %640 = vmatprep.subr.bf16.mxu0 0
        %641 = vmatpush1.bf16.msra.mxu0 %v617
        %642 = vmatprep.subr.bf16.mxu0 0
        %643 = vmatpush1.bf16.msra.mxu0 0
        %644 = vmatprep.subr.bf16.mxu0 0
        %645 = vmatpush1.bf16.msra.mxu0 0
        %646 = vmatprep.subr.bf16.mxu0 0
        %647 = vmatpush1.bf16.msra.mxu0 0
        %648 = vmatprep.subr.bf16.mxu0 0
        %649 = vmatpush1.bf16.msra.mxu0 0
        %650 = vmatprep.subr.bf16.mxu0 0
        %651 = vmatpush1.bf16.msra.mxu0 0
        %652 = vmatprep.subr.bf16.mxu0 0
        %653 = vmatpush1.bf16.msra.mxu0 0
        %654 = vmatprep.subr.bf16.mxu0 0
        %655 = vmatpush1.bf16.msra.mxu0 0
        %656 = vmatprep.subr.bf16.mxu0 0
        %657 = vmatpush1.bf16.msra.mxu0 0
        %658 = vmatprep.mubr.bf16.mxu0 0
        %659 = vmatmul.mubr.bf16.gmra.mrb[0].mxu0 %v533
        %v660 = vpop.f32.mrb[0].mxu0
        %v661 = vadd.f32 0.0, %v660
        %v662 = vpop.f32.mrb[0].mxu0
        %v663 = vpop.f32.mrb[0].mxu0
        %v664 = vadd.f32 0.0, %v663
        %v665 = vpop.f32.mrb[0].mxu0
        %666 = vmatprep.mubr.bf16.mxu0 0
        %667 = vmatmul.mubr.bf16.gmra.mrb[0].mxu0 %v534
        %v668 = vpop.f32.mrb[0].mxu0
        %v669 = vadd.f32 0.0, %v668
        %v670 = vpop.f32.mrb[0].mxu0
        %v671 = vpop.f32.mrb[0].mxu0
        %v672 = vadd.f32 0.0, %v671
        %v673 = vpop.f32.mrb[0].mxu0
        %674 = vmatprep.mubr.bf16.mxu0 0
        %675 = vmatmul.mubr.bf16.gmra.mrb[0].mxu0 %v535
        %v676 = vpop.f32.mrb[0].mxu0
        %v677 = vadd.f32 0.0, %v676
        %v678 = vpop.f32.mrb[0].mxu0
        %v679 = vpop.f32.mrb[0].mxu0
        %v680 = vadd.f32 0.0, %v679
        %v681 = vpop.f32.mrb[0].mxu0
        %682 = vmatprep.mubr.bf16.mxu0 0
        %683 = vmatmul.mubr.bf16.gmra.mrb[0].mxu0 %v536
        %v684 = vpop.f32.mrb[0].mxu0
        %v685 = vadd.f32 0.0, %v684
        %v686 = vpop.f32.mrb[0].mxu0
        %v687 = vpop.f32.mrb[0].mxu0
        %v688 = vadd.f32 0.0, %v687
        %v689 = vpop.f32.mrb[0].mxu0
        %690 = vmatprep.mubr.bf16.mxu0 0
        %691 = vmatmul.mubr.bf16.gmra.mrb[0].mxu0 %v537
        %v692 = vpop.f32.mrb[0].mxu0
        %v693 = vadd.f32 0.0, %v692
        %v694 = vpop.f32.mrb[0].mxu0
        %v695 = vpop.f32.mrb[0].mxu0
        %v696 = vadd.f32 0.0, %v695
        %v697 = vpop.f32.mrb[0].mxu0
        %698 = vmatprep.mubr.bf16.mxu0 0
        %699 = vmatmul.mubr.bf16.gmra.mrb[0].mxu0 %v538
        %v700 = vpop.f32.mrb[0].mxu0
        %v701 = vadd.f32 0.0, %v700
        %v702 = vpop.f32.mrb[0].mxu0
        %v703 = vpop.f32.mrb[0].mxu0
        %v704 = vadd.f32 0.0, %v703
        %v705 = vpop.f32.mrb[0].mxu0
        %706 = vmatprep.mubr.bf16.mxu0 0
        %707 = vmatmul.mubr.bf16.gmra.mrb[0].mxu0 %v539
        %v708 = vpop.f32.mrb[0].mxu0
        %v709 = vadd.f32 0.0, %v708
        %v710 = vpop.f32.mrb[0].mxu0
        %v711 = vpop.f32.mrb[0].mxu0
        %v712 = vadd.f32 0.0, %v711
        %v713 = vpop.f32.mrb[0].mxu0
        %714 = vmatprep.mubr.bf16.mxu0 0
        %715 = vmatmul.mubr.bf16.gmra.mrb[0].mxu0 %v540
        %v716 = vpop.f32.mrb[0].mxu0
        %v717 = vadd.f32 0.0, %v716
        %v718 = vpop.f32.mrb[0].mxu0
        %v719 = vpop.f32.mrb[0].mxu0
        %v720 = vadd.f32 0.0, %v719
        %v721 = vpop.f32.mrb[0].mxu0
        %722 = vdwg.mxu0
        %v723 = vadd.f32 %v562, %v661
        %v724 = vadd.f32 %v563, %v664
        %v725 = vadd.f32 %v564, %v669
        %v726 = vadd.f32 %v565, %v672
        %v727 = vadd.f32 %v566, %v677
        %v728 = vadd.f32 %v567, %v680
        %v729 = vadd.f32 %v568, %v685
        %v730 = vadd.f32 %v569, %v688
        %v731 = vadd.f32 %v570, %v693
        %v732 = vadd.f32 %v571, %v696
        %v733 = vadd.f32 %v572, %v701
        %v734 = vadd.f32 %v573, %v704
        %v735 = vadd.f32 %v574, %v709
        %v736 = vadd.f32 %v575, %v712
        %v737 = vadd.f32 %v576, %v717
        %v738 = vadd.f32 %v577, %v720
        %739 = vst [vmem:[#allocation2] sm:$0xff] %v723
        %740 = vst [vmem:[#allocation2 + $0x8] sm:$0xff] %v724
        %741 = vst [vmem:[#allocation2 + $0x10] sm:$0xff] %v725
        %742 = vst [vmem:[#allocation2 + $0x18] sm:$0xff] %v726
        %743 = vst [vmem:[#allocation2 + $0x20] sm:$0xff] %v727
        %744 = vst [vmem:[#allocation2 + $0x28] sm:$0xff] %v728
        %745 = vst [vmem:[#allocation2 + $0x30] sm:$0xff] %v729
        %746 = vst [vmem:[#allocation2 + $0x38] sm:$0xff] %v730
        %747 = vst [vmem:[#allocation2 + $0x40] sm:$0xff] %v731
        %748 = vst [vmem:[#allocation2 + $0x48] sm:$0xff] %v732
        %749 = vst [vmem:[#allocation2 + $0x50] sm:$0xff] %v733
        %750 = vst [vmem:[#allocation2 + $0x58] sm:$0xff] %v734
        %751 = vst [vmem:[#allocation2 + $0x60] sm:$0xff] %v735
        %752 = vst [vmem:[#allocation2 + $0x68] sm:$0xff] %v736
        %753 = vst [vmem:[#allocation2 + $0x70] sm:$0xff] %v737
        %754 = vst [vmem:[#allocation2 + $0x78] sm:$0xff] %v738
        %p755 = scmp.eq.s32.totalorder %s36, 2
        // Predicated region
        $region119: #{tpu_custom_call.1} parent=89 // pred_check
          %p756 = pneg %p755
        $region120: #{tpu_custom_call.1} parent=89 // pred_check_branch
          %758 = sbr.rel (%p756) target = $region122
        $region121: #{tpu_custom_call.1} parent=89 // pred_region
          %s759 = smul.u32 %s35, 128
          %s760 = scalar_lea.vmem %s2, %s759
          %v761 = vld [vmem:[%s760] sm:$0xff]
          %v762 = vld [vmem:[%s760 + $0x8] sm:$0xff]
          %v763 = vld [vmem:[%s760 + $0x10] sm:$0xff]
          %v764 = vld [vmem:[%s760 + $0x18] sm:$0xff]
          %v765 = vld [vmem:[%s760 + $0x20] sm:$0xff]
          %v766 = vld [vmem:[%s760 + $0x28] sm:$0xff]
          %v767 = vld [vmem:[%s760 + $0x30] sm:$0xff]
          %v768 = vld [vmem:[%s760 + $0x38] sm:$0xff]
          %v769 = vld [vmem:[%s760 + $0x40] sm:$0xff]
          %v770 = vld [vmem:[%s760 + $0x48] sm:$0xff]
          %v771 = vld [vmem:[%s760 + $0x50] sm:$0xff]
          %v772 = vld [vmem:[%s760 + $0x58] sm:$0xff]
          %v773 = vld [vmem:[%s760 + $0x60] sm:$0xff]
          %v774 = vld [vmem:[%s760 + $0x68] sm:$0xff]
          %v775 = vld [vmem:[%s760 + $0x70] sm:$0xff]
          %v776 = vld [vmem:[%s760 + $0x78] sm:$0xff]
          %v777 = vld [vmem:[#allocation2] sm:$0xff]
          %v778 = vld [vmem:[#allocation2 + $0x8] sm:$0xff]
          %v779 = vld [vmem:[#allocation2 + $0x10] sm:$0xff]
          %v780 = vld [vmem:[#allocation2 + $0x18] sm:$0xff]
          %v781 = vld [vmem:[#allocation2 + $0x20] sm:$0xff]
          %v782 = vld [vmem:[#allocation2 + $0x28] sm:$0xff]
          %v783 = vld [vmem:[#allocation2 + $0x30] sm:$0xff]
          %v784 = vld [vmem:[#allocation2 + $0x38] sm:$0xff]
          %v785 = vld [vmem:[#allocation2 + $0x40] sm:$0xff]
          %v786 = vld [vmem:[#allocation2 + $0x48] sm:$0xff]
          %v787 = vld [vmem:[#allocation2 + $0x50] sm:$0xff]
          %v788 = vld [vmem:[#allocation2 + $0x58] sm:$0xff]
          %v789 = vld [vmem:[#allocation2 + $0x60] sm:$0xff]
          %v790 = vld [vmem:[#allocation2 + $0x68] sm:$0xff]
          %v791 = vld [vmem:[#allocation2 + $0x70] sm:$0xff]
          %v792 = vld [vmem:[#allocation2 + $0x78] sm:$0xff]
          %794 = vset.pattern.permute.xlu0 0
          %795 = vperm.xlu0 %794, %v761
          %v796 = vpop.permute.xlu0 %795
          %799 = vset.pattern.permute.xlu0 0
          %800 = vperm.xlu0 %799, %v762
          %v801 = vpop.permute.xlu0 %800
          %804 = vset.pattern.permute.xlu0 0
          %805 = vperm.xlu0 %804, %v763
          %v806 = vpop.permute.xlu0 %805
          %809 = vset.pattern.permute.xlu0 0
          %810 = vperm.xlu0 %809, %v764
          %v811 = vpop.permute.xlu0 %810
          %814 = vset.pattern.permute.xlu0 0
          %815 = vperm.xlu0 %814, %v765
          %v816 = vpop.permute.xlu0 %815
          %819 = vset.pattern.permute.xlu0 0
          %820 = vperm.xlu0 %819, %v766
          %v821 = vpop.permute.xlu0 %820
          %824 = vset.pattern.permute.xlu0 0
          %825 = vperm.xlu0 %824, %v767
          %v826 = vpop.permute.xlu0 %825
          %829 = vset.pattern.permute.xlu0 0
          %830 = vperm.xlu0 %829, %v768
          %v831 = vpop.permute.xlu0 %830
          %834 = vset.pattern.permute.xlu0 0
          %835 = vperm.xlu0 %834, %v769
          %v836 = vpop.permute.xlu0 %835
          %839 = vset.pattern.permute.xlu0 0
          %840 = vperm.xlu0 %839, %v770
          %v841 = vpop.permute.xlu0 %840
          %844 = vset.pattern.permute.xlu0 0
          %845 = vperm.xlu0 %844, %v771
          %v846 = vpop.permute.xlu0 %845
          %849 = vset.pattern.permute.xlu0 0
          %850 = vperm.xlu0 %849, %v772
          %v851 = vpop.permute.xlu0 %850
          %854 = vset.pattern.permute.xlu0 0
          %855 = vperm.xlu0 %854, %v773
          %v856 = vpop.permute.xlu0 %855
          %859 = vset.pattern.permute.xlu0 0
          %860 = vperm.xlu0 %859, %v774
          %v861 = vpop.permute.xlu0 %860
          %864 = vset.pattern.permute.xlu0 0
          %865 = vperm.xlu0 %864, %v775
          %v866 = vpop.permute.xlu0 %865
          %869 = vset.pattern.permute.xlu0 0
          %870 = vperm.xlu0 %869, %v776
          %v871 = vpop.permute.xlu0 %870
          %v873 = vmul.f32 %v777, %v796
          %v874 = vmul.f32 %v778, %v801
          %v875 = vmul.f32 %v779, %v806
          %v876 = vmul.f32 %v780, %v811
          %v877 = vmul.f32 %v781, %v816
          %v878 = vmul.f32 %v782, %v821
          %v879 = vmul.f32 %v783, %v826
          %v880 = vmul.f32 %v784, %v831
          %v881 = vmul.f32 %v785, %v836
          %v882 = vmul.f32 %v786, %v841
          %v883 = vmul.f32 %v787, %v846
          %v884 = vmul.f32 %v788, %v851
          %v885 = vmul.f32 %v789, %v856
          %v886 = vmul.f32 %v790, %v861
          %v887 = vmul.f32 %v791, %v866
          %v888 = vmul.f32 %v792, %v871
          %v889 = vpack.c.bf16 %v874, %v873
          %v890 = vpack.c.bf16 %v876, %v875
          %v891 = vpack.c.bf16 %v878, %v877
          %v892 = vpack.c.bf16 %v880, %v879
          %v893 = vpack.c.bf16 %v882, %v881
          %v894 = vpack.c.bf16 %v884, %v883
          %v895 = vpack.c.bf16 %v886, %v885
          %v896 = vpack.c.bf16 %v888, %v887
          %s897 = sshra.s32 %s759, 3
          %s898 = sand.u32 %s759, 7
          %s899 = smul.addr %s897, 4
          %s900 = scalar_lea.vmem [#allocation4], %s899
          %v901 = vld [vmem:[%s900] sm:$0xf]
          %v902 = vld [vmem:[%s900 + $0x4] sm:$0xf]
          %v903 = vld [vmem:[%s900 + $0x8] sm:$0xf]
          %v904 = vld [vmem:[%s900 + $0xc] sm:$0xf]
          %v905 = vld [vmem:[%s900 + $0x10] sm:$0xf]
          %v906 = vld [vmem:[%s900 + $0x14] sm:$0xf]
          %v907 = vld [vmem:[%s900 + $0x18] sm:$0xf]
          %v908 = vld [vmem:[%s900 + $0x1c] sm:$0xf]
          %v909 = vld [vmem:[%s900 + $0x20] sm:$0xf]
          %v910 = vld [vmem:[%s900 + $0x24] sm:$0xf]
          %v911 = vld [vmem:[%s900 + $0x28] sm:$0xf]
          %v912 = vld [vmem:[%s900 + $0x2c] sm:$0xf]
          %v913 = vld [vmem:[%s900 + $0x30] sm:$0xf]
          %v914 = vld [vmem:[%s900 + $0x34] sm:$0xf]
          %v915 = vld [vmem:[%s900 + $0x38] sm:$0xf]
          %v916 = vld [vmem:[%s900 + $0x3c] sm:$0xf]
          %v917 = vld [vmem:[#allocation7] sm:$0xf]
          %v918 = vld [vmem:[#allocation7 + $0x10] sm:$0xf]
          %v919 = vld [vmem:[#allocation7 + $0x20] sm:$0xf]
          %v920 = vld [vmem:[#allocation7 + $0x30] sm:$0xf]
          %v921 = vld [vmem:[#allocation7 + $0x40] sm:$0xf]
          %v922 = vld [vmem:[#allocation7 + $0x50] sm:$0xf]
          %v923 = vld [vmem:[#allocation7 + $0x60] sm:$0xf]
          %v924 = vld [vmem:[#allocation7 + $0x70] sm:$0xf]
          %v925 = vld [vmem:[#allocation7 + $0x80] sm:$0xf]
          %v926 = vld [vmem:[#allocation7 + $0x90] sm:$0xf]
          %v927 = vld [vmem:[#allocation7 + $0xa0] sm:$0xf]
          %v928 = vld [vmem:[#allocation7 + $0xb0] sm:$0xf]
          %v929 = vld [vmem:[#allocation7 + $0xc0] sm:$0xf]
          %v930 = vld [vmem:[#allocation7 + $0xd0] sm:$0xf]
          %v931 = vld [vmem:[#allocation7 + $0xe0] sm:$0xf]
          %v932 = vld [vmem:[#allocation7 + $0xf0] sm:$0xf]
          %v933 = vld [vmem:[#allocation9] sm:$0xf]
          %v934 = vld [vmem:[#allocation9 + $0x10] sm:$0xf]
          %v935 = vld [vmem:[#allocation9 + $0x20] sm:$0xf]
          %v936 = vld [vmem:[#allocation9 + $0x30] sm:$0xf]
          %v937 = vld [vmem:[#allocation9 + $0x40] sm:$0xf]
          %v938 = vld [vmem:[#allocation9 + $0x50] sm:$0xf]
          %v939 = vld [vmem:[#allocation9 + $0x60] sm:$0xf]
          %v940 = vld [vmem:[#allocation9 + $0x70] sm:$0xf]
          %v941 = vld [vmem:[#allocation9 + $0x80] sm:$0xf]
          %v942 = vld [vmem:[#allocation9 + $0x90] sm:$0xf]
          %v943 = vld [vmem:[#allocation9 + $0xa0] sm:$0xf]
          %v944 = vld [vmem:[#allocation9 + $0xb0] sm:$0xf]
          %v945 = vld [vmem:[#allocation9 + $0xc0] sm:$0xf]
          %v946 = vld [vmem:[#allocation9 + $0xd0] sm:$0xf]
          %v947 = vld [vmem:[#allocation9 + $0xe0] sm:$0xf]
          %v948 = vld [vmem:[#allocation9 + $0xf0] sm:$0xf]
          %v965 = vunpack.c.l.b16 %v901
          %v966 = vunpack.c.l.b16 %v902
          %v967 = vunpack.c.l.b16 %v903
          %v968 = vunpack.c.l.b16 %v904
          %v969 = vunpack.c.l.b16 %v905
          %v970 = vunpack.c.l.b16 %v906
          %v971 = vunpack.c.l.b16 %v907
          %v972 = vunpack.c.l.b16 %v908
          %v973 = vunpack.c.l.b16 %v909
          %v974 = vunpack.c.l.b16 %v910
          %v975 = vunpack.c.l.b16 %v911
          %v976 = vunpack.c.l.b16 %v912
          %v977 = vunpack.c.l.b16 %v913
          %v978 = vunpack.c.l.b16 %v914
          %v979 = vunpack.c.l.b16 %v915
          %v980 = vunpack.c.l.b16 %v916
          %v981 = vpack.c.b16 %v966, %v965
          %v982 = vpack.c.b16 %v968, %v967
          %v983 = vpack.c.b16 %v970, %v969
          %v984 = vpack.c.b16 %v972, %v971
          %v985 = vpack.c.b16 %v974, %v973
          %v986 = vpack.c.b16 %v976, %v975
          %v987 = vpack.c.b16 %v978, %v977
          %v988 = vpack.c.b16 %v980, %v979
          %v1013 = vunpack.c.l.b16 %v933
          %v1014 = vunpack.c.l.b16 %v934
          %v1015 = vunpack.c.l.b16 %v935
          %v1016 = vunpack.c.l.b16 %v936
          %v1017 = vunpack.c.l.b16 %v937
          %v1018 = vunpack.c.l.b16 %v938
          %v1019 = vunpack.c.l.b16 %v939
          %v1020 = vunpack.c.l.b16 %v940
          %v1021 = vunpack.c.l.b16 %v941
          %v1022 = vunpack.c.l.b16 %v942
          %v1023 = vunpack.c.l.b16 %v943
          %v1024 = vunpack.c.l.b16 %v944
          %v1025 = vunpack.c.l.b16 %v945
          %v1026 = vunpack.c.l.b16 %v946
          %v1027 = vunpack.c.l.b16 %v947
          %v1028 = vunpack.c.l.b16 %v948
          %v1029 = vpack.c.b16 %v1014, %v1013
          %v1030 = vpack.c.b16 %v1016, %v1015
          %v1031 = vpack.c.b16 %v1018, %v1017
          %v1032 = vpack.c.b16 %v1020, %v1019
          %v1033 = vpack.c.b16 %v1022, %v1021
          %v1034 = vpack.c.b16 %v1024, %v1023
          %v1035 = vpack.c.b16 %v1026, %v1025
          %v1036 = vpack.c.b16 %v1028, %v1027
          %1045 = vmatprep.subr.bf16.mxu0 0
          %1046 = vmatpush1.bf16.msra.mxu0 %v1029
          %1047 = vmatprep.subr.bf16.mxu0 0
          %1048 = vmatpush1.bf16.msra.mxu0 %v1030
          %1049 = vmatprep.subr.bf16.mxu0 0
          %1050 = vmatpush1.bf16.msra.mxu0 %v1031
          %1051 = vmatprep.subr.bf16.mxu0 0
          %1052 = vmatpush1.bf16.msra.mxu0 %v1032
          %1053 = vmatprep.subr.bf16.mxu0 0
          %1054 = vmatpush1.bf16.msra.mxu0 %v1033
          %1055 = vmatprep.subr.bf16.mxu0 0
          %1056 = vmatpush1.bf16.msra.mxu0 %v1034
          %1057 = vmatprep.subr.bf16.mxu0 0
          %1058 = vmatpush1.bf16.msra.mxu0 %v1035
          %1059 = vmatprep.subr.bf16.mxu0 0
          %1060 = vmatpush1.bf16.msra.mxu0 %v1036
          %1061 = vmatprep.subr.bf16.mxu0 0
          %1062 = vmatpush1.bf16.msra.mxu0 0
          %1063 = vmatprep.subr.bf16.mxu0 0
          %1064 = vmatpush1.bf16.msra.mxu0 0
          %1065 = vmatprep.subr.bf16.mxu0 0
          %1066 = vmatpush1.bf16.msra.mxu0 0
          %1067 = vmatprep.subr.bf16.mxu0 0
          %1068 = vmatpush1.bf16.msra.mxu0 0
          %1069 = vmatprep.subr.bf16.mxu0 0
          %1070 = vmatpush1.bf16.msra.mxu0 0
          %1071 = vmatprep.subr.bf16.mxu0 0
          %1072 = vmatpush1.bf16.msra.mxu0 0
          %1073 = vmatprep.subr.bf16.mxu0 0
          %1074 = vmatpush1.bf16.msra.mxu0 0
          %1075 = vmatprep.subr.bf16.mxu0 0
          %1076 = vmatpush1.bf16.msra.mxu0 0
          %1077 = vmatprep.mubr.bf16.mxu0 0
          %1078 = vmatmul.mubr.bf16.gmra.mrb[0].mxu0 %v981
          %v1079 = vpop.f32.mrb[0].mxu0
          %v1080 = vadd.f32 0.0, %v1079
          %v1081 = vpop.f32.mrb[0].mxu0
          %v1082 = vpop.f32.mrb[0].mxu0
          %v1083 = vadd.f32 0.0, %v1082
          %v1084 = vpop.f32.mrb[0].mxu0
          %1085 = vmatprep.mubr.bf16.mxu0 0
          %1086 = vmatmul.mubr.bf16.gmra.mrb[0].mxu0 %v982
          %v1087 = vpop.f32.mrb[0].mxu0
          %v1088 = vadd.f32 0.0, %v1087
          %v1089 = vpop.f32.mrb[0].mxu0
          %v1090 = vpop.f32.mrb[0].mxu0
          %v1091 = vadd.f32 0.0, %v1090
          %v1092 = vpop.f32.mrb[0].mxu0
          %1093 = vmatprep.mubr.bf16.mxu0 0
          %1094 = vmatmul.mubr.bf16.gmra.mrb[0].mxu0 %v983
          %v1095 = vpop.f32.mrb[0].mxu0
          %v1096 = vadd.f32 0.0, %v1095
          %v1097 = vpop.f32.mrb[0].mxu0
          %v1098 = vpop.f32.mrb[0].mxu0
          %v1099 = vadd.f32 0.0, %v1098
          %v1100 = vpop.f32.mrb[0].mxu0
          %1101 = vmatprep.mubr.bf16.mxu0 0
          %1102 = vmatmul.mubr.bf16.gmra.mrb[0].mxu0 %v984
          %v1103 = vpop.f32.mrb[0].mxu0
          %v1104 = vadd.f32 0.0, %v1103
          %v1105 = vpop.f32.mrb[0].mxu0
          %v1106 = vpop.f32.mrb[0].mxu0
          %v1107 = vadd.f32 0.0, %v1106
          %v1108 = vpop.f32.mrb[0].mxu0
          %1109 = vmatprep.mubr.bf16.mxu0 0
          %1110 = vmatmul.mubr.bf16.gmra.mrb[0].mxu0 %v985
          %v1111 = vpop.f32.mrb[0].mxu0
          %v1112 = vadd.f32 0.0, %v1111
          %v1113 = vpop.f32.mrb[0].mxu0
          %v1114 = vpop.f32.mrb[0].mxu0
          %v1115 = vadd.f32 0.0, %v1114
          %v1116 = vpop.f32.mrb[0].mxu0
          %1117 = vmatprep.mubr.bf16.mxu0 0
          %1118 = vmatmul.mubr.bf16.gmra.mrb[0].mxu0 %v986
          %v1119 = vpop.f32.mrb[0].mxu0
          %v1120 = vadd.f32 0.0, %v1119
          %v1121 = vpop.f32.mrb[0].mxu0
          %v1122 = vpop.f32.mrb[0].mxu0
          %v1123 = vadd.f32 0.0, %v1122
          %v1124 = vpop.f32.mrb[0].mxu0
          %1125 = vmatprep.mubr.bf16.mxu0 0
          %1126 = vmatmul.mubr.bf16.gmra.mrb[0].mxu0 %v987
          %v1127 = vpop.f32.mrb[0].mxu0
          %v1128 = vadd.f32 0.0, %v1127
          %v1129 = vpop.f32.mrb[0].mxu0
          %v1130 = vpop.f32.mrb[0].mxu0
          %v1131 = vadd.f32 0.0, %v1130
          %v1132 = vpop.f32.mrb[0].mxu0
          %1133 = vmatprep.mubr.bf16.mxu0 0
          %1134 = vmatmul.mubr.bf16.gmra.mrb[0].mxu0 %v988
          %v1135 = vpop.f32.mrb[0].mxu0
          %v1136 = vadd.f32 0.0, %v1135
          %v1137 = vpop.f32.mrb[0].mxu0
          %v1138 = vpop.f32.mrb[0].mxu0
          %v1139 = vadd.f32 0.0, %v1138
          %v1140 = vpop.f32.mrb[0].mxu0
          %1141 = vdwg.mxu0
          %v1158 = vunpack.c.l.b16 %v917
          %v1159 = vunpack.c.l.b16 %v918
          %v1160 = vunpack.c.l.b16 %v919
          %v1161 = vunpack.c.l.b16 %v920
          %v1162 = vunpack.c.l.b16 %v921
          %v1163 = vunpack.c.l.b16 %v922
          %v1164 = vunpack.c.l.b16 %v923
          %v1165 = vunpack.c.l.b16 %v924
          %v1166 = vunpack.c.l.b16 %v925
          %v1167 = vunpack.c.l.b16 %v926
          %v1168 = vunpack.c.l.b16 %v927
          %v1169 = vunpack.c.l.b16 %v928
          %v1170 = vunpack.c.l.b16 %v929
          %v1171 = vunpack.c.l.b16 %v930
          %v1172 = vunpack.c.l.b16 %v931
          %v1173 = vunpack.c.l.b16 %v932
          %v1174 = vpack.c.b16 %v1159, %v1158
          %v1175 = vpack.c.b16 %v1161, %v1160
          %v1176 = vpack.c.b16 %v1163, %v1162
          %v1177 = vpack.c.b16 %v1165, %v1164
          %v1178 = vpack.c.b16 %v1167, %v1166
          %v1179 = vpack.c.b16 %v1169, %v1168
          %v1180 = vpack.c.b16 %v1171, %v1170
          %v1181 = vpack.c.b16 %v1173, %v1172
          %1190 = vmatprep.subr.bf16.mxu0 0
          %1191 = vmatpush1.bf16.msra.mxu0 %v1174
          %1192 = vmatprep.subr.bf16.mxu0 0
          %1193 = vmatpush1.bf16.msra.mxu0 %v1175
          %1194 = vmatprep.subr.bf16.mxu0 0
          %1195 = vmatpush1.bf16.msra.mxu0 %v1176
          %1196 = vmatprep.subr.bf16.mxu0 0
          %1197 = vmatpush1.bf16.msra.mxu0 %v1177
          %1198 = vmatprep.subr.bf16.mxu0 0
          %1199 = vmatpush1.bf16.msra.mxu0 %v1178
          %1200 = vmatprep.subr.bf16.mxu0 0
          %1201 = vmatpush1.bf16.msra.mxu0 %v1179
          %1202 = vmatprep.subr.bf16.mxu0 0
          %1203 = vmatpush1.bf16.msra.mxu0 %v1180
          %1204 = vmatprep.subr.bf16.mxu0 0
          %1205 = vmatpush1.bf16.msra.mxu0 %v1181
          %1206 = vmatprep.subr.bf16.mxu0 0
          %1207 = vmatpush1.bf16.msra.mxu0 0
          %1208 = vmatprep.subr.bf16.mxu0 0
          %1209 = vmatpush1.bf16.msra.mxu0 0
          %1210 = vmatprep.subr.bf16.mxu0 0
          %1211 = vmatpush1.bf16.msra.mxu0 0
          %1212 = vmatprep.subr.bf16.mxu0 0
          %1213 = vmatpush1.bf16.msra.mxu0 0
          %1214 = vmatprep.subr.bf16.mxu0 0
          %1215 = vmatpush1.bf16.msra.mxu0 0
          %1216 = vmatprep.subr.bf16.mxu0 0
          %1217 = vmatpush1.bf16.msra.mxu0 0
          %1218 = vmatprep.subr.bf16.mxu0 0
          %1219 = vmatpush1.bf16.msra.mxu0 0
          %1220 = vmatprep.subr.bf16.mxu0 0
          %1221 = vmatpush1.bf16.msra.mxu0 0
          %1222 = vmatprep.mubr.bf16.mxu0 0
          %1223 = vmatmul.mubr.bf16.gmra.mrb[0].mxu0 %v889
          %v1224 = vpop.f32.mrb[0].mxu0
          %v1225 = vadd.f32 %v1080, %v1224
          %v1226 = vpop.f32.mrb[0].mxu0
          %v1227 = vpop.f32.mrb[0].mxu0
          %v1228 = vadd.f32 %v1083, %v1227
          %v1229 = vpop.f32.mrb[0].mxu0
          %1230 = vmatprep.mubr.bf16.mxu0 0
          %1231 = vmatmul.mubr.bf16.gmra.mrb[0].mxu0 %v890
          %v1232 = vpop.f32.mrb[0].mxu0
          %v1233 = vadd.f32 %v1088, %v1232
          %v1234 = vpop.f32.mrb[0].mxu0
          %v1235 = vpop.f32.mrb[0].mxu0
          %v1236 = vadd.f32 %v1091, %v1235
          %v1237 = vpop.f32.mrb[0].mxu0
          %1238 = vmatprep.mubr.bf16.mxu0 0
          %1239 = vmatmul.mubr.bf16.gmra.mrb[0].mxu0 %v891
          %v1240 = vpop.f32.mrb[0].mxu0
          %v1241 = vadd.f32 %v1096, %v1240
          %v1242 = vpop.f32.mrb[0].mxu0
          %v1243 = vpop.f32.mrb[0].mxu0
          %v1244 = vadd.f32 %v1099, %v1243
          %v1245 = vpop.f32.mrb[0].mxu0
          %1246 = vmatprep.mubr.bf16.mxu0 0
          %1247 = vmatmul.mubr.bf16.gmra.mrb[0].mxu0 %v892
          %v1248 = vpop.f32.mrb[0].mxu0
          %v1249 = vadd.f32 %v1104, %v1248
          %v1250 = vpop.f32.mrb[0].mxu0
          %v1251 = vpop.f32.mrb[0].mxu0
          %v1252 = vadd.f32 %v1107, %v1251
          %v1253 = vpop.f32.mrb[0].mxu0
          %1254 = vmatprep.mubr.bf16.mxu0 0
          %1255 = vmatmul.mubr.bf16.gmra.mrb[0].mxu0 %v893
          %v1256 = vpop.f32.mrb[0].mxu0
          %v1257 = vadd.f32 %v1112, %v1256
          %v1258 = vpop.f32.mrb[0].mxu0
          %v1259 = vpop.f32.mrb[0].mxu0
          %v1260 = vadd.f32 %v1115, %v1259
          %v1261 = vpop.f32.mrb[0].mxu0
          %1262 = vmatprep.mubr.bf16.mxu0 0
          %1263 = vmatmul.mubr.bf16.gmra.mrb[0].mxu0 %v894
          %v1264 = vpop.f32.mrb[0].mxu0
          %v1265 = vadd.f32 %v1120, %v1264
          %v1266 = vpop.f32.mrb[0].mxu0
          %v1267 = vpop.f32.mrb[0].mxu0
          %v1268 = vadd.f32 %v1123, %v1267
          %v1269 = vpop.f32.mrb[0].mxu0
          %1270 = vmatprep.mubr.bf16.mxu0 0
          %1271 = vmatmul.mubr.bf16.gmra.mrb[0].mxu0 %v895
          %v1272 = vpop.f32.mrb[0].mxu0
          %v1273 = vadd.f32 %v1128, %v1272
          %v1274 = vpop.f32.mrb[0].mxu0
          %v1275 = vpop.f32.mrb[0].mxu0
          %v1276 = vadd.f32 %v1131, %v1275
          %v1277 = vpop.f32.mrb[0].mxu0
          %1278 = vmatprep.mubr.bf16.mxu0 0
          %1279 = vmatmul.mubr.bf16.gmra.mrb[0].mxu0 %v896
          %v1280 = vpop.f32.mrb[0].mxu0
          %v1281 = vadd.f32 %v1136, %v1280
          %v1282 = vpop.f32.mrb[0].mxu0
          %v1283 = vpop.f32.mrb[0].mxu0
          %v1284 = vadd.f32 %v1139, %v1283
          %v1285 = vpop.f32.mrb[0].mxu0
          %1286 = vdwg.mxu0
          %v1287 = vld [vmem:[%s5] sm:$0x1]
          %v1289 = vlaneseq
          %v1290 = vshrl.u32 %v1289, 7
          %v1291 = vsub.s32 0, %v1290
          %v1292 = vrot.slane %v1287, %v1291
          %v1294 = vadd.f32 %v1225, %v1292
          %v1295 = vadd.f32 %v1228, %v1292
          %v1296 = vadd.f32 %v1233, %v1292
          %v1297 = vadd.f32 %v1236, %v1292
          %v1298 = vadd.f32 %v1241, %v1292
          %v1299 = vadd.f32 %v1244, %v1292
          %v1300 = vadd.f32 %v1249, %v1292
          %v1301 = vadd.f32 %v1252, %v1292
          %v1302 = vadd.f32 %v1257, %v1292
          %v1303 = vadd.f32 %v1260, %v1292
          %v1304 = vadd.f32 %v1265, %v1292
          %v1305 = vadd.f32 %v1268, %v1292
          %v1306 = vadd.f32 %v1273, %v1292
          %v1307 = vadd.f32 %v1276, %v1292
          %v1308 = vadd.f32 %v1281, %v1292
          %v1309 = vadd.f32 %v1284, %v1292
          %v1310 = vmax.f32 %v1294, 0.0
          %v1311 = vmax.f32 %v1295, 0.0
          %v1312 = vmax.f32 %v1296, 0.0
          %v1313 = vmax.f32 %v1297, 0.0
          %v1314 = vmax.f32 %v1298, 0.0
          %v1315 = vmax.f32 %v1299, 0.0
          %v1316 = vmax.f32 %v1300, 0.0
          %v1317 = vmax.f32 %v1301, 0.0
          %v1318 = vmax.f32 %v1302, 0.0
          %v1319 = vmax.f32 %v1303, 0.0
          %v1320 = vmax.f32 %v1304, 0.0
          %v1321 = vmax.f32 %v1305, 0.0
          %v1322 = vmax.f32 %v1306, 0.0
          %v1323 = vmax.f32 %v1307, 0.0
          %v1324 = vmax.f32 %v1308, 0.0
          %v1325 = vmax.f32 %v1309, 0.0
          %v1326 = vpack.c.bf16 %v1311, %v1310
          %v1327 = vpack.c.bf16 %v1313, %v1312
          %v1328 = vpack.c.bf16 %v1315, %v1314
          %v1329 = vpack.c.bf16 %v1317, %v1316
          %v1330 = vpack.c.bf16 %v1319, %v1318
          %v1331 = vpack.c.bf16 %v1321, %v1320
          %v1332 = vpack.c.bf16 %v1323, %v1322
          %v1333 = vpack.c.bf16 %v1325, %v1324
          %v1334 = vld [vmem:[#allocation10] sm:$0xf]
          %v1335 = vld [vmem:[#allocation10 + $0x4] sm:$0xf]
          %v1336 = vld [vmem:[#allocation10 + $0x8] sm:$0xf]
          %v1337 = vld [vmem:[#allocation10 + $0xc] sm:$0xf]
          %v1338 = vld [vmem:[#allocation10 + $0x10] sm:$0xf]
          %v1339 = vld [vmem:[#allocation10 + $0x14] sm:$0xf]
          %v1340 = vld [vmem:[#allocation10 + $0x18] sm:$0xf]
          %v1341 = vld [vmem:[#allocation10 + $0x1c] sm:$0xf]
          %v1342 = vld [vmem:[#allocation10 + $0x20] sm:$0xf]
          %v1343 = vld [vmem:[#allocation10 + $0x24] sm:$0xf]
          %v1344 = vld [vmem:[#allocation10 + $0x28] sm:$0xf]
          %v1345 = vld [vmem:[#allocation10 + $0x2c] sm:$0xf]
          %v1346 = vld [vmem:[#allocation10 + $0x30] sm:$0xf]
          %v1347 = vld [vmem:[#allocation10 + $0x34] sm:$0xf]
          %v1348 = vld [vmem:[#allocation10 + $0x38] sm:$0xf]
          %v1349 = vld [vmem:[#allocation10 + $0x3c] sm:$0xf]
          %v1350 = vld [vmem:[#allocation12] sm:$0xf]
          %v1351 = vld [vmem:[#allocation12 + $0x4] sm:$0xf]
          %v1352 = vld [vmem:[#allocation12 + $0x8] sm:$0xf]
          %v1353 = vld [vmem:[#allocation12 + $0xc] sm:$0xf]
          %v1354 = vld [vmem:[#allocation12 + $0x10] sm:$0xf]
          %v1355 = vld [vmem:[#allocation12 + $0x14] sm:$0xf]
          %v1356 = vld [vmem:[#allocation12 + $0x18] sm:$0xf]
          %v1357 = vld [vmem:[#allocation12 + $0x1c] sm:$0xf]
          %v1358 = vld [vmem:[#allocation12 + $0x20] sm:$0xf]
          %v1359 = vld [vmem:[#allocation12 + $0x24] sm:$0xf]
          %v1360 = vld [vmem:[#allocation12 + $0x28] sm:$0xf]
          %v1361 = vld [vmem:[#allocation12 + $0x2c] sm:$0xf]
          %v1362 = vld [vmem:[#allocation12 + $0x30] sm:$0xf]
          %v1363 = vld [vmem:[#allocation12 + $0x34] sm:$0xf]
          %v1364 = vld [vmem:[#allocation12 + $0x38] sm:$0xf]
          %v1365 = vld [vmem:[#allocation12 + $0x3c] sm:$0xf]
          %v1366 = vld [vmem:[#allocation7 + $0x4] sm:$0xf]
          %v1367 = vld [vmem:[#allocation7 + $0x14] sm:$0xf]
          %v1368 = vld [vmem:[#allocation7 + $0x24] sm:$0xf]
          %v1369 = vld [vmem:[#allocation7 + $0x34] sm:$0xf]
          %v1370 = vld [vmem:[#allocation7 + $0x44] sm:$0xf]
          %v1371 = vld [vmem:[#allocation7 + $0x54] sm:$0xf]
          %v1372 = vld [vmem:[#allocation7 + $0x64] sm:$0xf]
          %v1373 = vld [vmem:[#allocation7 + $0x74] sm:$0xf]
          %v1374 = vld [vmem:[#allocation7 + $0x84] sm:$0xf]
          %v1375 = vld [vmem:[#allocation7 + $0x94] sm:$0xf]
          %v1376 = vld [vmem:[#allocation7 + $0xa4] sm:$0xf]
          %v1377 = vld [vmem:[#allocation7 + $0xb4] sm:$0xf]
          %v1378 = vld [vmem:[#allocation7 + $0xc4] sm:$0xf]
          %v1379 = vld [vmem:[#allocation7 + $0xd4] sm:$0xf]
          %v1380 = vld [vmem:[#allocation7 + $0xe4] sm:$0xf]
          %v1381 = vld [vmem:[#allocation7 + $0xf4] sm:$0xf]
          %v1382 = vld [vmem:[#allocation9 + $0x4] sm:$0xf]
          %v1383 = vld [vmem:[#allocation9 + $0x14] sm:$0xf]
          %v1384 = vld [vmem:[#allocation9 + $0x24] sm:$0xf]
          %v1385 = vld [vmem:[#allocation9 + $0x34] sm:$0xf]
          %v1386 = vld [vmem:[#allocation9 + $0x44] sm:$0xf]
          %v1387 = vld [vmem:[#allocation9 + $0x54] sm:$0xf]
          %v1388 = vld [vmem:[#allocation9 + $0x64] sm:$0xf]
          %v1389 = vld [vmem:[#allocation9 + $0x74] sm:$0xf]
          %v1390 = vld [vmem:[#allocation9 + $0x84] sm:$0xf]
          %v1391 = vld [vmem:[#allocation9 + $0x94] sm:$0xf]
          %v1392 = vld [vmem:[#allocation9 + $0xa4] sm:$0xf]
          %v1393 = vld [vmem:[#allocation9 + $0xb4] sm:$0xf]
          %v1394 = vld [vmem:[#allocation9 + $0xc4] sm:$0xf]
          %v1395 = vld [vmem:[#allocation9 + $0xd4] sm:$0xf]
          %v1396 = vld [vmem:[#allocation9 + $0xe4] sm:$0xf]
          %v1397 = vld [vmem:[#allocation9 + $0xf4] sm:$0xf]
          %v1414 = vunpack.c.l.b16 %v1382
          %v1415 = vunpack.c.l.b16 %v1383
          %v1416 = vunpack.c.l.b16 %v1384
          %v1417 = vunpack.c.l.b16 %v1385
          %v1418 = vunpack.c.l.b16 %v1386
          %v1419 = vunpack.c.l.b16 %v1387
          %v1420 = vunpack.c.l.b16 %v1388
          %v1421 = vunpack.c.l.b16 %v1389
          %v1422 = vunpack.c.l.b16 %v1390
          %v1423 = vunpack.c.l.b16 %v1391
          %v1424 = vunpack.c.l.b16 %v1392
          %v1425 = vunpack.c.l.b16 %v1393
          %v1426 = vunpack.c.l.b16 %v1394
          %v1427 = vunpack.c.l.b16 %v1395
          %v1428 = vunpack.c.l.b16 %v1396
          %v1429 = vunpack.c.l.b16 %v1397
          %v1430 = vpack.c.b16 %v1415, %v1414
          %v1431 = vpack.c.b16 %v1417, %v1416
          %v1432 = vpack.c.b16 %v1419, %v1418
          %v1433 = vpack.c.b16 %v1421, %v1420
          %v1434 = vpack.c.b16 %v1423, %v1422
          %v1435 = vpack.c.b16 %v1425, %v1424
          %v1436 = vpack.c.b16 %v1427, %v1426
          %v1437 = vpack.c.b16 %v1429, %v1428
          %1446 = vmatprep.subr.bf16.mxu0 0
          %1447 = vmatpush1.bf16.msra.mxu0 %v1430
          %1448 = vmatprep.subr.bf16.mxu0 0
          %1449 = vmatpush1.bf16.msra.mxu0 %v1431
          %1450 = vmatprep.subr.bf16.mxu0 0
          %1451 = vmatpush1.bf16.msra.mxu0 %v1432
          %1452 = vmatprep.subr.bf16.mxu0 0
          %1453 = vmatpush1.bf16.msra.mxu0 %v1433
          %1454 = vmatprep.subr.bf16.mxu0 0
          %1455 = vmatpush1.bf16.msra.mxu0 %v1434
          %1456 = vmatprep.subr.bf16.mxu0 0
          %1457 = vmatpush1.bf16.msra.mxu0 %v1435
          %1458 = vmatprep.subr.bf16.mxu0 0
          %1459 = vmatpush1.bf16.msra.mxu0 %v1436
          %1460 = vmatprep.subr.bf16.mxu0 0
          %1461 = vmatpush1.bf16.msra.mxu0 %v1437
          %1462 = vmatprep.subr.bf16.mxu0 0
          %1463 = vmatpush1.bf16.msra.mxu0 0
          %1464 = vmatprep.subr.bf16.mxu0 0
          %1465 = vmatpush1.bf16.msra.mxu0 0
          %1466 = vmatprep.subr.bf16.mxu0 0
          %1467 = vmatpush1.bf16.msra.mxu0 0
          %1468 = vmatprep.subr.bf16.mxu0 0
          %1469 = vmatpush1.bf16.msra.mxu0 0
          %1470 = vmatprep.subr.bf16.mxu0 0
          %1471 = vmatpush1.bf16.msra.mxu0 0
          %1472 = vmatprep.subr.bf16.mxu0 0
          %1473 = vmatpush1.bf16.msra.mxu0 0
          %1474 = vmatprep.subr.bf16.mxu0 0
          %1475 = vmatpush1.bf16.msra.mxu0 0
          %1476 = vmatprep.subr.bf16.mxu0 0
          %1477 = vmatpush1.bf16.msra.mxu0 0
          %1478 = vmatprep.mubr.bf16.mxu0 0
          %1479 = vmatmul.mubr.bf16.gmra.mrb[0].mxu0 %v981
          %v1480 = vpop.f32.mrb[0].mxu0
          %v1481 = vadd.f32 0.0, %v1480
          %v1482 = vpop.f32.mrb[0].mxu0
          %v1483 = vpop.f32.mrb[0].mxu0
          %v1484 = vadd.f32 0.0, %v1483
          %v1485 = vpop.f32.mrb[0].mxu0
          %1486 = vmatprep.mubr.bf16.mxu0 0
          %1487 = vmatmul.mubr.bf16.gmra.mrb[0].mxu0 %v982
          %v1488 = vpop.f32.mrb[0].mxu0
          %v1489 = vadd.f32 0.0, %v1488
          %v1490 = vpop.f32.mrb[0].mxu0
          %v1491 = vpop.f32.mrb[0].mxu0
          %v1492 = vadd.f32 0.0, %v1491
          %v1493 = vpop.f32.mrb[0].mxu0
          %1494 = vmatprep.mubr.bf16.mxu0 0
          %1495 = vmatmul.mubr.bf16.gmra.mrb[0].mxu0 %v983
          %v1496 = vpop.f32.mrb[0].mxu0
          %v1497 = vadd.f32 0.0, %v1496
          %v1498 = vpop.f32.mrb[0].mxu0
          %v1499 = vpop.f32.mrb[0].mxu0
          %v1500 = vadd.f32 0.0, %v1499
          %v1501 = vpop.f32.mrb[0].mxu0
          %1502 = vmatprep.mubr.bf16.mxu0 0
          %1503 = vmatmul.mubr.bf16.gmra.mrb[0].mxu0 %v984
          %v1504 = vpop.f32.mrb[0].mxu0
          %v1505 = vadd.f32 0.0, %v1504
          %v1506 = vpop.f32.mrb[0].mxu0
          %v1507 = vpop.f32.mrb[0].mxu0
          %v1508 = vadd.f32 0.0, %v1507
          %v1509 = vpop.f32.mrb[0].mxu0
          %1510 = vmatprep.mubr.bf16.mxu0 0
          %1511 = vmatmul.mubr.bf16.gmra.mrb[0].mxu0 %v985
          %v1512 = vpop.f32.mrb[0].mxu0
          %v1513 = vadd.f32 0.0, %v1512
          %v1514 = vpop.f32.mrb[0].mxu0
          %v1515 = vpop.f32.mrb[0].mxu0
          %v1516 = vadd.f32 0.0, %v1515
          %v1517 = vpop.f32.mrb[0].mxu0
          %1518 = vmatprep.mubr.bf16.mxu0 0
          %1519 = vmatmul.mubr.bf16.gmra.mrb[0].mxu0 %v986
          %v1520 = vpop.f32.mrb[0].mxu0
          %v1521 = vadd.f32 0.0, %v1520
          %v1522 = vpop.f32.mrb[0].mxu0
          %v1523 = vpop.f32.mrb[0].mxu0
          %v1524 = vadd.f32 0.0, %v1523
          %v1525 = vpop.f32.mrb[0].mxu0
          %1526 = vmatprep.mubr.bf16.mxu0 0
          %1527 = vmatmul.mubr.bf16.gmra.mrb[0].mxu0 %v987
          %v1528 = vpop.f32.mrb[0].mxu0
          %v1529 = vadd.f32 0.0, %v1528
          %v1530 = vpop.f32.mrb[0].mxu0
          %v1531 = vpop.f32.mrb[0].mxu0
          %v1532 = vadd.f32 0.0, %v1531
          %v1533 = vpop.f32.mrb[0].mxu0
          %1534 = vmatprep.mubr.bf16.mxu0 0
          %1535 = vmatmul.mubr.bf16.gmra.mrb[0].mxu0 %v988
          %v1536 = vpop.f32.mrb[0].mxu0
          %v1537 = vadd.f32 0.0, %v1536
          %v1538 = vpop.f32.mrb[0].mxu0
          %v1539 = vpop.f32.mrb[0].mxu0
          %v1540 = vadd.f32 0.0, %v1539
          %v1541 = vpop.f32.mrb[0].mxu0
          %1542 = vdwg.mxu0
          %v1559 = vunpack.c.l.b16 %v1366
          %v1560 = vunpack.c.l.b16 %v1367
          %v1561 = vunpack.c.l.b16 %v1368
          %v1562 = vunpack.c.l.b16 %v1369
          %v1563 = vunpack.c.l.b16 %v1370
          %v1564 = vunpack.c.l.b16 %v1371
          %v1565 = vunpack.c.l.b16 %v1372
          %v1566 = vunpack.c.l.b16 %v1373
          %v1567 = vunpack.c.l.b16 %v1374
          %v1568 = vunpack.c.l.b16 %v1375
          %v1569 = vunpack.c.l.b16 %v1376
          %v1570 = vunpack.c.l.b16 %v1377
          %v1571 = vunpack.c.l.b16 %v1378
          %v1572 = vunpack.c.l.b16 %v1379
          %v1573 = vunpack.c.l.b16 %v1380
          %v1574 = vunpack.c.l.b16 %v1381
          %v1575 = vpack.c.b16 %v1560, %v1559
          %v1576 = vpack.c.b16 %v1562, %v1561
          %v1577 = vpack.c.b16 %v1564, %v1563
          %v1578 = vpack.c.b16 %v1566, %v1565
          %v1579 = vpack.c.b16 %v1568, %v1567
          %v1580 = vpack.c.b16 %v1570, %v1569
          %v1581 = vpack.c.b16 %v1572, %v1571
          %v1582 = vpack.c.b16 %v1574, %v1573
          %1591 = vmatprep.subr.bf16.mxu0 0
          %1592 = vmatpush1.bf16.msra.mxu0 %v1575
          %1593 = vmatprep.subr.bf16.mxu0 0
          %1594 = vmatpush1.bf16.msra.mxu0 %v1576
          %1595 = vmatprep.subr.bf16.mxu0 0
          %1596 = vmatpush1.bf16.msra.mxu0 %v1577
          %1597 = vmatprep.subr.bf16.mxu0 0
          %1598 = vmatpush1.bf16.msra.mxu0 %v1578
          %1599 = vmatprep.subr.bf16.mxu0 0
          %1600 = vmatpush1.bf16.msra.mxu0 %v1579
          %1601 = vmatprep.subr.bf16.mxu0 0
          %1602 = vmatpush1.bf16.msra.mxu0 %v1580
          %1603 = vmatprep.subr.bf16.mxu0 0
          %1604 = vmatpush1.bf16.msra.mxu0 %v1581
          %1605 = vmatprep.subr.bf16.mxu0 0
          %1606 = vmatpush1.bf16.msra.mxu0 %v1582
          %1607 = vmatprep.subr.bf16.mxu0 0
          %1608 = vmatpush1.bf16.msra.mxu0 0
          %1609 = vmatprep.subr.bf16.mxu0 0
          %1610 = vmatpush1.bf16.msra.mxu0 0
          %1611 = vmatprep.subr.bf16.mxu0 0
          %1612 = vmatpush1.bf16.msra.mxu0 0
          %1613 = vmatprep.subr.bf16.mxu0 0
          %1614 = vmatpush1.bf16.msra.mxu0 0
          %1615 = vmatprep.subr.bf16.mxu0 0
          %1616 = vmatpush1.bf16.msra.mxu0 0
          %1617 = vmatprep.subr.bf16.mxu0 0
          %1618 = vmatpush1.bf16.msra.mxu0 0
          %1619 = vmatprep.subr.bf16.mxu0 0
          %1620 = vmatpush1.bf16.msra.mxu0 0
          %1621 = vmatprep.subr.bf16.mxu0 0
          %1622 = vmatpush1.bf16.msra.mxu0 0
          %1623 = vmatprep.mubr.bf16.mxu0 0
          %1624 = vmatmul.mubr.bf16.gmra.mrb[0].mxu0 %v889
          %v1625 = vpop.f32.mrb[0].mxu0
          %v1626 = vadd.f32 %v1481, %v1625
          %v1627 = vpop.f32.mrb[0].mxu0
          %v1628 = vpop.f32.mrb[0].mxu0
          %v1629 = vadd.f32 %v1484, %v1628
          %v1630 = vpop.f32.mrb[0].mxu0
          %1631 = vmatprep.mubr.bf16.mxu0 0
          %1632 = vmatmul.mubr.bf16.gmra.mrb[0].mxu0 %v890
          %v1633 = vpop.f32.mrb[0].mxu0
          %v1634 = vadd.f32 %v1489, %v1633
          %v1635 = vpop.f32.mrb[0].mxu0
          %v1636 = vpop.f32.mrb[0].mxu0
          %v1637 = vadd.f32 %v1492, %v1636
          %v1638 = vpop.f32.mrb[0].mxu0
          %1639 = vmatprep.mubr.bf16.mxu0 0
          %1640 = vmatmul.mubr.bf16.gmra.mrb[0].mxu0 %v891
          %v1641 = vpop.f32.mrb[0].mxu0
          %v1642 = vadd.f32 %v1497, %v1641
          %v1643 = vpop.f32.mrb[0].mxu0
          %v1644 = vpop.f32.mrb[0].mxu0
          %v1645 = vadd.f32 %v1500, %v1644
          %v1646 = vpop.f32.mrb[0].mxu0
          %1647 = vmatprep.mubr.bf16.mxu0 0
          %1648 = vmatmul.mubr.bf16.gmra.mrb[0].mxu0 %v892
          %v1649 = vpop.f32.mrb[0].mxu0
          %v1650 = vadd.f32 %v1505, %v1649
          %v1651 = vpop.f32.mrb[0].mxu0
          %v1652 = vpop.f32.mrb[0].mxu0
          %v1653 = vadd.f32 %v1508, %v1652
          %v1654 = vpop.f32.mrb[0].mxu0
          %1655 = vmatprep.mubr.bf16.mxu0 0
          %1656 = vmatmul.mubr.bf16.gmra.mrb[0].mxu0 %v893
          %v1657 = vpop.f32.mrb[0].mxu0
          %v1658 = vadd.f32 %v1513, %v1657
          %v1659 = vpop.f32.mrb[0].mxu0
          %v1660 = vpop.f32.mrb[0].mxu0
          %v1661 = vadd.f32 %v1516, %v1660
          %v1662 = vpop.f32.mrb[0].mxu0
          %1663 = vmatprep.mubr.bf16.mxu0 0
          %1664 = vmatmul.mubr.bf16.gmra.mrb[0].mxu0 %v894
          %v1665 = vpop.f32.mrb[0].mxu0
          %v1666 = vadd.f32 %v1521, %v1665
          %v1667 = vpop.f32.mrb[0].mxu0
          %v1668 = vpop.f32.mrb[0].mxu0
          %v1669 = vadd.f32 %v1524, %v1668
          %v1670 = vpop.f32.mrb[0].mxu0
          %1671 = vmatprep.mubr.bf16.mxu0 0
          %1672 = vmatmul.mubr.bf16.gmra.mrb[0].mxu0 %v895
          %v1673 = vpop.f32.mrb[0].mxu0
          %v1674 = vadd.f32 %v1529, %v1673
          %v1675 = vpop.f32.mrb[0].mxu0
          %v1676 = vpop.f32.mrb[0].mxu0
          %v1677 = vadd.f32 %v1532, %v1676
          %v1678 = vpop.f32.mrb[0].mxu0
          %1679 = vmatprep.mubr.bf16.mxu0 0
          %1680 = vmatmul.mubr.bf16.gmra.mrb[0].mxu0 %v896
          %v1681 = vpop.f32.mrb[0].mxu0
          %v1682 = vadd.f32 %v1537, %v1681
          %v1683 = vpop.f32.mrb[0].mxu0
          %v1684 = vpop.f32.mrb[0].mxu0
          %v1685 = vadd.f32 %v1540, %v1684
          %v1686 = vpop.f32.mrb[0].mxu0
          %1687 = vdwg.mxu0
          %v1688 = vld [vmem:[%s5 + $0x1] sm:$0x1]
          %v1690 = vlaneseq
          %v1691 = vshrl.u32 %v1690, 7
          %v1692 = vsub.s32 0, %v1691
          %v1693 = vrot.slane %v1688, %v1692
          %v1695 = vadd.f32 %v1626, %v1693
          %v1696 = vadd.f32 %v1629, %v1693
          %v1697 = vadd.f32 %v1634, %v1693
          %v1698 = vadd.f32 %v1637, %v1693
          %v1699 = vadd.f32 %v1642, %v1693
          %v1700 = vadd.f32 %v1645, %v1693
          %v1701 = vadd.f32 %v1650, %v1693
          %v1702 = vadd.f32 %v1653, %v1693
          %v1703 = vadd.f32 %v1658, %v1693
          %v1704 = vadd.f32 %v1661, %v1693
          %v1705 = vadd.f32 %v1666, %v1693
          %v1706 = vadd.f32 %v1669, %v1693
          %v1707 = vadd.f32 %v1674, %v1693
          %v1708 = vadd.f32 %v1677, %v1693
          %v1709 = vadd.f32 %v1682, %v1693
          %v1710 = vadd.f32 %v1685, %v1693
          %v1711 = vmax.f32 %v1695, 0.0
          %v1712 = vmax.f32 %v1696, 0.0
          %v1713 = vmax.f32 %v1697, 0.0
          %v1714 = vmax.f32 %v1698, 0.0
          %v1715 = vmax.f32 %v1699, 0.0
          %v1716 = vmax.f32 %v1700, 0.0
          %v1717 = vmax.f32 %v1701, 0.0
          %v1718 = vmax.f32 %v1702, 0.0
          %v1719 = vmax.f32 %v1703, 0.0
          %v1720 = vmax.f32 %v1704, 0.0
          %v1721 = vmax.f32 %v1705, 0.0
          %v1722 = vmax.f32 %v1706, 0.0
          %v1723 = vmax.f32 %v1707, 0.0
          %v1724 = vmax.f32 %v1708, 0.0
          %v1725 = vmax.f32 %v1709, 0.0
          %v1726 = vmax.f32 %v1710, 0.0
          %v1727 = vpack.c.bf16 %v1712, %v1711
          %v1728 = vpack.c.bf16 %v1714, %v1713
          %v1729 = vpack.c.bf16 %v1716, %v1715
          %v1730 = vpack.c.bf16 %v1718, %v1717
          %v1731 = vpack.c.bf16 %v1720, %v1719
          %v1732 = vpack.c.bf16 %v1722, %v1721
          %v1733 = vpack.c.bf16 %v1724, %v1723
          %v1734 = vpack.c.bf16 %v1726, %v1725
          %v1735 = vld [vmem:[#allocation10 + $0x40] sm:$0xf]
          %v1736 = vld [vmem:[#allocation10 + $0x44] sm:$0xf]
          %v1737 = vld [vmem:[#allocation10 + $0x48] sm:$0xf]
          %v1738 = vld [vmem:[#allocation10 + $0x4c] sm:$0xf]
          %v1739 = vld [vmem:[#allocation10 + $0x50] sm:$0xf]
          %v1740 = vld [vmem:[#allocation10 + $0x54] sm:$0xf]
          %v1741 = vld [vmem:[#allocation10 + $0x58] sm:$0xf]
          %v1742 = vld [vmem:[#allocation10 + $0x5c] sm:$0xf]
          %v1743 = vld [vmem:[#allocation10 + $0x60] sm:$0xf]
          %v1744 = vld [vmem:[#allocation10 + $0x64] sm:$0xf]
          %v1745 = vld [vmem:[#allocation10 + $0x68] sm:$0xf]
          %v1746 = vld [vmem:[#allocation10 + $0x6c] sm:$0xf]
          %v1747 = vld [vmem:[#allocation10 + $0x70] sm:$0xf]
          %v1748 = vld [vmem:[#allocation10 + $0x74] sm:$0xf]
          %v1749 = vld [vmem:[#allocation10 + $0x78] sm:$0xf]
          %v1750 = vld [vmem:[#allocation10 + $0x7c] sm:$0xf]
          %v1767 = vunpack.c.l.b16 %v1735
          %v1768 = vunpack.c.l.b16 %v1736
          %v1769 = vunpack.c.l.b16 %v1737
          %v1770 = vunpack.c.l.b16 %v1738
          %v1771 = vunpack.c.l.b16 %v1739
          %v1772 = vunpack.c.l.b16 %v1740
          %v1773 = vunpack.c.l.b16 %v1741
          %v1774 = vunpack.c.l.b16 %v1742
          %v1775 = vunpack.c.l.b16 %v1743
          %v1776 = vunpack.c.l.b16 %v1744
          %v1777 = vunpack.c.l.b16 %v1745
          %v1778 = vunpack.c.l.b16 %v1746
          %v1779 = vunpack.c.l.b16 %v1747
          %v1780 = vunpack.c.l.b16 %v1748
          %v1781 = vunpack.c.l.b16 %v1749
          %v1782 = vunpack.c.l.b16 %v1750
          %v1783 = vpack.c.b16 %v1768, %v1767
          %v1784 = vpack.c.b16 %v1770, %v1769
          %v1785 = vpack.c.b16 %v1772, %v1771
          %v1786 = vpack.c.b16 %v1774, %v1773
          %v1787 = vpack.c.b16 %v1776, %v1775
          %v1788 = vpack.c.b16 %v1778, %v1777
          %v1789 = vpack.c.b16 %v1780, %v1779
          %v1790 = vpack.c.b16 %v1782, %v1781
          %1799 = vmatprep.subr.bf16.mxu0 0
          %1800 = vmatpush1.bf16.msra.mxu0 %v1783
          %1801 = vmatprep.subr.bf16.mxu0 0
          %1802 = vmatpush1.bf16.msra.mxu0 %v1784
          %1803 = vmatprep.subr.bf16.mxu0 0
          %1804 = vmatpush1.bf16.msra.mxu0 %v1785
          %1805 = vmatprep.subr.bf16.mxu0 0
          %1806 = vmatpush1.bf16.msra.mxu0 %v1786
          %1807 = vmatprep.subr.bf16.mxu0 0
          %1808 = vmatpush1.bf16.msra.mxu0 %v1787
          %1809 = vmatprep.subr.bf16.mxu0 0
          %1810 = vmatpush1.bf16.msra.mxu0 %v1788
          %1811 = vmatprep.subr.bf16.mxu0 0
          %1812 = vmatpush1.bf16.msra.mxu0 %v1789
          %1813 = vmatprep.subr.bf16.mxu0 0
          %1814 = vmatpush1.bf16.msra.mxu0 %v1790
          %1815 = vmatprep.subr.bf16.mxu0 0
          %1816 = vmatpush1.bf16.msra.mxu0 0
          %1817 = vmatprep.subr.bf16.mxu0 0
          %1818 = vmatpush1.bf16.msra.mxu0 0
          %1819 = vmatprep.subr.bf16.mxu0 0
          %1820 = vmatpush1.bf16.msra.mxu0 0
          %1821 = vmatprep.subr.bf16.mxu0 0
          %1822 = vmatpush1.bf16.msra.mxu0 0
          %1823 = vmatprep.subr.bf16.mxu0 0
          %1824 = vmatpush1.bf16.msra.mxu0 0
          %1825 = vmatprep.subr.bf16.mxu0 0
          %1826 = vmatpush1.bf16.msra.mxu0 0
          %1827 = vmatprep.subr.bf16.mxu0 0
          %1828 = vmatpush1.bf16.msra.mxu0 0
          %1829 = vmatprep.subr.bf16.mxu0 0
          %1830 = vmatpush1.bf16.msra.mxu0 0
          %1831 = vmatprep.mubr.bf16.mxu0 0
          %1832 = vmatmul.mubr.bf16.gmra.mrb[0].mxu0 %v1727
          %v1833 = vpop.f32.mrb[0].mxu0
          %v1834 = vadd.f32 0.0, %v1833
          %v1835 = vpop.f32.mrb[0].mxu0
          %v1836 = vpop.f32.mrb[0].mxu0
          %v1837 = vadd.f32 0.0, %v1836
          %v1838 = vpop.f32.mrb[0].mxu0
          %1839 = vmatprep.mubr.bf16.mxu0 0
          %1840 = vmatmul.mubr.bf16.gmra.mrb[0].mxu0 %v1728
          %v1841 = vpop.f32.mrb[0].mxu0
          %v1842 = vadd.f32 0.0, %v1841
          %v1843 = vpop.f32.mrb[0].mxu0
          %v1844 = vpop.f32.mrb[0].mxu0
          %v1845 = vadd.f32 0.0, %v1844
          %v1846 = vpop.f32.mrb[0].mxu0
          %1847 = vmatprep.mubr.bf16.mxu0 0
          %1848 = vmatmul.mubr.bf16.gmra.mrb[0].mxu0 %v1729
          %v1849 = vpop.f32.mrb[0].mxu0
          %v1850 = vadd.f32 0.0, %v1849
          %v1851 = vpop.f32.mrb[0].mxu0
          %v1852 = vpop.f32.mrb[0].mxu0
          %v1853 = vadd.f32 0.0, %v1852
          %v1854 = vpop.f32.mrb[0].mxu0
          %1855 = vmatprep.mubr.bf16.mxu0 0
          %1856 = vmatmul.mubr.bf16.gmra.mrb[0].mxu0 %v1730
          %v1857 = vpop.f32.mrb[0].mxu0
          %v1858 = vadd.f32 0.0, %v1857
          %v1859 = vpop.f32.mrb[0].mxu0
          %v1860 = vpop.f32.mrb[0].mxu0
          %v1861 = vadd.f32 0.0, %v1860
          %v1862 = vpop.f32.mrb[0].mxu0
          %1863 = vmatprep.mubr.bf16.mxu0 0
          %1864 = vmatmul.mubr.bf16.gmra.mrb[0].mxu0 %v1731
          %v1865 = vpop.f32.mrb[0].mxu0
          %v1866 = vadd.f32 0.0, %v1865
          %v1867 = vpop.f32.mrb[0].mxu0
          %v1868 = vpop.f32.mrb[0].mxu0
          %v1869 = vadd.f32 0.0, %v1868
          %v1870 = vpop.f32.mrb[0].mxu0
          %1871 = vmatprep.mubr.bf16.mxu0 0
          %1872 = vmatmul.mubr.bf16.gmra.mrb[0].mxu0 %v1732
          %v1873 = vpop.f32.mrb[0].mxu0
          %v1874 = vadd.f32 0.0, %v1873
          %v1875 = vpop.f32.mrb[0].mxu0
          %v1876 = vpop.f32.mrb[0].mxu0
          %v1877 = vadd.f32 0.0, %v1876
          %v1878 = vpop.f32.mrb[0].mxu0
          %1879 = vmatprep.mubr.bf16.mxu0 0
          %1880 = vmatmul.mubr.bf16.gmra.mrb[0].mxu0 %v1733
          %v1881 = vpop.f32.mrb[0].mxu0
          %v1882 = vadd.f32 0.0, %v1881
          %v1883 = vpop.f32.mrb[0].mxu0
          %v1884 = vpop.f32.mrb[0].mxu0
          %v1885 = vadd.f32 0.0, %v1884
          %v1886 = vpop.f32.mrb[0].mxu0
          %1887 = vmatprep.mubr.bf16.mxu0 0
          %1888 = vmatmul.mubr.bf16.gmra.mrb[0].mxu0 %v1734
          %v1889 = vpop.f32.mrb[0].mxu0
          %v1890 = vadd.f32 0.0, %v1889
          %v1891 = vpop.f32.mrb[0].mxu0
          %v1892 = vpop.f32.mrb[0].mxu0
          %v1893 = vadd.f32 0.0, %v1892
          %v1894 = vpop.f32.mrb[0].mxu0
          %1895 = vdwg.mxu0
          %v1912 = vunpack.c.l.b16 %v1334
          %v1913 = vunpack.c.l.b16 %v1335
          %v1914 = vunpack.c.l.b16 %v1336
          %v1915 = vunpack.c.l.b16 %v1337
          %v1916 = vunpack.c.l.b16 %v1338
          %v1917 = vunpack.c.l.b16 %v1339
          %v1918 = vunpack.c.l.b16 %v1340
          %v1919 = vunpack.c.l.b16 %v1341
          %v1920 = vunpack.c.l.b16 %v1342
          %v1921 = vunpack.c.l.b16 %v1343
          %v1922 = vunpack.c.l.b16 %v1344
          %v1923 = vunpack.c.l.b16 %v1345
          %v1924 = vunpack.c.l.b16 %v1346
          %v1925 = vunpack.c.l.b16 %v1347
          %v1926 = vunpack.c.l.b16 %v1348
          %v1927 = vunpack.c.l.b16 %v1349
          %v1928 = vpack.c.b16 %v1913, %v1912
          %v1929 = vpack.c.b16 %v1915, %v1914
          %v1930 = vpack.c.b16 %v1917, %v1916
          %v1931 = vpack.c.b16 %v1919, %v1918
          %v1932 = vpack.c.b16 %v1921, %v1920
          %v1933 = vpack.c.b16 %v1923, %v1922
          %v1934 = vpack.c.b16 %v1925, %v1924
          %v1935 = vpack.c.b16 %v1927, %v1926
          %1944 = vmatprep.subr.bf16.mxu0 0
          %1945 = vmatpush1.bf16.msra.mxu0 %v1928
          %1946 = vmatprep.subr.bf16.mxu0 0
          %1947 = vmatpush1.bf16.msra.mxu0 %v1929
          %1948 = vmatprep.subr.bf16.mxu0 0
          %1949 = vmatpush1.bf16.msra.mxu0 %v1930
          %1950 = vmatprep.subr.bf16.mxu0 0
          %1951 = vmatpush1.bf16.msra.mxu0 %v1931
          %1952 = vmatprep.subr.bf16.mxu0 0
          %1953 = vmatpush1.bf16.msra.mxu0 %v1932
          %1954 = vmatprep.subr.bf16.mxu0 0
          %1955 = vmatpush1.bf16.msra.mxu0 %v1933
          %1956 = vmatprep.subr.bf16.mxu0 0
          %1957 = vmatpush1.bf16.msra.mxu0 %v1934
          %1958 = vmatprep.subr.bf16.mxu0 0
          %1959 = vmatpush1.bf16.msra.mxu0 %v1935
          %1960 = vmatprep.subr.bf16.mxu0 0
          %1961 = vmatpush1.bf16.msra.mxu0 0
          %1962 = vmatprep.subr.bf16.mxu0 0
          %1963 = vmatpush1.bf16.msra.mxu0 0
          %1964 = vmatprep.subr.bf16.mxu0 0
          %1965 = vmatpush1.bf16.msra.mxu0 0
          %1966 = vmatprep.subr.bf16.mxu0 0
          %1967 = vmatpush1.bf16.msra.mxu0 0
          %1968 = vmatprep.subr.bf16.mxu0 0
          %1969 = vmatpush1.bf16.msra.mxu0 0
          %1970 = vmatprep.subr.bf16.mxu0 0
          %1971 = vmatpush1.bf16.msra.mxu0 0
          %1972 = vmatprep.subr.bf16.mxu0 0
          %1973 = vmatpush1.bf16.msra.mxu0 0
          %1974 = vmatprep.subr.bf16.mxu0 0
          %1975 = vmatpush1.bf16.msra.mxu0 0
          %1976 = vmatprep.mubr.bf16.mxu0 0
          %1977 = vmatmul.mubr.bf16.gmra.mrb[0].mxu0 %v1326
          %v1978 = vpop.f32.mrb[0].mxu0
          %v1979 = vadd.f32 %v1834, %v1978
          %v1980 = vpop.f32.mrb[0].mxu0
          %v1981 = vpop.f32.mrb[0].mxu0
          %v1982 = vadd.f32 %v1837, %v1981
          %v1983 = vpop.f32.mrb[0].mxu0
          %1984 = vmatprep.mubr.bf16.mxu0 0
          %1985 = vmatmul.mubr.bf16.gmra.mrb[0].mxu0 %v1327
          %v1986 = vpop.f32.mrb[0].mxu0
          %v1987 = vadd.f32 %v1842, %v1986
          %v1988 = vpop.f32.mrb[0].mxu0
          %v1989 = vpop.f32.mrb[0].mxu0
          %v1990 = vadd.f32 %v1845, %v1989
          %v1991 = vpop.f32.mrb[0].mxu0
          %1992 = vmatprep.mubr.bf16.mxu0 0
          %1993 = vmatmul.mubr.bf16.gmra.mrb[0].mxu0 %v1328
          %v1994 = vpop.f32.mrb[0].mxu0
          %v1995 = vadd.f32 %v1850, %v1994
          %v1996 = vpop.f32.mrb[0].mxu0
          %v1997 = vpop.f32.mrb[0].mxu0
          %v1998 = vadd.f32 %v1853, %v1997
          %v1999 = vpop.f32.mrb[0].mxu0
          %2000 = vmatprep.mubr.bf16.mxu0 0
          %2001 = vmatmul.mubr.bf16.gmra.mrb[0].mxu0 %v1329
          %v2002 = vpop.f32.mrb[0].mxu0
          %v2003 = vadd.f32 %v1858, %v2002
          %v2004 = vpop.f32.mrb[0].mxu0
          %v2005 = vpop.f32.mrb[0].mxu0
          %v2006 = vadd.f32 %v1861, %v2005
          %v2007 = vpop.f32.mrb[0].mxu0
          %2008 = vmatprep.mubr.bf16.mxu0 0
          %2009 = vmatmul.mubr.bf16.gmra.mrb[0].mxu0 %v1330
          %v2010 = vpop.f32.mrb[0].mxu0
          %v2011 = vadd.f32 %v1866, %v2010
          %v2012 = vpop.f32.mrb[0].mxu0
          %v2013 = vpop.f32.mrb[0].mxu0
          %v2014 = vadd.f32 %v1869, %v2013
          %v2015 = vpop.f32.mrb[0].mxu0
          %2016 = vmatprep.mubr.bf16.mxu0 0
          %2017 = vmatmul.mubr.bf16.gmra.mrb[0].mxu0 %v1331
          %v2018 = vpop.f32.mrb[0].mxu0
          %v2019 = vadd.f32 %v1874, %v2018
          %v2020 = vpop.f32.mrb[0].mxu0
          %v2021 = vpop.f32.mrb[0].mxu0
          %v2022 = vadd.f32 %v1877, %v2021
          %v2023 = vpop.f32.mrb[0].mxu0
          %2024 = vmatprep.mubr.bf16.mxu0 0
          %2025 = vmatmul.mubr.bf16.gmra.mrb[0].mxu0 %v1332
          %v2026 = vpop.f32.mrb[0].mxu0
          %v2027 = vadd.f32 %v1882, %v2026
          %v2028 = vpop.f32.mrb[0].mxu0
          %v2029 = vpop.f32.mrb[0].mxu0
          %v2030 = vadd.f32 %v1885, %v2029
          %v2031 = vpop.f32.mrb[0].mxu0
          %2032 = vmatprep.mubr.bf16.mxu0 0
          %2033 = vmatmul.mubr.bf16.gmra.mrb[0].mxu0 %v1333
          %v2034 = vpop.f32.mrb[0].mxu0
          %v2035 = vadd.f32 %v1890, %v2034
          %v2036 = vpop.f32.mrb[0].mxu0
          %v2037 = vpop.f32.mrb[0].mxu0
          %v2038 = vadd.f32 %v1893, %v2037
          %v2039 = vpop.f32.mrb[0].mxu0
          %2040 = vdwg.mxu0
          %v2041 = vld [vmem:[#allocation12 + $0x40] sm:$0xf]
          %v2042 = vld [vmem:[#allocation12 + $0x44] sm:$0xf]
          %v2043 = vld [vmem:[#allocation12 + $0x48] sm:$0xf]
          %v2044 = vld [vmem:[#allocation12 + $0x4c] sm:$0xf]
          %v2045 = vld [vmem:[#allocation12 + $0x50] sm:$0xf]
          %v2046 = vld [vmem:[#allocation12 + $0x54] sm:$0xf]
          %v2047 = vld [vmem:[#allocation12 + $0x58] sm:$0xf]
          %v2048 = vld [vmem:[#allocation12 + $0x5c] sm:$0xf]
          %v2049 = vld [vmem:[#allocation12 + $0x60] sm:$0xf]
          %v2050 = vld [vmem:[#allocation12 + $0x64] sm:$0xf]
          %v2051 = vld [vmem:[#allocation12 + $0x68] sm:$0xf]
          %v2052 = vld [vmem:[#allocation12 + $0x6c] sm:$0xf]
          %v2053 = vld [vmem:[#allocation12 + $0x70] sm:$0xf]
          %v2054 = vld [vmem:[#allocation12 + $0x74] sm:$0xf]
          %v2055 = vld [vmem:[#allocation12 + $0x78] sm:$0xf]
          %v2056 = vld [vmem:[#allocation12 + $0x7c] sm:$0xf]
          %v2073 = vunpack.c.l.b16 %v2041
          %v2074 = vunpack.c.l.b16 %v2042
          %v2075 = vunpack.c.l.b16 %v2043
          %v2076 = vunpack.c.l.b16 %v2044
          %v2077 = vunpack.c.l.b16 %v2045
          %v2078 = vunpack.c.l.b16 %v2046
          %v2079 = vunpack.c.l.b16 %v2047
          %v2080 = vunpack.c.l.b16 %v2048
          %v2081 = vunpack.c.l.b16 %v2049
          %v2082 = vunpack.c.l.b16 %v2050
          %v2083 = vunpack.c.l.b16 %v2051
          %v2084 = vunpack.c.l.b16 %v2052
          %v2085 = vunpack.c.l.b16 %v2053
          %v2086 = vunpack.c.l.b16 %v2054
          %v2087 = vunpack.c.l.b16 %v2055
          %v2088 = vunpack.c.l.b16 %v2056
          %v2089 = vpack.c.b16 %v2074, %v2073
          %v2090 = vpack.c.b16 %v2076, %v2075
          %v2091 = vpack.c.b16 %v2078, %v2077
          %v2092 = vpack.c.b16 %v2080, %v2079
          %v2093 = vpack.c.b16 %v2082, %v2081
          %v2094 = vpack.c.b16 %v2084, %v2083
          %v2095 = vpack.c.b16 %v2086, %v2085
          %v2096 = vpack.c.b16 %v2088, %v2087
          %2105 = vmatprep.subr.bf16.mxu0 0
          %2106 = vmatpush1.bf16.msra.mxu0 %v2089
          %2107 = vmatprep.subr.bf16.mxu0 0
          %2108 = vmatpush1.bf16.msra.mxu0 %v2090
          %2109 = vmatprep.subr.bf16.mxu0 0
          %2110 = vmatpush1.bf16.msra.mxu0 %v2091
          %2111 = vmatprep.subr.bf16.mxu0 0
          %2112 = vmatpush1.bf16.msra.mxu0 %v2092
          %2113 = vmatprep.subr.bf16.mxu0 0
          %2114 = vmatpush1.bf16.msra.mxu0 %v2093
          %2115 = vmatprep.subr.bf16.mxu0 0
          %2116 = vmatpush1.bf16.msra.mxu0 %v2094
          %2117 = vmatprep.subr.bf16.mxu0 0
          %2118 = vmatpush1.bf16.msra.mxu0 %v2095
          %2119 = vmatprep.subr.bf16.mxu0 0
          %2120 = vmatpush1.bf16.msra.mxu0 %v2096
          %2121 = vmatprep.subr.bf16.mxu0 0
          %2122 = vmatpush1.bf16.msra.mxu0 0
          %2123 = vmatprep.subr.bf16.mxu0 0
          %2124 = vmatpush1.bf16.msra.mxu0 0
          %2125 = vmatprep.subr.bf16.mxu0 0
          %2126 = vmatpush1.bf16.msra.mxu0 0
          %2127 = vmatprep.subr.bf16.mxu0 0
          %2128 = vmatpush1.bf16.msra.mxu0 0
          %2129 = vmatprep.subr.bf16.mxu0 0
          %2130 = vmatpush1.bf16.msra.mxu0 0
          %2131 = vmatprep.subr.bf16.mxu0 0
          %2132 = vmatpush1.bf16.msra.mxu0 0
          %2133 = vmatprep.subr.bf16.mxu0 0
          %2134 = vmatpush1.bf16.msra.mxu0 0
          %2135 = vmatprep.subr.bf16.mxu0 0
          %2136 = vmatpush1.bf16.msra.mxu0 0
          %2137 = vmatprep.mubr.bf16.mxu0 0
          %2138 = vmatmul.mubr.bf16.gmra.mrb[0].mxu0 %v1727
          %v2139 = vpop.f32.mrb[0].mxu0
          %v2140 = vadd.f32 0.0, %v2139
          %v2141 = vpop.f32.mrb[0].mxu0
          %v2142 = vpop.f32.mrb[0].mxu0
          %v2143 = vadd.f32 0.0, %v2142
          %v2144 = vpop.f32.mrb[0].mxu0
          %2145 = vmatprep.mubr.bf16.mxu0 0
          %2146 = vmatmul.mubr.bf16.gmra.mrb[0].mxu0 %v1728
          %v2147 = vpop.f32.mrb[0].mxu0
          %v2148 = vadd.f32 0.0, %v2147
          %v2149 = vpop.f32.mrb[0].mxu0
          %v2150 = vpop.f32.mrb[0].mxu0
          %v2151 = vadd.f32 0.0, %v2150
          %v2152 = vpop.f32.mrb[0].mxu0
          %2153 = vmatprep.mubr.bf16.mxu0 0
          %2154 = vmatmul.mubr.bf16.gmra.mrb[0].mxu0 %v1729
          %v2155 = vpop.f32.mrb[0].mxu0
          %v2156 = vadd.f32 0.0, %v2155
          %v2157 = vpop.f32.mrb[0].mxu0
          %v2158 = vpop.f32.mrb[0].mxu0
          %v2159 = vadd.f32 0.0, %v2158
          %v2160 = vpop.f32.mrb[0].mxu0
          %2161 = vmatprep.mubr.bf16.mxu0 0
          %2162 = vmatmul.mubr.bf16.gmra.mrb[0].mxu0 %v1730
          %v2163 = vpop.f32.mrb[0].mxu0
          %v2164 = vadd.f32 0.0, %v2163
          %v2165 = vpop.f32.mrb[0].mxu0
          %v2166 = vpop.f32.mrb[0].mxu0
          %v2167 = vadd.f32 0.0, %v2166
          %v2168 = vpop.f32.mrb[0].mxu0
          %2169 = vmatprep.mubr.bf16.mxu0 0
          %2170 = vmatmul.mubr.bf16.gmra.mrb[0].mxu0 %v1731
          %v2171 = vpop.f32.mrb[0].mxu0
          %v2172 = vadd.f32 0.0, %v2171
          %v2173 = vpop.f32.mrb[0].mxu0
          %v2174 = vpop.f32.mrb[0].mxu0
          %v2175 = vadd.f32 0.0, %v2174
          %v2176 = vpop.f32.mrb[0].mxu0
          %2177 = vmatprep.mubr.bf16.mxu0 0
          %2178 = vmatmul.mubr.bf16.gmra.mrb[0].mxu0 %v1732
          %v2179 = vpop.f32.mrb[0].mxu0
          %v2180 = vadd.f32 0.0, %v2179
          %v2181 = vpop.f32.mrb[0].mxu0
          %v2182 = vpop.f32.mrb[0].mxu0
          %v2183 = vadd.f32 0.0, %v2182
          %v2184 = vpop.f32.mrb[0].mxu0
          %2185 = vmatprep.mubr.bf16.mxu0 0
          %2186 = vmatmul.mubr.bf16.gmra.mrb[0].mxu0 %v1733
          %v2187 = vpop.f32.mrb[0].mxu0
          %v2188 = vadd.f32 0.0, %v2187
          %v2189 = vpop.f32.mrb[0].mxu0
          %v2190 = vpop.f32.mrb[0].mxu0
          %v2191 = vadd.f32 0.0, %v2190
          %v2192 = vpop.f32.mrb[0].mxu0
          %2193 = vmatprep.mubr.bf16.mxu0 0
          %2194 = vmatmul.mubr.bf16.gmra.mrb[0].mxu0 %v1734
          %v2195 = vpop.f32.mrb[0].mxu0
          %v2196 = vadd.f32 0.0, %v2195
          %v2197 = vpop.f32.mrb[0].mxu0
          %v2198 = vpop.f32.mrb[0].mxu0
          %v2199 = vadd.f32 0.0, %v2198
          %v2200 = vpop.f32.mrb[0].mxu0
          %2201 = vdwg.mxu0
          %v2218 = vunpack.c.l.b16 %v1350
          %v2219 = vunpack.c.l.b16 %v1351
          %v2220 = vunpack.c.l.b16 %v1352
          %v2221 = vunpack.c.l.b16 %v1353
          %v2222 = vunpack.c.l.b16 %v1354
          %v2223 = vunpack.c.l.b16 %v1355
          %v2224 = vunpack.c.l.b16 %v1356
          %v2225 = vunpack.c.l.b16 %v1357
          %v2226 = vunpack.c.l.b16 %v1358
          %v2227 = vunpack.c.l.b16 %v1359
          %v2228 = vunpack.c.l.b16 %v1360
          %v2229 = vunpack.c.l.b16 %v1361
          %v2230 = vunpack.c.l.b16 %v1362
          %v2231 = vunpack.c.l.b16 %v1363
          %v2232 = vunpack.c.l.b16 %v1364
          %v2233 = vunpack.c.l.b16 %v1365
          %v2234 = vpack.c.b16 %v2219, %v2218
          %v2235 = vpack.c.b16 %v2221, %v2220
          %v2236 = vpack.c.b16 %v2223, %v2222
          %v2237 = vpack.c.b16 %v2225, %v2224
          %v2238 = vpack.c.b16 %v2227, %v2226
          %v2239 = vpack.c.b16 %v2229, %v2228
          %v2240 = vpack.c.b16 %v2231, %v2230
          %v2241 = vpack.c.b16 %v2233, %v2232
          %2250 = vmatprep.subr.bf16.mxu0 0
          %2251 = vmatpush1.bf16.msra.mxu0 %v2234
          %2252 = vmatprep.subr.bf16.mxu0 0
          %2253 = vmatpush1.bf16.msra.mxu0 %v2235
          %2254 = vmatprep.subr.bf16.mxu0 0
          %2255 = vmatpush1.bf16.msra.mxu0 %v2236
          %2256 = vmatprep.subr.bf16.mxu0 0
          %2257 = vmatpush1.bf16.msra.mxu0 %v2237
          %2258 = vmatprep.subr.bf16.mxu0 0
          %2259 = vmatpush1.bf16.msra.mxu0 %v2238
          %2260 = vmatprep.subr.bf16.mxu0 0
          %2261 = vmatpush1.bf16.msra.mxu0 %v2239
          %2262 = vmatprep.subr.bf16.mxu0 0
          %2263 = vmatpush1.bf16.msra.mxu0 %v2240
          %2264 = vmatprep.subr.bf16.mxu0 0
          %2265 = vmatpush1.bf16.msra.mxu0 %v2241
          %2266 = vmatprep.subr.bf16.mxu0 0
          %2267 = vmatpush1.bf16.msra.mxu0 0
          %2268 = vmatprep.subr.bf16.mxu0 0
          %2269 = vmatpush1.bf16.msra.mxu0 0
          %2270 = vmatprep.subr.bf16.mxu0 0
          %2271 = vmatpush1.bf16.msra.mxu0 0
          %2272 = vmatprep.subr.bf16.mxu0 0
          %2273 = vmatpush1.bf16.msra.mxu0 0
          %2274 = vmatprep.subr.bf16.mxu0 0
          %2275 = vmatpush1.bf16.msra.mxu0 0
          %2276 = vmatprep.subr.bf16.mxu0 0
          %2277 = vmatpush1.bf16.msra.mxu0 0
          %2278 = vmatprep.subr.bf16.mxu0 0
          %2279 = vmatpush1.bf16.msra.mxu0 0
          %2280 = vmatprep.subr.bf16.mxu0 0
          %2281 = vmatpush1.bf16.msra.mxu0 0
          %2282 = vmatprep.mubr.bf16.mxu0 0
          %2283 = vmatmul.mubr.bf16.gmra.mrb[0].mxu0 %v1326
          %v2284 = vpop.f32.mrb[0].mxu0
          %v2285 = vadd.f32 %v2140, %v2284
          %v2286 = vpop.f32.mrb[0].mxu0
          %v2287 = vpop.f32.mrb[0].mxu0
          %v2288 = vadd.f32 %v2143, %v2287
          %v2289 = vpop.f32.mrb[0].mxu0
          %2290 = vmatprep.mubr.bf16.mxu0 0
          %2291 = vmatmul.mubr.bf16.gmra.mrb[0].mxu0 %v1327
          %v2292 = vpop.f32.mrb[0].mxu0
          %v2293 = vadd.f32 %v2148, %v2292
          %v2294 = vpop.f32.mrb[0].mxu0
          %v2295 = vpop.f32.mrb[0].mxu0
          %v2296 = vadd.f32 %v2151, %v2295
          %v2297 = vpop.f32.mrb[0].mxu0
          %2298 = vmatprep.mubr.bf16.mxu0 0
          %2299 = vmatmul.mubr.bf16.gmra.mrb[0].mxu0 %v1328
          %v2300 = vpop.f32.mrb[0].mxu0
          %v2301 = vadd.f32 %v2156, %v2300
          %v2302 = vpop.f32.mrb[0].mxu0
          %v2303 = vpop.f32.mrb[0].mxu0
          %v2304 = vadd.f32 %v2159, %v2303
          %v2305 = vpop.f32.mrb[0].mxu0
          %2306 = vmatprep.mubr.bf16.mxu0 0
          %2307 = vmatmul.mubr.bf16.gmra.mrb[0].mxu0 %v1329
          %v2308 = vpop.f32.mrb[0].mxu0
          %v2309 = vadd.f32 %v2164, %v2308
          %v2310 = vpop.f32.mrb[0].mxu0
          %v2311 = vpop.f32.mrb[0].mxu0
          %v2312 = vadd.f32 %v2167, %v2311
          %v2313 = vpop.f32.mrb[0].mxu0
          %2314 = vmatprep.mubr.bf16.mxu0 0
          %2315 = vmatmul.mubr.bf16.gmra.mrb[0].mxu0 %v1330
          %v2316 = vpop.f32.mrb[0].mxu0
          %v2317 = vadd.f32 %v2172, %v2316
          %v2318 = vpop.f32.mrb[0].mxu0
          %v2319 = vpop.f32.mrb[0].mxu0
          %v2320 = vadd.f32 %v2175, %v2319
          %v2321 = vpop.f32.mrb[0].mxu0
          %2322 = vmatprep.mubr.bf16.mxu0 0
          %2323 = vmatmul.mubr.bf16.gmra.mrb[0].mxu0 %v1331
          %v2324 = vpop.f32.mrb[0].mxu0
          %v2325 = vadd.f32 %v2180, %v2324
          %v2326 = vpop.f32.mrb[0].mxu0
          %v2327 = vpop.f32.mrb[0].mxu0
          %v2328 = vadd.f32 %v2183, %v2327
          %v2329 = vpop.f32.mrb[0].mxu0
          %2330 = vmatprep.mubr.bf16.mxu0 0
          %2331 = vmatmul.mubr.bf16.gmra.mrb[0].mxu0 %v1332
          %v2332 = vpop.f32.mrb[0].mxu0
          %v2333 = vadd.f32 %v2188, %v2332
          %v2334 = vpop.f32.mrb[0].mxu0
          %v2335 = vpop.f32.mrb[0].mxu0
          %v2336 = vadd.f32 %v2191, %v2335
          %v2337 = vpop.f32.mrb[0].mxu0
          %2338 = vmatprep.mubr.bf16.mxu0 0
          %2339 = vmatmul.mubr.bf16.gmra.mrb[0].mxu0 %v1333
          %v2340 = vpop.f32.mrb[0].mxu0
          %v2341 = vadd.f32 %v2196, %v2340
          %v2342 = vpop.f32.mrb[0].mxu0
          %v2343 = vpop.f32.mrb[0].mxu0
          %v2344 = vadd.f32 %v2199, %v2343
          %v2345 = vpop.f32.mrb[0].mxu0
          %2346 = vdwg.mxu0
          %v2347 = vld [vmem:[#allocation7 + $0x8] sm:$0xf]
          %v2348 = vld [vmem:[#allocation7 + $0x18] sm:$0xf]
          %v2349 = vld [vmem:[#allocation7 + $0x28] sm:$0xf]
          %v2350 = vld [vmem:[#allocation7 + $0x38] sm:$0xf]
          %v2351 = vld [vmem:[#allocation7 + $0x48] sm:$0xf]
          %v2352 = vld [vmem:[#allocation7 + $0x58] sm:$0xf]
          %v2353 = vld [vmem:[#allocation7 + $0x68] sm:$0xf]
          %v2354 = vld [vmem:[#allocation7 + $0x78] sm:$0xf]
          %v2355 = vld [vmem:[#allocation7 + $0x88] sm:$0xf]
          %v2356 = vld [vmem:[#allocation7 + $0x98] sm:$0xf]
          %v2357 = vld [vmem:[#allocation7 + $0xa8] sm:$0xf]
          %v2358 = vld [vmem:[#allocation7 + $0xb8] sm:$0xf]
          %v2359 = vld [vmem:[#allocation7 + $0xc8] sm:$0xf]
          %v2360 = vld [vmem:[#allocation7 + $0xd8] sm:$0xf]
          %v2361 = vld [vmem:[#allocation7 + $0xe8] sm:$0xf]
          %v2362 = vld [vmem:[#allocation7 + $0xf8] sm:$0xf]
          %v2363 = vld [vmem:[#allocation9 + $0x8] sm:$0xf]
          %v2364 = vld [vmem:[#allocation9 + $0x18] sm:$0xf]
          %v2365 = vld [vmem:[#allocation9 + $0x28] sm:$0xf]
          %v2366 = vld [vmem:[#allocation9 + $0x38] sm:$0xf]
          %v2367 = vld [vmem:[#allocation9 + $0x48] sm:$0xf]
          %v2368 = vld [vmem:[#allocation9 + $0x58] sm:$0xf]
          %v2369 = vld [vmem:[#allocation9 + $0x68] sm:$0xf]
          %v2370 = vld [vmem:[#allocation9 + $0x78] sm:$0xf]
          %v2371 = vld [vmem:[#allocation9 + $0x88] sm:$0xf]
          %v2372 = vld [vmem:[#allocation9 + $0x98] sm:$0xf]
          %v2373 = vld [vmem:[#allocation9 + $0xa8] sm:$0xf]
          %v2374 = vld [vmem:[#allocation9 + $0xb8] sm:$0xf]
          %v2375 = vld [vmem:[#allocation9 + $0xc8] sm:$0xf]
          %v2376 = vld [vmem:[#allocation9 + $0xd8] sm:$0xf]
          %v2377 = vld [vmem:[#allocation9 + $0xe8] sm:$0xf]
          %v2378 = vld [vmem:[#allocation9 + $0xf8] sm:$0xf]
          %v2395 = vunpack.c.l.b16 %v2363
          %v2396 = vunpack.c.l.b16 %v2364
          %v2397 = vunpack.c.l.b16 %v2365
          %v2398 = vunpack.c.l.b16 %v2366
          %v2399 = vunpack.c.l.b16 %v2367
          %v2400 = vunpack.c.l.b16 %v2368
          %v2401 = vunpack.c.l.b16 %v2369
          %v2402 = vunpack.c.l.b16 %v2370
          %v2403 = vunpack.c.l.b16 %v2371
          %v2404 = vunpack.c.l.b16 %v2372
          %v2405 = vunpack.c.l.b16 %v2373
          %v2406 = vunpack.c.l.b16 %v2374
          %v2407 = vunpack.c.l.b16 %v2375
          %v2408 = vunpack.c.l.b16 %v2376
          %v2409 = vunpack.c.l.b16 %v2377
          %v2410 = vunpack.c.l.b16 %v2378
          %v2411 = vpack.c.b16 %v2396, %v2395
          %v2412 = vpack.c.b16 %v2398, %v2397
          %v2413 = vpack.c.b16 %v2400, %v2399
          %v2414 = vpack.c.b16 %v2402, %v2401
          %v2415 = vpack.c.b16 %v2404, %v2403
          %v2416 = vpack.c.b16 %v2406, %v2405
          %v2417 = vpack.c.b16 %v2408, %v2407
          %v2418 = vpack.c.b16 %v2410, %v2409
          %2427 = vmatprep.subr.bf16.mxu0 0
          %2428 = vmatpush1.bf16.msra.mxu0 %v2411
          %2429 = vmatprep.subr.bf16.mxu0 0
          %2430 = vmatpush1.bf16.msra.mxu0 %v2412
          %2431 = vmatprep.subr.bf16.mxu0 0
          %2432 = vmatpush1.bf16.msra.mxu0 %v2413
          %2433 = vmatprep.subr.bf16.mxu0 0
          %2434 = vmatpush1.bf16.msra.mxu0 %v2414
          %2435 = vmatprep.subr.bf16.mxu0 0
          %2436 = vmatpush1.bf16.msra.mxu0 %v2415
          %2437 = vmatprep.subr.bf16.mxu0 0
          %2438 = vmatpush1.bf16.msra.mxu0 %v2416
          %2439 = vmatprep.subr.bf16.mxu0 0
          %2440 = vmatpush1.bf16.msra.mxu0 %v2417
          %2441 = vmatprep.subr.bf16.mxu0 0
          %2442 = vmatpush1.bf16.msra.mxu0 %v2418
          %2443 = vmatprep.subr.bf16.mxu0 0
          %2444 = vmatpush1.bf16.msra.mxu0 0
          %2445 = vmatprep.subr.bf16.mxu0 0
          %2446 = vmatpush1.bf16.msra.mxu0 0
          %2447 = vmatprep.subr.bf16.mxu0 0
          %2448 = vmatpush1.bf16.msra.mxu0 0
          %2449 = vmatprep.subr.bf16.mxu0 0
          %2450 = vmatpush1.bf16.msra.mxu0 0
          %2451 = vmatprep.subr.bf16.mxu0 0
          %2452 = vmatpush1.bf16.msra.mxu0 0
          %2453 = vmatprep.subr.bf16.mxu0 0
          %2454 = vmatpush1.bf16.msra.mxu0 0
          %2455 = vmatprep.subr.bf16.mxu0 0
          %2456 = vmatpush1.bf16.msra.mxu0 0
          %2457 = vmatprep.subr.bf16.mxu0 0
          %2458 = vmatpush1.bf16.msra.mxu0 0
          %2459 = vmatprep.mubr.bf16.mxu0 0
          %2460 = vmatmul.mubr.bf16.gmra.mrb[0].mxu0 %v981
          %v2461 = vpop.f32.mrb[0].mxu0
          %v2462 = vadd.f32 0.0, %v2461
          %v2463 = vpop.f32.mrb[0].mxu0
          %v2464 = vpop.f32.mrb[0].mxu0
          %v2465 = vadd.f32 0.0, %v2464
          %v2466 = vpop.f32.mrb[0].mxu0
          %2467 = vmatprep.mubr.bf16.mxu0 0
          %2468 = vmatmul.mubr.bf16.gmra.mrb[0].mxu0 %v982
          %v2469 = vpop.f32.mrb[0].mxu0
          %v2470 = vadd.f32 0.0, %v2469
          %v2471 = vpop.f32.mrb[0].mxu0
          %v2472 = vpop.f32.mrb[0].mxu0
          %v2473 = vadd.f32 0.0, %v2472
          %v2474 = vpop.f32.mrb[0].mxu0
          %2475 = vmatprep.mubr.bf16.mxu0 0
          %2476 = vmatmul.mubr.bf16.gmra.mrb[0].mxu0 %v983
          %v2477 = vpop.f32.mrb[0].mxu0
          %v2478 = vadd.f32 0.0, %v2477
          %v2479 = vpop.f32.mrb[0].mxu0
          %v2480 = vpop.f32.mrb[0].mxu0
          %v2481 = vadd.f32 0.0, %v2480
          %v2482 = vpop.f32.mrb[0].mxu0
          %2483 = vmatprep.mubr.bf16.mxu0 0
          %2484 = vmatmul.mubr.bf16.gmra.mrb[0].mxu0 %v984
          %v2485 = vpop.f32.mrb[0].mxu0
          %v2486 = vadd.f32 0.0, %v2485
          %v2487 = vpop.f32.mrb[0].mxu0
          %v2488 = vpop.f32.mrb[0].mxu0
          %v2489 = vadd.f32 0.0, %v2488
          %v2490 = vpop.f32.mrb[0].mxu0
          %2491 = vmatprep.mubr.bf16.mxu0 0
          %2492 = vmatmul.mubr.bf16.gmra.mrb[0].mxu0 %v985
          %v2493 = vpop.f32.mrb[0].mxu0
          %v2494 = vadd.f32 0.0, %v2493
          %v2495 = vpop.f32.mrb[0].mxu0
          %v2496 = vpop.f32.mrb[0].mxu0
          %v2497 = vadd.f32 0.0, %v2496
          %v2498 = vpop.f32.mrb[0].mxu0
          %2499 = vmatprep.mubr.bf16.mxu0 0
          %2500 = vmatmul.mubr.bf16.gmra.mrb[0].mxu0 %v986
          %v2501 = vpop.f32.mrb[0].mxu0
          %v2502 = vadd.f32 0.0, %v2501
          %v2503 = vpop.f32.mrb[0].mxu0
          %v2504 = vpop.f32.mrb[0].mxu0
          %v2505 = vadd.f32 0.0, %v2504
          %v2506 = vpop.f32.mrb[0].mxu0
          %2507 = vmatprep.mubr.bf16.mxu0 0
          %2508 = vmatmul.mubr.bf16.gmra.mrb[0].mxu0 %v987
          %v2509 = vpop.f32.mrb[0].mxu0
          %v2510 = vadd.f32 0.0, %v2509
          %v2511 = vpop.f32.mrb[0].mxu0
          %v2512 = vpop.f32.mrb[0].mxu0
          %v2513 = vadd.f32 0.0, %v2512
          %v2514 = vpop.f32.mrb[0].mxu0
          %2515 = vmatprep.mubr.bf16.mxu0 0
          %2516 = vmatmul.mubr.bf16.gmra.mrb[0].mxu0 %v988
          %v2517 = vpop.f32.mrb[0].mxu0
          %v2518 = vadd.f32 0.0, %v2517
          %v2519 = vpop.f32.mrb[0].mxu0
          %v2520 = vpop.f32.mrb[0].mxu0
          %v2521 = vadd.f32 0.0, %v2520
          %v2522 = vpop.f32.mrb[0].mxu0
          %2523 = vdwg.mxu0
          %v2540 = vunpack.c.l.b16 %v2347
          %v2541 = vunpack.c.l.b16 %v2348
          %v2542 = vunpack.c.l.b16 %v2349
          %v2543 = vunpack.c.l.b16 %v2350
          %v2544 = vunpack.c.l.b16 %v2351
          %v2545 = vunpack.c.l.b16 %v2352
          %v2546 = vunpack.c.l.b16 %v2353
          %v2547 = vunpack.c.l.b16 %v2354
          %v2548 = vunpack.c.l.b16 %v2355
          %v2549 = vunpack.c.l.b16 %v2356
          %v2550 = vunpack.c.l.b16 %v2357
          %v2551 = vunpack.c.l.b16 %v2358
          %v2552 = vunpack.c.l.b16 %v2359
          %v2553 = vunpack.c.l.b16 %v2360
          %v2554 = vunpack.c.l.b16 %v2361
          %v2555 = vunpack.c.l.b16 %v2362
          %v2556 = vpack.c.b16 %v2541, %v2540
          %v2557 = vpack.c.b16 %v2543, %v2542
          %v2558 = vpack.c.b16 %v2545, %v2544
          %v2559 = vpack.c.b16 %v2547, %v2546
          %v2560 = vpack.c.b16 %v2549, %v2548
          %v2561 = vpack.c.b16 %v2551, %v2550
          %v2562 = vpack.c.b16 %v2553, %v2552
          %v2563 = vpack.c.b16 %v2555, %v2554
          %2572 = vmatprep.subr.bf16.mxu0 0
          %2573 = vmatpush1.bf16.msra.mxu0 %v2556
          %2574 = vmatprep.subr.bf16.mxu0 0
          %2575 = vmatpush1.bf16.msra.mxu0 %v2557
          %2576 = vmatprep.subr.bf16.mxu0 0
          %2577 = vmatpush1.bf16.msra.mxu0 %v2558
          %2578 = vmatprep.subr.bf16.mxu0 0
          %2579 = vmatpush1.bf16.msra.mxu0 %v2559
          %2580 = vmatprep.subr.bf16.mxu0 0
          %2581 = vmatpush1.bf16.msra.mxu0 %v2560
          %2582 = vmatprep.subr.bf16.mxu0 0
          %2583 = vmatpush1.bf16.msra.mxu0 %v2561
          %2584 = vmatprep.subr.bf16.mxu0 0
          %2585 = vmatpush1.bf16.msra.mxu0 %v2562
          %2586 = vmatprep.subr.bf16.mxu0 0
          %2587 = vmatpush1.bf16.msra.mxu0 %v2563
          %2588 = vmatprep.subr.bf16.mxu0 0
          %2589 = vmatpush1.bf16.msra.mxu0 0
          %2590 = vmatprep.subr.bf16.mxu0 0
          %2591 = vmatpush1.bf16.msra.mxu0 0
          %2592 = vmatprep.subr.bf16.mxu0 0
          %2593 = vmatpush1.bf16.msra.mxu0 0
          %2594 = vmatprep.subr.bf16.mxu0 0
          %2595 = vmatpush1.bf16.msra.mxu0 0
          %2596 = vmatprep.subr.bf16.mxu0 0
          %2597 = vmatpush1.bf16.msra.mxu0 0
          %2598 = vmatprep.subr.bf16.mxu0 0
          %2599 = vmatpush1.bf16.msra.mxu0 0
          %2600 = vmatprep.subr.bf16.mxu0 0
          %2601 = vmatpush1.bf16.msra.mxu0 0
          %2602 = vmatprep.subr.bf16.mxu0 0
          %2603 = vmatpush1.bf16.msra.mxu0 0
          %2604 = vmatprep.mubr.bf16.mxu0 0
          %2605 = vmatmul.mubr.bf16.gmra.mrb[0].mxu0 %v889
          %v2606 = vpop.f32.mrb[0].mxu0
          %v2607 = vadd.f32 %v2462, %v2606
          %v2608 = vpop.f32.mrb[0].mxu0
          %v2609 = vpop.f32.mrb[0].mxu0
          %v2610 = vadd.f32 %v2465, %v2609
          %v2611 = vpop.f32.mrb[0].mxu0
          %2612 = vmatprep.mubr.bf16.mxu0 0
          %2613 = vmatmul.mubr.bf16.gmra.mrb[0].mxu0 %v890
          %v2614 = vpop.f32.mrb[0].mxu0
          %v2615 = vadd.f32 %v2470, %v2614
          %v2616 = vpop.f32.mrb[0].mxu0
          %v2617 = vpop.f32.mrb[0].mxu0
          %v2618 = vadd.f32 %v2473, %v2617
          %v2619 = vpop.f32.mrb[0].mxu0
          %2620 = vmatprep.mubr.bf16.mxu0 0
          %2621 = vmatmul.mubr.bf16.gmra.mrb[0].mxu0 %v891
          %v2622 = vpop.f32.mrb[0].mxu0
          %v2623 = vadd.f32 %v2478, %v2622
          %v2624 = vpop.f32.mrb[0].mxu0
          %v2625 = vpop.f32.mrb[0].mxu0
          %v2626 = vadd.f32 %v2481, %v2625
          %v2627 = vpop.f32.mrb[0].mxu0
          %2628 = vmatprep.mubr.bf16.mxu0 0
          %2629 = vmatmul.mubr.bf16.gmra.mrb[0].mxu0 %v892
          %v2630 = vpop.f32.mrb[0].mxu0
          %v2631 = vadd.f32 %v2486, %v2630
          %v2632 = vpop.f32.mrb[0].mxu0
          %v2633 = vpop.f32.mrb[0].mxu0
          %v2634 = vadd.f32 %v2489, %v2633
          %v2635 = vpop.f32.mrb[0].mxu0
          %2636 = vmatprep.mubr.bf16.mxu0 0
          %2637 = vmatmul.mubr.bf16.gmra.mrb[0].mxu0 %v893
          %v2638 = vpop.f32.mrb[0].mxu0
          %v2639 = vadd.f32 %v2494, %v2638
          %v2640 = vpop.f32.mrb[0].mxu0
          %v2641 = vpop.f32.mrb[0].mxu0
          %v2642 = vadd.f32 %v2497, %v2641
          %v2643 = vpop.f32.mrb[0].mxu0
          %2644 = vmatprep.mubr.bf16.mxu0 0
          %2645 = vmatmul.mubr.bf16.gmra.mrb[0].mxu0 %v894
          %v2646 = vpop.f32.mrb[0].mxu0
          %v2647 = vadd.f32 %v2502, %v2646
          %v2648 = vpop.f32.mrb[0].mxu0
          %v2649 = vpop.f32.mrb[0].mxu0
          %v2650 = vadd.f32 %v2505, %v2649
          %v2651 = vpop.f32.mrb[0].mxu0
          %2652 = vmatprep.mubr.bf16.mxu0 0
          %2653 = vmatmul.mubr.bf16.gmra.mrb[0].mxu0 %v895
          %v2654 = vpop.f32.mrb[0].mxu0
          %v2655 = vadd.f32 %v2510, %v2654
          %v2656 = vpop.f32.mrb[0].mxu0
          %v2657 = vpop.f32.mrb[0].mxu0
          %v2658 = vadd.f32 %v2513, %v2657
          %v2659 = vpop.f32.mrb[0].mxu0
          %2660 = vmatprep.mubr.bf16.mxu0 0
          %2661 = vmatmul.mubr.bf16.gmra.mrb[0].mxu0 %v896
          %v2662 = vpop.f32.mrb[0].mxu0
          %v2663 = vadd.f32 %v2518, %v2662
          %v2664 = vpop.f32.mrb[0].mxu0
          %v2665 = vpop.f32.mrb[0].mxu0
          %v2666 = vadd.f32 %v2521, %v2665
          %v2667 = vpop.f32.mrb[0].mxu0
          %2668 = vdwg.mxu0
          %v2669 = vld [vmem:[%s5 + $0x2] sm:$0x1]
          %v2671 = vlaneseq
          %v2672 = vshrl.u32 %v2671, 7
          %v2673 = vsub.s32 0, %v2672
          %v2674 = vrot.slane %v2669, %v2673
          %v2676 = vadd.f32 %v2607, %v2674
          %v2677 = vadd.f32 %v2610, %v2674
          %v2678 = vadd.f32 %v2615, %v2674
          %v2679 = vadd.f32 %v2618, %v2674
          %v2680 = vadd.f32 %v2623, %v2674
          %v2681 = vadd.f32 %v2626, %v2674
          %v2682 = vadd.f32 %v2631, %v2674
          %v2683 = vadd.f32 %v2634, %v2674
          %v2684 = vadd.f32 %v2639, %v2674
          %v2685 = vadd.f32 %v2642, %v2674
          %v2686 = vadd.f32 %v2647, %v2674
          %v2687 = vadd.f32 %v2650, %v2674
          %v2688 = vadd.f32 %v2655, %v2674
          %v2689 = vadd.f32 %v2658, %v2674
          %v2690 = vadd.f32 %v2663, %v2674
          %v2691 = vadd.f32 %v2666, %v2674
          %v2692 = vmax.f32 %v2676, 0.0
          %v2693 = vmax.f32 %v2677, 0.0
          %v2694 = vmax.f32 %v2678, 0.0
          %v2695 = vmax.f32 %v2679, 0.0
          %v2696 = vmax.f32 %v2680, 0.0
          %v2697 = vmax.f32 %v2681, 0.0
          %v2698 = vmax.f32 %v2682, 0.0
          %v2699 = vmax.f32 %v2683, 0.0
          %v2700 = vmax.f32 %v2684, 0.0
          %v2701 = vmax.f32 %v2685, 0.0
          %v2702 = vmax.f32 %v2686, 0.0
          %v2703 = vmax.f32 %v2687, 0.0
          %v2704 = vmax.f32 %v2688, 0.0
          %v2705 = vmax.f32 %v2689, 0.0
          %v2706 = vmax.f32 %v2690, 0.0
          %v2707 = vmax.f32 %v2691, 0.0
          %v2708 = vpack.c.bf16 %v2693, %v2692
          %v2709 = vpack.c.bf16 %v2695, %v2694
          %v2710 = vpack.c.bf16 %v2697, %v2696
          %v2711 = vpack.c.bf16 %v2699, %v2698
          %v2712 = vpack.c.bf16 %v2701, %v2700
          %v2713 = vpack.c.bf16 %v2703, %v2702
          %v2714 = vpack.c.bf16 %v2705, %v2704
          %v2715 = vpack.c.bf16 %v2707, %v2706
          %v2716 = vld [vmem:[#allocation10 + $0x80] sm:$0xf]
          %v2717 = vld [vmem:[#allocation10 + $0x84] sm:$0xf]
          %v2718 = vld [vmem:[#allocation10 + $0x88] sm:$0xf]
          %v2719 = vld [vmem:[#allocation10 + $0x8c] sm:$0xf]
          %v2720 = vld [vmem:[#allocation10 + $0x90] sm:$0xf]
          %v2721 = vld [vmem:[#allocation10 + $0x94] sm:$0xf]
          %v2722 = vld [vmem:[#allocation10 + $0x98] sm:$0xf]
          %v2723 = vld [vmem:[#allocation10 + $0x9c] sm:$0xf]
          %v2724 = vld [vmem:[#allocation10 + $0xa0] sm:$0xf]
          %v2725 = vld [vmem:[#allocation10 + $0xa4] sm:$0xf]
          %v2726 = vld [vmem:[#allocation10 + $0xa8] sm:$0xf]
          %v2727 = vld [vmem:[#allocation10 + $0xac] sm:$0xf]
          %v2728 = vld [vmem:[#allocation10 + $0xb0] sm:$0xf]
          %v2729 = vld [vmem:[#allocation10 + $0xb4] sm:$0xf]
          %v2730 = vld [vmem:[#allocation10 + $0xb8] sm:$0xf]
          %v2731 = vld [vmem:[#allocation10 + $0xbc] sm:$0xf]
          %v2748 = vunpack.c.l.b16 %v2716
          %v2749 = vunpack.c.l.b16 %v2717
          %v2750 = vunpack.c.l.b16 %v2718
          %v2751 = vunpack.c.l.b16 %v2719
          %v2752 = vunpack.c.l.b16 %v2720
          %v2753 = vunpack.c.l.b16 %v2721
          %v2754 = vunpack.c.l.b16 %v2722
          %v2755 = vunpack.c.l.b16 %v2723
          %v2756 = vunpack.c.l.b16 %v2724
          %v2757 = vunpack.c.l.b16 %v2725
          %v2758 = vunpack.c.l.b16 %v2726
          %v2759 = vunpack.c.l.b16 %v2727
          %v2760 = vunpack.c.l.b16 %v2728
          %v2761 = vunpack.c.l.b16 %v2729
          %v2762 = vunpack.c.l.b16 %v2730
          %v2763 = vunpack.c.l.b16 %v2731
          %v2764 = vpack.c.b16 %v2749, %v2748
          %v2765 = vpack.c.b16 %v2751, %v2750
          %v2766 = vpack.c.b16 %v2753, %v2752
          %v2767 = vpack.c.b16 %v2755, %v2754
          %v2768 = vpack.c.b16 %v2757, %v2756
          %v2769 = vpack.c.b16 %v2759, %v2758
          %v2770 = vpack.c.b16 %v2761, %v2760
          %v2771 = vpack.c.b16 %v2763, %v2762
          %2780 = vmatprep.subr.bf16.mxu0 0
          %2781 = vmatpush1.bf16.msra.mxu0 %v2764
          %2782 = vmatprep.subr.bf16.mxu0 0
          %2783 = vmatpush1.bf16.msra.mxu0 %v2765
          %2784 = vmatprep.subr.bf16.mxu0 0
          %2785 = vmatpush1.bf16.msra.mxu0 %v2766
          %2786 = vmatprep.subr.bf16.mxu0 0
          %2787 = vmatpush1.bf16.msra.mxu0 %v2767
          %2788 = vmatprep.subr.bf16.mxu0 0
          %2789 = vmatpush1.bf16.msra.mxu0 %v2768
          %2790 = vmatprep.subr.bf16.mxu0 0
          %2791 = vmatpush1.bf16.msra.mxu0 %v2769
          %2792 = vmatprep.subr.bf16.mxu0 0
          %2793 = vmatpush1.bf16.msra.mxu0 %v2770
          %2794 = vmatprep.subr.bf16.mxu0 0
          %2795 = vmatpush1.bf16.msra.mxu0 %v2771
          %2796 = vmatprep.subr.bf16.mxu0 0
          %2797 = vmatpush1.bf16.msra.mxu0 0
          %2798 = vmatprep.subr.bf16.mxu0 0
          %2799 = vmatpush1.bf16.msra.mxu0 0
          %2800 = vmatprep.subr.bf16.mxu0 0
          %2801 = vmatpush1.bf16.msra.mxu0 0
          %2802 = vmatprep.subr.bf16.mxu0 0
          %2803 = vmatpush1.bf16.msra.mxu0 0
          %2804 = vmatprep.subr.bf16.mxu0 0
          %2805 = vmatpush1.bf16.msra.mxu0 0
          %2806 = vmatprep.subr.bf16.mxu0 0
          %2807 = vmatpush1.bf16.msra.mxu0 0
          %2808 = vmatprep.subr.bf16.mxu0 0
          %2809 = vmatpush1.bf16.msra.mxu0 0
          %2810 = vmatprep.subr.bf16.mxu0 0
          %2811 = vmatpush1.bf16.msra.mxu0 0
          %2812 = vmatprep.mubr.bf16.mxu0 0
          %2813 = vmatmul.mubr.bf16.gmra.mrb[0].mxu0 %v2708
          %v2814 = vpop.f32.mrb[0].mxu0
          %v2815 = vadd.f32 0.0, %v2814
          %v2816 = vpop.f32.mrb[0].mxu0
          %v2817 = vpop.f32.mrb[0].mxu0
          %v2818 = vadd.f32 0.0, %v2817
          %v2819 = vpop.f32.mrb[0].mxu0
          %2820 = vmatprep.mubr.bf16.mxu0 0
          %2821 = vmatmul.mubr.bf16.gmra.mrb[0].mxu0 %v2709
          %v2822 = vpop.f32.mrb[0].mxu0
          %v2823 = vadd.f32 0.0, %v2822
          %v2824 = vpop.f32.mrb[0].mxu0
          %v2825 = vpop.f32.mrb[0].mxu0
          %v2826 = vadd.f32 0.0, %v2825
          %v2827 = vpop.f32.mrb[0].mxu0
          %2828 = vmatprep.mubr.bf16.mxu0 0
          %2829 = vmatmul.mubr.bf16.gmra.mrb[0].mxu0 %v2710
          %v2830 = vpop.f32.mrb[0].mxu0
          %v2831 = vadd.f32 0.0, %v2830
          %v2832 = vpop.f32.mrb[0].mxu0
          %v2833 = vpop.f32.mrb[0].mxu0
          %v2834 = vadd.f32 0.0, %v2833
          %v2835 = vpop.f32.mrb[0].mxu0
          %2836 = vmatprep.mubr.bf16.mxu0 0
          %2837 = vmatmul.mubr.bf16.gmra.mrb[0].mxu0 %v2711
          %v2838 = vpop.f32.mrb[0].mxu0
          %v2839 = vadd.f32 0.0, %v2838
          %v2840 = vpop.f32.mrb[0].mxu0
          %v2841 = vpop.f32.mrb[0].mxu0
          %v2842 = vadd.f32 0.0, %v2841
          %v2843 = vpop.f32.mrb[0].mxu0
          %2844 = vmatprep.mubr.bf16.mxu0 0
          %2845 = vmatmul.mubr.bf16.gmra.mrb[0].mxu0 %v2712
          %v2846 = vpop.f32.mrb[0].mxu0
          %v2847 = vadd.f32 0.0, %v2846
          %v2848 = vpop.f32.mrb[0].mxu0
          %v2849 = vpop.f32.mrb[0].mxu0
          %v2850 = vadd.f32 0.0, %v2849
          %v2851 = vpop.f32.mrb[0].mxu0
          %2852 = vmatprep.mubr.bf16.mxu0 0
          %2853 = vmatmul.mubr.bf16.gmra.mrb[0].mxu0 %v2713
          %v2854 = vpop.f32.mrb[0].mxu0
          %v2855 = vadd.f32 0.0, %v2854
          %v2856 = vpop.f32.mrb[0].mxu0
          %v2857 = vpop.f32.mrb[0].mxu0
          %v2858 = vadd.f32 0.0, %v2857
          %v2859 = vpop.f32.mrb[0].mxu0
          %2860 = vmatprep.mubr.bf16.mxu0 0
          %2861 = vmatmul.mubr.bf16.gmra.mrb[0].mxu0 %v2714
          %v2862 = vpop.f32.mrb[0].mxu0
          %v2863 = vadd.f32 0.0, %v2862
          %v2864 = vpop.f32.mrb[0].mxu0
          %v2865 = vpop.f32.mrb[0].mxu0
          %v2866 = vadd.f32 0.0, %v2865
          %v2867 = vpop.f32.mrb[0].mxu0
          %2868 = vmatprep.mubr.bf16.mxu0 0
          %2869 = vmatmul.mubr.bf16.gmra.mrb[0].mxu0 %v2715
          %v2870 = vpop.f32.mrb[0].mxu0
          %v2871 = vadd.f32 0.0, %v2870
          %v2872 = vpop.f32.mrb[0].mxu0
          %v2873 = vpop.f32.mrb[0].mxu0
          %v2874 = vadd.f32 0.0, %v2873
          %v2875 = vpop.f32.mrb[0].mxu0
          %2876 = vdwg.mxu0
          %v2877 = vadd.f32 %v1979, %v2815
          %v2878 = vadd.f32 %v1982, %v2818
          %v2879 = vadd.f32 %v1987, %v2823
          %v2880 = vadd.f32 %v1990, %v2826
          %v2881 = vadd.f32 %v1995, %v2831
          %v2882 = vadd.f32 %v1998, %v2834
          %v2883 = vadd.f32 %v2003, %v2839
          %v2884 = vadd.f32 %v2006, %v2842
          %v2885 = vadd.f32 %v2011, %v2847
          %v2886 = vadd.f32 %v2014, %v2850
          %v2887 = vadd.f32 %v2019, %v2855
          %v2888 = vadd.f32 %v2022, %v2858
          %v2889 = vadd.f32 %v2027, %v2863
          %v2890 = vadd.f32 %v2030, %v2866
          %v2891 = vadd.f32 %v2035, %v2871
          %v2892 = vadd.f32 %v2038, %v2874
          %v2893 = vld [vmem:[#allocation12 + $0x80] sm:$0xf]
          %v2894 = vld [vmem:[#allocation12 + $0x84] sm:$0xf]
          %v2895 = vld [vmem:[#allocation12 + $0x88] sm:$0xf]
          %v2896 = vld [vmem:[#allocation12 + $0x8c] sm:$0xf]
          %v2897 = vld [vmem:[#allocation12 + $0x90] sm:$0xf]
          %v2898 = vld [vmem:[#allocation12 + $0x94] sm:$0xf]
          %v2899 = vld [vmem:[#allocation12 + $0x98] sm:$0xf]
          %v2900 = vld [vmem:[#allocation12 + $0x9c] sm:$0xf]
          %v2901 = vld [vmem:[#allocation12 + $0xa0] sm:$0xf]
          %v2902 = vld [vmem:[#allocation12 + $0xa4] sm:$0xf]
          %v2903 = vld [vmem:[#allocation12 + $0xa8] sm:$0xf]
          %v2904 = vld [vmem:[#allocation12 + $0xac] sm:$0xf]
          %v2905 = vld [vmem:[#allocation12 + $0xb0] sm:$0xf]
          %v2906 = vld [vmem:[#allocation12 + $0xb4] sm:$0xf]
          %v2907 = vld [vmem:[#allocation12 + $0xb8] sm:$0xf]
          %v2908 = vld [vmem:[#allocation12 + $0xbc] sm:$0xf]
          %v2925 = vunpack.c.l.b16 %v2893
          %v2926 = vunpack.c.l.b16 %v2894
          %v2927 = vunpack.c.l.b16 %v2895
          %v2928 = vunpack.c.l.b16 %v2896
          %v2929 = vunpack.c.l.b16 %v2897
          %v2930 = vunpack.c.l.b16 %v2898
          %v2931 = vunpack.c.l.b16 %v2899
          %v2932 = vunpack.c.l.b16 %v2900
          %v2933 = vunpack.c.l.b16 %v2901
          %v2934 = vunpack.c.l.b16 %v2902
          %v2935 = vunpack.c.l.b16 %v2903
          %v2936 = vunpack.c.l.b16 %v2904
          %v2937 = vunpack.c.l.b16 %v2905
          %v2938 = vunpack.c.l.b16 %v2906
          %v2939 = vunpack.c.l.b16 %v2907
          %v2940 = vunpack.c.l.b16 %v2908
          %v2941 = vpack.c.b16 %v2926, %v2925
          %v2942 = vpack.c.b16 %v2928, %v2927
          %v2943 = vpack.c.b16 %v2930, %v2929
          %v2944 = vpack.c.b16 %v2932, %v2931
          %v2945 = vpack.c.b16 %v2934, %v2933
          %v2946 = vpack.c.b16 %v2936, %v2935
          %v2947 = vpack.c.b16 %v2938, %v2937
          %v2948 = vpack.c.b16 %v2940, %v2939
          %2957 = vmatprep.subr.bf16.mxu0 0
          %2958 = vmatpush1.bf16.msra.mxu0 %v2941
          %2959 = vmatprep.subr.bf16.mxu0 0
          %2960 = vmatpush1.bf16.msra.mxu0 %v2942
          %2961 = vmatprep.subr.bf16.mxu0 0
          %2962 = vmatpush1.bf16.msra.mxu0 %v2943
          %2963 = vmatprep.subr.bf16.mxu0 0
          %2964 = vmatpush1.bf16.msra.mxu0 %v2944
          %2965 = vmatprep.subr.bf16.mxu0 0
          %2966 = vmatpush1.bf16.msra.mxu0 %v2945
          %2967 = vmatprep.subr.bf16.mxu0 0
          %2968 = vmatpush1.bf16.msra.mxu0 %v2946
          %2969 = vmatprep.subr.bf16.mxu0 0
          %2970 = vmatpush1.bf16.msra.mxu0 %v2947
          %2971 = vmatprep.subr.bf16.mxu0 0
          %2972 = vmatpush1.bf16.msra.mxu0 %v2948
          %2973 = vmatprep.subr.bf16.mxu0 0
          %2974 = vmatpush1.bf16.msra.mxu0 0
          %2975 = vmatprep.subr.bf16.mxu0 0
          %2976 = vmatpush1.bf16.msra.mxu0 0
          %2977 = vmatprep.subr.bf16.mxu0 0
          %2978 = vmatpush1.bf16.msra.mxu0 0
          %2979 = vmatprep.subr.bf16.mxu0 0
          %2980 = vmatpush1.bf16.msra.mxu0 0
          %2981 = vmatprep.subr.bf16.mxu0 0
          %2982 = vmatpush1.bf16.msra.mxu0 0
          %2983 = vmatprep.subr.bf16.mxu0 0
          %2984 = vmatpush1.bf16.msra.mxu0 0
          %2985 = vmatprep.subr.bf16.mxu0 0
          %2986 = vmatpush1.bf16.msra.mxu0 0
          %2987 = vmatprep.subr.bf16.mxu0 0
          %2988 = vmatpush1.bf16.msra.mxu0 0
          %2989 = vmatprep.mubr.bf16.mxu0 0
          %2990 = vmatmul.mubr.bf16.gmra.mrb[0].mxu0 %v2708
          %v2991 = vpop.f32.mrb[0].mxu0
          %v2992 = vadd.f32 0.0, %v2991
          %v2993 = vpop.f32.mrb[0].mxu0
          %v2994 = vpop.f32.mrb[0].mxu0
          %v2995 = vadd.f32 0.0, %v2994
          %v2996 = vpop.f32.mrb[0].mxu0
          %2997 = vmatprep.mubr.bf16.mxu0 0
          %2998 = vmatmul.mubr.bf16.gmra.mrb[0].mxu0 %v2709
          %v2999 = vpop.f32.mrb[0].mxu0
          %v3000 = vadd.f32 0.0, %v2999
          %v3001 = vpop.f32.mrb[0].mxu0
          %v3002 = vpop.f32.mrb[0].mxu0
          %v3003 = vadd.f32 0.0, %v3002
          %v3004 = vpop.f32.mrb[0].mxu0
          %3005 = vmatprep.mubr.bf16.mxu0 0
          %3006 = vmatmul.mubr.bf16.gmra.mrb[0].mxu0 %v2710
          %v3007 = vpop.f32.mrb[0].mxu0
          %v3008 = vadd.f32 0.0, %v3007
          %v3009 = vpop.f32.mrb[0].mxu0
          %v3010 = vpop.f32.mrb[0].mxu0
          %v3011 = vadd.f32 0.0, %v3010
          %v3012 = vpop.f32.mrb[0].mxu0
          %3013 = vmatprep.mubr.bf16.mxu0 0
          %3014 = vmatmul.mubr.bf16.gmra.mrb[0].mxu0 %v2711
          %v3015 = vpop.f32.mrb[0].mxu0
          %v3016 = vadd.f32 0.0, %v3015
          %v3017 = vpop.f32.mrb[0].mxu0
          %v3018 = vpop.f32.mrb[0].mxu0
          %v3019 = vadd.f32 0.0, %v3018
          %v3020 = vpop.f32.mrb[0].mxu0
          %3021 = vmatprep.mubr.bf16.mxu0 0
          %3022 = vmatmul.mubr.bf16.gmra.mrb[0].mxu0 %v2712
          %v3023 = vpop.f32.mrb[0].mxu0
          %v3024 = vadd.f32 0.0, %v3023
          %v3025 = vpop.f32.mrb[0].mxu0
          %v3026 = vpop.f32.mrb[0].mxu0
          %v3027 = vadd.f32 0.0, %v3026
          %v3028 = vpop.f32.mrb[0].mxu0
          %3029 = vmatprep.mubr.bf16.mxu0 0
          %3030 = vmatmul.mubr.bf16.gmra.mrb[0].mxu0 %v2713
          %v3031 = vpop.f32.mrb[0].mxu0
          %v3032 = vadd.f32 0.0, %v3031
          %v3033 = vpop.f32.mrb[0].mxu0
          %v3034 = vpop.f32.mrb[0].mxu0
          %v3035 = vadd.f32 0.0, %v3034
          %v3036 = vpop.f32.mrb[0].mxu0
          %3037 = vmatprep.mubr.bf16.mxu0 0
          %3038 = vmatmul.mubr.bf16.gmra.mrb[0].mxu0 %v2714
          %v3039 = vpop.f32.mrb[0].mxu0
          %v3040 = vadd.f32 0.0, %v3039
          %v3041 = vpop.f32.mrb[0].mxu0
          %v3042 = vpop.f32.mrb[0].mxu0
          %v3043 = vadd.f32 0.0, %v3042
          %v3044 = vpop.f32.mrb[0].mxu0
          %3045 = vmatprep.mubr.bf16.mxu0 0
          %3046 = vmatmul.mubr.bf16.gmra.mrb[0].mxu0 %v2715
          %v3047 = vpop.f32.mrb[0].mxu0
          %v3048 = vadd.f32 0.0, %v3047
          %v3049 = vpop.f32.mrb[0].mxu0
          %v3050 = vpop.f32.mrb[0].mxu0
          %v3051 = vadd.f32 0.0, %v3050
          %v3052 = vpop.f32.mrb[0].mxu0
          %3053 = vdwg.mxu0
          %v3054 = vadd.f32 %v2285, %v2992
          %v3055 = vadd.f32 %v2288, %v2995
          %v3056 = vadd.f32 %v2293, %v3000
          %v3057 = vadd.f32 %v2296, %v3003
          %v3058 = vadd.f32 %v2301, %v3008
          %v3059 = vadd.f32 %v2304, %v3011
          %v3060 = vadd.f32 %v2309, %v3016
          %v3061 = vadd.f32 %v2312, %v3019
          %v3062 = vadd.f32 %v2317, %v3024
          %v3063 = vadd.f32 %v2320, %v3027
          %v3064 = vadd.f32 %v2325, %v3032
          %v3065 = vadd.f32 %v2328, %v3035
          %v3066 = vadd.f32 %v2333, %v3040
          %v3067 = vadd.f32 %v2336, %v3043
          %v3068 = vadd.f32 %v2341, %v3048
          %v3069 = vadd.f32 %v2344, %v3051
          %v3070 = vld [vmem:[#allocation7 + $0xc] sm:$0xf]
          %v3071 = vld [vmem:[#allocation7 + $0x1c] sm:$0xf]
          %v3072 = vld [vmem:[#allocation7 + $0x2c] sm:$0xf]
          %v3073 = vld [vmem:[#allocation7 + $0x3c] sm:$0xf]
          %v3074 = vld [vmem:[#allocation7 + $0x4c] sm:$0xf]
          %v3075 = vld [vmem:[#allocation7 + $0x5c] sm:$0xf]
          %v3076 = vld [vmem:[#allocation7 + $0x6c] sm:$0xf]
          %v3077 = vld [vmem:[#allocation7 + $0x7c] sm:$0xf]
          %v3078 = vld [vmem:[#allocation7 + $0x8c] sm:$0xf]
          %v3079 = vld [vmem:[#allocation7 + $0x9c] sm:$0xf]
          %v3080 = vld [vmem:[#allocation7 + $0xac] sm:$0xf]
          %v3081 = vld [vmem:[#allocation7 + $0xbc] sm:$0xf]
          %v3082 = vld [vmem:[#allocation7 + $0xcc] sm:$0xf]
          %v3083 = vld [vmem:[#allocation7 + $0xdc] sm:$0xf]
          %v3084 = vld [vmem:[#allocation7 + $0xec] sm:$0xf]
          %v3085 = vld [vmem:[#allocation7 + $0xfc] sm:$0xf]
          %v3086 = vld [vmem:[#allocation9 + $0xc] sm:$0xf]
          %v3087 = vld [vmem:[#allocation9 + $0x1c] sm:$0xf]
          %v3088 = vld [vmem:[#allocation9 + $0x2c] sm:$0xf]
          %v3089 = vld [vmem:[#allocation9 + $0x3c] sm:$0xf]
          %v3090 = vld [vmem:[#allocation9 + $0x4c] sm:$0xf]
          %v3091 = vld [vmem:[#allocation9 + $0x5c] sm:$0xf]
          %v3092 = vld [vmem:[#allocation9 + $0x6c] sm:$0xf]
          %v3093 = vld [vmem:[#allocation9 + $0x7c] sm:$0xf]
          %v3094 = vld [vmem:[#allocation9 + $0x8c] sm:$0xf]
          %v3095 = vld [vmem:[#allocation9 + $0x9c] sm:$0xf]
          %v3096 = vld [vmem:[#allocation9 + $0xac] sm:$0xf]
          %v3097 = vld [vmem:[#allocation9 + $0xbc] sm:$0xf]
          %v3098 = vld [vmem:[#allocation9 + $0xcc] sm:$0xf]
          %v3099 = vld [vmem:[#allocation9 + $0xdc] sm:$0xf]
          %v3100 = vld [vmem:[#allocation9 + $0xec] sm:$0xf]
          %v3101 = vld [vmem:[#allocation9 + $0xfc] sm:$0xf]
          %v3118 = vunpack.c.l.b16 %v3086
          %v3119 = vunpack.c.l.b16 %v3087
          %v3120 = vunpack.c.l.b16 %v3088
          %v3121 = vunpack.c.l.b16 %v3089
          %v3122 = vunpack.c.l.b16 %v3090
          %v3123 = vunpack.c.l.b16 %v3091
          %v3124 = vunpack.c.l.b16 %v3092
          %v3125 = vunpack.c.l.b16 %v3093
          %v3126 = vunpack.c.l.b16 %v3094
          %v3127 = vunpack.c.l.b16 %v3095
          %v3128 = vunpack.c.l.b16 %v3096
          %v3129 = vunpack.c.l.b16 %v3097
          %v3130 = vunpack.c.l.b16 %v3098
          %v3131 = vunpack.c.l.b16 %v3099
          %v3132 = vunpack.c.l.b16 %v3100
          %v3133 = vunpack.c.l.b16 %v3101
          %v3134 = vpack.c.b16 %v3119, %v3118
          %v3135 = vpack.c.b16 %v3121, %v3120
          %v3136 = vpack.c.b16 %v3123, %v3122
          %v3137 = vpack.c.b16 %v3125, %v3124
          %v3138 = vpack.c.b16 %v3127, %v3126
          %v3139 = vpack.c.b16 %v3129, %v3128
          %v3140 = vpack.c.b16 %v3131, %v3130
          %v3141 = vpack.c.b16 %v3133, %v3132
          %3150 = vmatprep.subr.bf16.mxu0 0
          %3151 = vmatpush1.bf16.msra.mxu0 %v3134
          %3152 = vmatprep.subr.bf16.mxu0 0
          %3153 = vmatpush1.bf16.msra.mxu0 %v3135
          %3154 = vmatprep.subr.bf16.mxu0 0
          %3155 = vmatpush1.bf16.msra.mxu0 %v3136
          %3156 = vmatprep.subr.bf16.mxu0 0
          %3157 = vmatpush1.bf16.msra.mxu0 %v3137
          %3158 = vmatprep.subr.bf16.mxu0 0
          %3159 = vmatpush1.bf16.msra.mxu0 %v3138
          %3160 = vmatprep.subr.bf16.mxu0 0
          %3161 = vmatpush1.bf16.msra.mxu0 %v3139
          %3162 = vmatprep.subr.bf16.mxu0 0
          %3163 = vmatpush1.bf16.msra.mxu0 %v3140
          %3164 = vmatprep.subr.bf16.mxu0 0
          %3165 = vmatpush1.bf16.msra.mxu0 %v3141
          %3166 = vmatprep.subr.bf16.mxu0 0
          %3167 = vmatpush1.bf16.msra.mxu0 0
          %3168 = vmatprep.subr.bf16.mxu0 0
          %3169 = vmatpush1.bf16.msra.mxu0 0
          %3170 = vmatprep.subr.bf16.mxu0 0
          %3171 = vmatpush1.bf16.msra.mxu0 0
          %3172 = vmatprep.subr.bf16.mxu0 0
          %3173 = vmatpush1.bf16.msra.mxu0 0
          %3174 = vmatprep.subr.bf16.mxu0 0
          %3175 = vmatpush1.bf16.msra.mxu0 0
          %3176 = vmatprep.subr.bf16.mxu0 0
          %3177 = vmatpush1.bf16.msra.mxu0 0
          %3178 = vmatprep.subr.bf16.mxu0 0
          %3179 = vmatpush1.bf16.msra.mxu0 0
          %3180 = vmatprep.subr.bf16.mxu0 0
          %3181 = vmatpush1.bf16.msra.mxu0 0
          %3182 = vmatprep.mubr.bf16.mxu0 0
          %3183 = vmatmul.mubr.bf16.gmra.mrb[0].mxu0 %v981
          %v3184 = vpop.f32.mrb[0].mxu0
          %v3185 = vadd.f32 0.0, %v3184
          %v3186 = vpop.f32.mrb[0].mxu0
          %v3187 = vpop.f32.mrb[0].mxu0
          %v3188 = vadd.f32 0.0, %v3187
          %v3189 = vpop.f32.mrb[0].mxu0
          %3190 = vmatprep.mubr.bf16.mxu0 0
          %3191 = vmatmul.mubr.bf16.gmra.mrb[0].mxu0 %v982
          %v3192 = vpop.f32.mrb[0].mxu0
          %v3193 = vadd.f32 0.0, %v3192
          %v3194 = vpop.f32.mrb[0].mxu0
          %v3195 = vpop.f32.mrb[0].mxu0
          %v3196 = vadd.f32 0.0, %v3195
          %v3197 = vpop.f32.mrb[0].mxu0
          %3198 = vmatprep.mubr.bf16.mxu0 0
          %3199 = vmatmul.mubr.bf16.gmra.mrb[0].mxu0 %v983
          %v3200 = vpop.f32.mrb[0].mxu0
          %v3201 = vadd.f32 0.0, %v3200
          %v3202 = vpop.f32.mrb[0].mxu0
          %v3203 = vpop.f32.mrb[0].mxu0
          %v3204 = vadd.f32 0.0, %v3203
          %v3205 = vpop.f32.mrb[0].mxu0
          %3206 = vmatprep.mubr.bf16.mxu0 0
          %3207 = vmatmul.mubr.bf16.gmra.mrb[0].mxu0 %v984
          %v3208 = vpop.f32.mrb[0].mxu0
          %v3209 = vadd.f32 0.0, %v3208
          %v3210 = vpop.f32.mrb[0].mxu0
          %v3211 = vpop.f32.mrb[0].mxu0
          %v3212 = vadd.f32 0.0, %v3211
          %v3213 = vpop.f32.mrb[0].mxu0
          %3214 = vmatprep.mubr.bf16.mxu0 0
          %3215 = vmatmul.mubr.bf16.gmra.mrb[0].mxu0 %v985
          %v3216 = vpop.f32.mrb[0].mxu0
          %v3217 = vadd.f32 0.0, %v3216
          %v3218 = vpop.f32.mrb[0].mxu0
          %v3219 = vpop.f32.mrb[0].mxu0
          %v3220 = vadd.f32 0.0, %v3219
          %v3221 = vpop.f32.mrb[0].mxu0
          %3222 = vmatprep.mubr.bf16.mxu0 0
          %3223 = vmatmul.mubr.bf16.gmra.mrb[0].mxu0 %v986
          %v3224 = vpop.f32.mrb[0].mxu0
          %v3225 = vadd.f32 0.0, %v3224
          %v3226 = vpop.f32.mrb[0].mxu0
          %v3227 = vpop.f32.mrb[0].mxu0
          %v3228 = vadd.f32 0.0, %v3227
          %v3229 = vpop.f32.mrb[0].mxu0
          %3230 = vmatprep.mubr.bf16.mxu0 0
          %3231 = vmatmul.mubr.bf16.gmra.mrb[0].mxu0 %v987
          %v3232 = vpop.f32.mrb[0].mxu0
          %v3233 = vadd.f32 0.0, %v3232
          %v3234 = vpop.f32.mrb[0].mxu0
          %v3235 = vpop.f32.mrb[0].mxu0
          %v3236 = vadd.f32 0.0, %v3235
          %v3237 = vpop.f32.mrb[0].mxu0
          %3238 = vmatprep.mubr.bf16.mxu0 0
          %3239 = vmatmul.mubr.bf16.gmra.mrb[0].mxu0 %v988
          %v3240 = vpop.f32.mrb[0].mxu0
          %v3241 = vadd.f32 0.0, %v3240
          %v3242 = vpop.f32.mrb[0].mxu0
          %v3243 = vpop.f32.mrb[0].mxu0
          %v3244 = vadd.f32 0.0, %v3243
          %v3245 = vpop.f32.mrb[0].mxu0
          %3246 = vdwg.mxu0
          %v3263 = vunpack.c.l.b16 %v3070
          %v3264 = vunpack.c.l.b16 %v3071
          %v3265 = vunpack.c.l.b16 %v3072
          %v3266 = vunpack.c.l.b16 %v3073
          %v3267 = vunpack.c.l.b16 %v3074
          %v3268 = vunpack.c.l.b16 %v3075
          %v3269 = vunpack.c.l.b16 %v3076
          %v3270 = vunpack.c.l.b16 %v3077
          %v3271 = vunpack.c.l.b16 %v3078
          %v3272 = vunpack.c.l.b16 %v3079
          %v3273 = vunpack.c.l.b16 %v3080
          %v3274 = vunpack.c.l.b16 %v3081
          %v3275 = vunpack.c.l.b16 %v3082
          %v3276 = vunpack.c.l.b16 %v3083
          %v3277 = vunpack.c.l.b16 %v3084
          %v3278 = vunpack.c.l.b16 %v3085
          %v3279 = vpack.c.b16 %v3264, %v3263
          %v3280 = vpack.c.b16 %v3266, %v3265
          %v3281 = vpack.c.b16 %v3268, %v3267
          %v3282 = vpack.c.b16 %v3270, %v3269
          %v3283 = vpack.c.b16 %v3272, %v3271
          %v3284 = vpack.c.b16 %v3274, %v3273
          %v3285 = vpack.c.b16 %v3276, %v3275
          %v3286 = vpack.c.b16 %v3278, %v3277
          %3295 = vmatprep.subr.bf16.mxu0 0
          %3296 = vmatpush1.bf16.msra.mxu0 %v3279
          %3297 = vmatprep.subr.bf16.mxu0 0
          %3298 = vmatpush1.bf16.msra.mxu0 %v3280
          %3299 = vmatprep.subr.bf16.mxu0 0
          %3300 = vmatpush1.bf16.msra.mxu0 %v3281
          %3301 = vmatprep.subr.bf16.mxu0 0
          %3302 = vmatpush1.bf16.msra.mxu0 %v3282
          %3303 = vmatprep.subr.bf16.mxu0 0
          %3304 = vmatpush1.bf16.msra.mxu0 %v3283
          %3305 = vmatprep.subr.bf16.mxu0 0
          %3306 = vmatpush1.bf16.msra.mxu0 %v3284
          %3307 = vmatprep.subr.bf16.mxu0 0
          %3308 = vmatpush1.bf16.msra.mxu0 %v3285
          %3309 = vmatprep.subr.bf16.mxu0 0
          %3310 = vmatpush1.bf16.msra.mxu0 %v3286
          %3311 = vmatprep.subr.bf16.mxu0 0
          %3312 = vmatpush1.bf16.msra.mxu0 0
          %3313 = vmatprep.subr.bf16.mxu0 0
          %3314 = vmatpush1.bf16.msra.mxu0 0
          %3315 = vmatprep.subr.bf16.mxu0 0
          %3316 = vmatpush1.bf16.msra.mxu0 0
          %3317 = vmatprep.subr.bf16.mxu0 0
          %3318 = vmatpush1.bf16.msra.mxu0 0
          %3319 = vmatprep.subr.bf16.mxu0 0
          %3320 = vmatpush1.bf16.msra.mxu0 0
          %3321 = vmatprep.subr.bf16.mxu0 0
          %3322 = vmatpush1.bf16.msra.mxu0 0
          %3323 = vmatprep.subr.bf16.mxu0 0
          %3324 = vmatpush1.bf16.msra.mxu0 0
          %3325 = vmatprep.subr.bf16.mxu0 0
          %3326 = vmatpush1.bf16.msra.mxu0 0
          %3327 = vmatprep.mubr.bf16.mxu0 0
          %3328 = vmatmul.mubr.bf16.gmra.mrb[0].mxu0 %v889
          %v3329 = vpop.f32.mrb[0].mxu0
          %v3330 = vadd.f32 %v3185, %v3329
          %v3331 = vpop.f32.mrb[0].mxu0
          %v3332 = vpop.f32.mrb[0].mxu0
          %v3333 = vadd.f32 %v3188, %v3332
          %v3334 = vpop.f32.mrb[0].mxu0
          %3335 = vmatprep.mubr.bf16.mxu0 0
          %3336 = vmatmul.mubr.bf16.gmra.mrb[0].mxu0 %v890
          %v3337 = vpop.f32.mrb[0].mxu0
          %v3338 = vadd.f32 %v3193, %v3337
          %v3339 = vpop.f32.mrb[0].mxu0
          %v3340 = vpop.f32.mrb[0].mxu0
          %v3341 = vadd.f32 %v3196, %v3340
          %v3342 = vpop.f32.mrb[0].mxu0
          %3343 = vmatprep.mubr.bf16.mxu0 0
          %3344 = vmatmul.mubr.bf16.gmra.mrb[0].mxu0 %v891
          %v3345 = vpop.f32.mrb[0].mxu0
          %v3346 = vadd.f32 %v3201, %v3345
          %v3347 = vpop.f32.mrb[0].mxu0
          %v3348 = vpop.f32.mrb[0].mxu0
          %v3349 = vadd.f32 %v3204, %v3348
          %v3350 = vpop.f32.mrb[0].mxu0
          %3351 = vmatprep.mubr.bf16.mxu0 0
          %3352 = vmatmul.mubr.bf16.gmra.mrb[0].mxu0 %v892
          %v3353 = vpop.f32.mrb[0].mxu0
          %v3354 = vadd.f32 %v3209, %v3353
          %v3355 = vpop.f32.mrb[0].mxu0
          %v3356 = vpop.f32.mrb[0].mxu0
          %v3357 = vadd.f32 %v3212, %v3356
          %v3358 = vpop.f32.mrb[0].mxu0
          %3359 = vmatprep.mubr.bf16.mxu0 0
          %3360 = vmatmul.mubr.bf16.gmra.mrb[0].mxu0 %v893
          %v3361 = vpop.f32.mrb[0].mxu0
          %v3362 = vadd.f32 %v3217, %v3361
          %v3363 = vpop.f32.mrb[0].mxu0
          %v3364 = vpop.f32.mrb[0].mxu0
          %v3365 = vadd.f32 %v3220, %v3364
          %v3366 = vpop.f32.mrb[0].mxu0
          %3367 = vmatprep.mubr.bf16.mxu0 0
          %3368 = vmatmul.mubr.bf16.gmra.mrb[0].mxu0 %v894
          %v3369 = vpop.f32.mrb[0].mxu0
          %v3370 = vadd.f32 %v3225, %v3369
          %v3371 = vpop.f32.mrb[0].mxu0
          %v3372 = vpop.f32.mrb[0].mxu0
          %v3373 = vadd.f32 %v3228, %v3372
          %v3374 = vpop.f32.mrb[0].mxu0
          %3375 = vmatprep.mubr.bf16.mxu0 0
          %3376 = vmatmul.mubr.bf16.gmra.mrb[0].mxu0 %v895
          %v3377 = vpop.f32.mrb[0].mxu0
          %v3378 = vadd.f32 %v3233, %v3377
          %v3379 = vpop.f32.mrb[0].mxu0
          %v3380 = vpop.f32.mrb[0].mxu0
          %v3381 = vadd.f32 %v3236, %v3380
          %v3382 = vpop.f32.mrb[0].mxu0
          %3383 = vmatprep.mubr.bf16.mxu0 0
          %3384 = vmatmul.mubr.bf16.gmra.mrb[0].mxu0 %v896
          %v3385 = vpop.f32.mrb[0].mxu0
          %v3386 = vadd.f32 %v3241, %v3385
          %v3387 = vpop.f32.mrb[0].mxu0
          %v3388 = vpop.f32.mrb[0].mxu0
          %v3389 = vadd.f32 %v3244, %v3388
          %v3390 = vpop.f32.mrb[0].mxu0
          %3391 = vdwg.mxu0
          %v3392 = vld [vmem:[%s5 + $0x3] sm:$0x1]
          %v3394 = vlaneseq
          %v3395 = vshrl.u32 %v3394, 7
          %v3396 = vsub.s32 0, %v3395
          %v3397 = vrot.slane %v3392, %v3396
          %v3399 = vadd.f32 %v3330, %v3397
          %v3400 = vadd.f32 %v3333, %v3397
          %v3401 = vadd.f32 %v3338, %v3397
          %v3402 = vadd.f32 %v3341, %v3397
          %v3403 = vadd.f32 %v3346, %v3397
          %v3404 = vadd.f32 %v3349, %v3397
          %v3405 = vadd.f32 %v3354, %v3397
          %v3406 = vadd.f32 %v3357, %v3397
          %v3407 = vadd.f32 %v3362, %v3397
          %v3408 = vadd.f32 %v3365, %v3397
          %v3409 = vadd.f32 %v3370, %v3397
          %v3410 = vadd.f32 %v3373, %v3397
          %v3411 = vadd.f32 %v3378, %v3397
          %v3412 = vadd.f32 %v3381, %v3397
          %v3413 = vadd.f32 %v3386, %v3397
          %v3414 = vadd.f32 %v3389, %v3397
          %v3415 = vmax.f32 %v3399, 0.0
          %v3416 = vmax.f32 %v3400, 0.0
          %v3417 = vmax.f32 %v3401, 0.0
          %v3418 = vmax.f32 %v3402, 0.0
          %v3419 = vmax.f32 %v3403, 0.0
          %v3420 = vmax.f32 %v3404, 0.0
          %v3421 = vmax.f32 %v3405, 0.0
          %v3422 = vmax.f32 %v3406, 0.0
          %v3423 = vmax.f32 %v3407, 0.0
          %v3424 = vmax.f32 %v3408, 0.0
          %v3425 = vmax.f32 %v3409, 0.0
          %v3426 = vmax.f32 %v3410, 0.0
          %v3427 = vmax.f32 %v3411, 0.0
          %v3428 = vmax.f32 %v3412, 0.0
          %v3429 = vmax.f32 %v3413, 0.0
          %v3430 = vmax.f32 %v3414, 0.0
          %v3431 = vpack.c.bf16 %v3416, %v3415
          %v3432 = vpack.c.bf16 %v3418, %v3417
          %v3433 = vpack.c.bf16 %v3420, %v3419
          %v3434 = vpack.c.bf16 %v3422, %v3421
          %v3435 = vpack.c.bf16 %v3424, %v3423
          %v3436 = vpack.c.bf16 %v3426, %v3425
          %v3437 = vpack.c.bf16 %v3428, %v3427
          %v3438 = vpack.c.bf16 %v3430, %v3429
          %v3439 = vld [vmem:[#allocation10 + $0xc0] sm:$0xf]
          %v3440 = vld [vmem:[#allocation10 + $0xc4] sm:$0xf]
          %v3441 = vld [vmem:[#allocation10 + $0xc8] sm:$0xf]
          %v3442 = vld [vmem:[#allocation10 + $0xcc] sm:$0xf]
          %v3443 = vld [vmem:[#allocation10 + $0xd0] sm:$0xf]
          %v3444 = vld [vmem:[#allocation10 + $0xd4] sm:$0xf]
          %v3445 = vld [vmem:[#allocation10 + $0xd8] sm:$0xf]
          %v3446 = vld [vmem:[#allocation10 + $0xdc] sm:$0xf]
          %v3447 = vld [vmem:[#allocation10 + $0xe0] sm:$0xf]
          %v3448 = vld [vmem:[#allocation10 + $0xe4] sm:$0xf]
          %v3449 = vld [vmem:[#allocation10 + $0xe8] sm:$0xf]
          %v3450 = vld [vmem:[#allocation10 + $0xec] sm:$0xf]
          %v3451 = vld [vmem:[#allocation10 + $0xf0] sm:$0xf]
          %v3452 = vld [vmem:[#allocation10 + $0xf4] sm:$0xf]
          %v3453 = vld [vmem:[#allocation10 + $0xf8] sm:$0xf]
          %v3454 = vld [vmem:[#allocation10 + $0xfc] sm:$0xf]
          %v3471 = vunpack.c.l.b16 %v3439
          %v3472 = vunpack.c.l.b16 %v3440
          %v3473 = vunpack.c.l.b16 %v3441
          %v3474 = vunpack.c.l.b16 %v3442
          %v3475 = vunpack.c.l.b16 %v3443
          %v3476 = vunpack.c.l.b16 %v3444
          %v3477 = vunpack.c.l.b16 %v3445
          %v3478 = vunpack.c.l.b16 %v3446
          %v3479 = vunpack.c.l.b16 %v3447
          %v3480 = vunpack.c.l.b16 %v3448
          %v3481 = vunpack.c.l.b16 %v3449
          %v3482 = vunpack.c.l.b16 %v3450
          %v3483 = vunpack.c.l.b16 %v3451
          %v3484 = vunpack.c.l.b16 %v3452
          %v3485 = vunpack.c.l.b16 %v3453
          %v3486 = vunpack.c.l.b16 %v3454
          %v3487 = vpack.c.b16 %v3472, %v3471
          %v3488 = vpack.c.b16 %v3474, %v3473
          %v3489 = vpack.c.b16 %v3476, %v3475
          %v3490 = vpack.c.b16 %v3478, %v3477
          %v3491 = vpack.c.b16 %v3480, %v3479
          %v3492 = vpack.c.b16 %v3482, %v3481
          %v3493 = vpack.c.b16 %v3484, %v3483
          %v3494 = vpack.c.b16 %v3486, %v3485
          %3503 = vmatprep.subr.bf16.mxu0 0
          %3504 = vmatpush1.bf16.msra.mxu0 %v3487
          %3505 = vmatprep.subr.bf16.mxu0 0
          %3506 = vmatpush1.bf16.msra.mxu0 %v3488
          %3507 = vmatprep.subr.bf16.mxu0 0
          %3508 = vmatpush1.bf16.msra.mxu0 %v3489
          %3509 = vmatprep.subr.bf16.mxu0 0
          %3510 = vmatpush1.bf16.msra.mxu0 %v3490
          %3511 = vmatprep.subr.bf16.mxu0 0
          %3512 = vmatpush1.bf16.msra.mxu0 %v3491
          %3513 = vmatprep.subr.bf16.mxu0 0
          %3514 = vmatpush1.bf16.msra.mxu0 %v3492
          %3515 = vmatprep.subr.bf16.mxu0 0
          %3516 = vmatpush1.bf16.msra.mxu0 %v3493
          %3517 = vmatprep.subr.bf16.mxu0 0
          %3518 = vmatpush1.bf16.msra.mxu0 %v3494
          %3519 = vmatprep.subr.bf16.mxu0 0
          %3520 = vmatpush1.bf16.msra.mxu0 0
          %3521 = vmatprep.subr.bf16.mxu0 0
          %3522 = vmatpush1.bf16.msra.mxu0 0
          %3523 = vmatprep.subr.bf16.mxu0 0
          %3524 = vmatpush1.bf16.msra.mxu0 0
          %3525 = vmatprep.subr.bf16.mxu0 0
          %3526 = vmatpush1.bf16.msra.mxu0 0
          %3527 = vmatprep.subr.bf16.mxu0 0
          %3528 = vmatpush1.bf16.msra.mxu0 0
          %3529 = vmatprep.subr.bf16.mxu0 0
          %3530 = vmatpush1.bf16.msra.mxu0 0
          %3531 = vmatprep.subr.bf16.mxu0 0
          %3532 = vmatpush1.bf16.msra.mxu0 0
          %3533 = vmatprep.subr.bf16.mxu0 0
          %3534 = vmatpush1.bf16.msra.mxu0 0
          %3535 = vmatprep.mubr.bf16.mxu0 0
          %3536 = vmatmul.mubr.bf16.gmra.mrb[0].mxu0 %v3431
          %v3537 = vpop.f32.mrb[0].mxu0
          %v3538 = vadd.f32 0.0, %v3537
          %v3539 = vpop.f32.mrb[0].mxu0
          %v3540 = vpop.f32.mrb[0].mxu0
          %v3541 = vadd.f32 0.0, %v3540
          %v3542 = vpop.f32.mrb[0].mxu0
          %3543 = vmatprep.mubr.bf16.mxu0 0
          %3544 = vmatmul.mubr.bf16.gmra.mrb[0].mxu0 %v3432
          %v3545 = vpop.f32.mrb[0].mxu0
          %v3546 = vadd.f32 0.0, %v3545
          %v3547 = vpop.f32.mrb[0].mxu0
          %v3548 = vpop.f32.mrb[0].mxu0
          %v3549 = vadd.f32 0.0, %v3548
          %v3550 = vpop.f32.mrb[0].mxu0
          %3551 = vmatprep.mubr.bf16.mxu0 0
          %3552 = vmatmul.mubr.bf16.gmra.mrb[0].mxu0 %v3433
          %v3553 = vpop.f32.mrb[0].mxu0
          %v3554 = vadd.f32 0.0, %v3553
          %v3555 = vpop.f32.mrb[0].mxu0
          %v3556 = vpop.f32.mrb[0].mxu0
          %v3557 = vadd.f32 0.0, %v3556
          %v3558 = vpop.f32.mrb[0].mxu0
          %3559 = vmatprep.mubr.bf16.mxu0 0
          %3560 = vmatmul.mubr.bf16.gmra.mrb[0].mxu0 %v3434
          %v3561 = vpop.f32.mrb[0].mxu0
          %v3562 = vadd.f32 0.0, %v3561
          %v3563 = vpop.f32.mrb[0].mxu0
          %v3564 = vpop.f32.mrb[0].mxu0
          %v3565 = vadd.f32 0.0, %v3564
          %v3566 = vpop.f32.mrb[0].mxu0
          %3567 = vmatprep.mubr.bf16.mxu0 0
          %3568 = vmatmul.mubr.bf16.gmra.mrb[0].mxu0 %v3435
          %v3569 = vpop.f32.mrb[0].mxu0
          %v3570 = vadd.f32 0.0, %v3569
          %v3571 = vpop.f32.mrb[0].mxu0
          %v3572 = vpop.f32.mrb[0].mxu0
          %v3573 = vadd.f32 0.0, %v3572
          %v3574 = vpop.f32.mrb[0].mxu0
          %3575 = vmatprep.mubr.bf16.mxu0 0
          %3576 = vmatmul.mubr.bf16.gmra.mrb[0].mxu0 %v3436
          %v3577 = vpop.f32.mrb[0].mxu0
          %v3578 = vadd.f32 0.0, %v3577
          %v3579 = vpop.f32.mrb[0].mxu0
          %v3580 = vpop.f32.mrb[0].mxu0
          %v3581 = vadd.f32 0.0, %v3580
          %v3582 = vpop.f32.mrb[0].mxu0
          %3583 = vmatprep.mubr.bf16.mxu0 0
          %3584 = vmatmul.mubr.bf16.gmra.mrb[0].mxu0 %v3437
          %v3585 = vpop.f32.mrb[0].mxu0
          %v3586 = vadd.f32 0.0, %v3585
          %v3587 = vpop.f32.mrb[0].mxu0
          %v3588 = vpop.f32.mrb[0].mxu0
          %v3589 = vadd.f32 0.0, %v3588
          %v3590 = vpop.f32.mrb[0].mxu0
          %3591 = vmatprep.mubr.bf16.mxu0 0
          %3592 = vmatmul.mubr.bf16.gmra.mrb[0].mxu0 %v3438
          %v3593 = vpop.f32.mrb[0].mxu0
          %v3594 = vadd.f32 0.0, %v3593
          %v3595 = vpop.f32.mrb[0].mxu0
          %v3596 = vpop.f32.mrb[0].mxu0
          %v3597 = vadd.f32 0.0, %v3596
          %v3598 = vpop.f32.mrb[0].mxu0
          %3599 = vdwg.mxu0
          %v3600 = vadd.f32 %v2877, %v3538
          %v3601 = vadd.f32 %v2878, %v3541
          %v3602 = vadd.f32 %v2879, %v3546
          %v3603 = vadd.f32 %v2880, %v3549
          %v3604 = vadd.f32 %v2881, %v3554
          %v3605 = vadd.f32 %v2882, %v3557
          %v3606 = vadd.f32 %v2883, %v3562
          %v3607 = vadd.f32 %v2884, %v3565
          %v3608 = vadd.f32 %v2885, %v3570
          %v3609 = vadd.f32 %v2886, %v3573
          %v3610 = vadd.f32 %v2887, %v3578
          %v3611 = vadd.f32 %v2888, %v3581
          %v3612 = vadd.f32 %v2889, %v3586
          %v3613 = vadd.f32 %v2890, %v3589
          %v3614 = vadd.f32 %v2891, %v3594
          %v3615 = vadd.f32 %v2892, %v3597
          %v3616 = vld [vmem:[#allocation12 + $0xc0] sm:$0xf]
          %v3617 = vld [vmem:[#allocation12 + $0xc4] sm:$0xf]
          %v3618 = vld [vmem:[#allocation12 + $0xc8] sm:$0xf]
          %v3619 = vld [vmem:[#allocation12 + $0xcc] sm:$0xf]
          %v3620 = vld [vmem:[#allocation12 + $0xd0] sm:$0xf]
          %v3621 = vld [vmem:[#allocation12 + $0xd4] sm:$0xf]
          %v3622 = vld [vmem:[#allocation12 + $0xd8] sm:$0xf]
          %v3623 = vld [vmem:[#allocation12 + $0xdc] sm:$0xf]
          %v3624 = vld [vmem:[#allocation12 + $0xe0] sm:$0xf]
          %v3625 = vld [vmem:[#allocation12 + $0xe4] sm:$0xf]
          %v3626 = vld [vmem:[#allocation12 + $0xe8] sm:$0xf]
          %v3627 = vld [vmem:[#allocation12 + $0xec] sm:$0xf]
          %v3628 = vld [vmem:[#allocation12 + $0xf0] sm:$0xf]
          %v3629 = vld [vmem:[#allocation12 + $0xf4] sm:$0xf]
          %v3630 = vld [vmem:[#allocation12 + $0xf8] sm:$0xf]
          %v3631 = vld [vmem:[#allocation12 + $0xfc] sm:$0xf]
          %v3648 = vunpack.c.l.b16 %v3616
          %v3649 = vunpack.c.l.b16 %v3617
          %v3650 = vunpack.c.l.b16 %v3618
          %v3651 = vunpack.c.l.b16 %v3619
          %v3652 = vunpack.c.l.b16 %v3620
          %v3653 = vunpack.c.l.b16 %v3621
          %v3654 = vunpack.c.l.b16 %v3622
          %v3655 = vunpack.c.l.b16 %v3623
          %v3656 = vunpack.c.l.b16 %v3624
          %v3657 = vunpack.c.l.b16 %v3625
          %v3658 = vunpack.c.l.b16 %v3626
          %v3659 = vunpack.c.l.b16 %v3627
          %v3660 = vunpack.c.l.b16 %v3628
          %v3661 = vunpack.c.l.b16 %v3629
          %v3662 = vunpack.c.l.b16 %v3630
          %v3663 = vunpack.c.l.b16 %v3631
          %v3664 = vpack.c.b16 %v3649, %v3648
          %v3665 = vpack.c.b16 %v3651, %v3650
          %v3666 = vpack.c.b16 %v3653, %v3652
          %v3667 = vpack.c.b16 %v3655, %v3654
          %v3668 = vpack.c.b16 %v3657, %v3656
          %v3669 = vpack.c.b16 %v3659, %v3658
          %v3670 = vpack.c.b16 %v3661, %v3660
          %v3671 = vpack.c.b16 %v3663, %v3662
          %3680 = vmatprep.subr.bf16.mxu0 0
          %3681 = vmatpush1.bf16.msra.mxu0 %v3664
          %3682 = vmatprep.subr.bf16.mxu0 0
          %3683 = vmatpush1.bf16.msra.mxu0 %v3665
          %3684 = vmatprep.subr.bf16.mxu0 0
          %3685 = vmatpush1.bf16.msra.mxu0 %v3666
          %3686 = vmatprep.subr.bf16.mxu0 0
          %3687 = vmatpush1.bf16.msra.mxu0 %v3667
          %3688 = vmatprep.subr.bf16.mxu0 0
          %3689 = vmatpush1.bf16.msra.mxu0 %v3668
          %3690 = vmatprep.subr.bf16.mxu0 0
          %3691 = vmatpush1.bf16.msra.mxu0 %v3669
          %3692 = vmatprep.subr.bf16.mxu0 0
          %3693 = vmatpush1.bf16.msra.mxu0 %v3670
          %3694 = vmatprep.subr.bf16.mxu0 0
          %3695 = vmatpush1.bf16.msra.mxu0 %v3671
          %3696 = vmatprep.subr.bf16.mxu0 0
          %3697 = vmatpush1.bf16.msra.mxu0 0
          %3698 = vmatprep.subr.bf16.mxu0 0
          %3699 = vmatpush1.bf16.msra.mxu0 0
          %3700 = vmatprep.subr.bf16.mxu0 0
          %3701 = vmatpush1.bf16.msra.mxu0 0
          %3702 = vmatprep.subr.bf16.mxu0 0
          %3703 = vmatpush1.bf16.msra.mxu0 0
          %3704 = vmatprep.subr.bf16.mxu0 0
          %3705 = vmatpush1.bf16.msra.mxu0 0
          %3706 = vmatprep.subr.bf16.mxu0 0
          %3707 = vmatpush1.bf16.msra.mxu0 0
          %3708 = vmatprep.subr.bf16.mxu0 0
          %3709 = vmatpush1.bf16.msra.mxu0 0
          %3710 = vmatprep.subr.bf16.mxu0 0
          %3711 = vmatpush1.bf16.msra.mxu0 0
          %3712 = vmatprep.mubr.bf16.mxu0 0
          %3713 = vmatmul.mubr.bf16.gmra.mrb[0].mxu0 %v3431
          %v3714 = vpop.f32.mrb[0].mxu0
          %v3715 = vadd.f32 0.0, %v3714
          %v3716 = vpop.f32.mrb[0].mxu0
          %v3717 = vpop.f32.mrb[0].mxu0
          %v3718 = vadd.f32 0.0, %v3717
          %v3719 = vpop.f32.mrb[0].mxu0
          %3720 = vmatprep.mubr.bf16.mxu0 0
          %3721 = vmatmul.mubr.bf16.gmra.mrb[0].mxu0 %v3432
          %v3722 = vpop.f32.mrb[0].mxu0
          %v3723 = vadd.f32 0.0, %v3722
          %v3724 = vpop.f32.mrb[0].mxu0
          %v3725 = vpop.f32.mrb[0].mxu0
          %v3726 = vadd.f32 0.0, %v3725
          %v3727 = vpop.f32.mrb[0].mxu0
          %3728 = vmatprep.mubr.bf16.mxu0 0
          %3729 = vmatmul.mubr.bf16.gmra.mrb[0].mxu0 %v3433
          %v3730 = vpop.f32.mrb[0].mxu0
          %v3731 = vadd.f32 0.0, %v3730
          %v3732 = vpop.f32.mrb[0].mxu0
          %v3733 = vpop.f32.mrb[0].mxu0
          %v3734 = vadd.f32 0.0, %v3733
          %v3735 = vpop.f32.mrb[0].mxu0
          %3736 = vmatprep.mubr.bf16.mxu0 0
          %3737 = vmatmul.mubr.bf16.gmra.mrb[0].mxu0 %v3434
          %v3738 = vpop.f32.mrb[0].mxu0
          %v3739 = vadd.f32 0.0, %v3738
          %v3740 = vpop.f32.mrb[0].mxu0
          %v3741 = vpop.f32.mrb[0].mxu0
          %v3742 = vadd.f32 0.0, %v3741
          %v3743 = vpop.f32.mrb[0].mxu0
          %3744 = vmatprep.mubr.bf16.mxu0 0
          %3745 = vmatmul.mubr.bf16.gmra.mrb[0].mxu0 %v3435
          %v3746 = vpop.f32.mrb[0].mxu0
          %v3747 = vadd.f32 0.0, %v3746
          %v3748 = vpop.f32.mrb[0].mxu0
          %v3749 = vpop.f32.mrb[0].mxu0
          %v3750 = vadd.f32 0.0, %v3749
          %v3751 = vpop.f32.mrb[0].mxu0
          %3752 = vmatprep.mubr.bf16.mxu0 0
          %3753 = vmatmul.mubr.bf16.gmra.mrb[0].mxu0 %v3436
          %v3754 = vpop.f32.mrb[0].mxu0
          %v3755 = vadd.f32 0.0, %v3754
          %v3756 = vpop.f32.mrb[0].mxu0
          %v3757 = vpop.f32.mrb[0].mxu0
          %v3758 = vadd.f32 0.0, %v3757
          %v3759 = vpop.f32.mrb[0].mxu0
          %3760 = vmatprep.mubr.bf16.mxu0 0
          %3761 = vmatmul.mubr.bf16.gmra.mrb[0].mxu0 %v3437
          %v3762 = vpop.f32.mrb[0].mxu0
          %v3763 = vadd.f32 0.0, %v3762
          %v3764 = vpop.f32.mrb[0].mxu0
          %v3765 = vpop.f32.mrb[0].mxu0
          %v3766 = vadd.f32 0.0, %v3765
          %v3767 = vpop.f32.mrb[0].mxu0
          %3768 = vmatprep.mubr.bf16.mxu0 0
          %3769 = vmatmul.mubr.bf16.gmra.mrb[0].mxu0 %v3438
          %v3770 = vpop.f32.mrb[0].mxu0
          %v3771 = vadd.f32 0.0, %v3770
          %v3772 = vpop.f32.mrb[0].mxu0
          %v3773 = vpop.f32.mrb[0].mxu0
          %v3774 = vadd.f32 0.0, %v3773
          %v3775 = vpop.f32.mrb[0].mxu0
          %3776 = vdwg.mxu0
          %v3777 = vadd.f32 %v3054, %v3715
          %v3778 = vadd.f32 %v3055, %v3718
          %v3779 = vadd.f32 %v3056, %v3723
          %v3780 = vadd.f32 %v3057, %v3726
          %v3781 = vadd.f32 %v3058, %v3731
          %v3782 = vadd.f32 %v3059, %v3734
          %v3783 = vadd.f32 %v3060, %v3739
          %v3784 = vadd.f32 %v3061, %v3742
          %v3785 = vadd.f32 %v3062, %v3747
          %v3786 = vadd.f32 %v3063, %v3750
          %v3787 = vadd.f32 %v3064, %v3755
          %v3788 = vadd.f32 %v3065, %v3758
          %v3789 = vadd.f32 %v3066, %v3763
          %v3790 = vadd.f32 %v3067, %v3766
          %v3791 = vadd.f32 %v3068, %v3771
          %v3792 = vadd.f32 %v3069, %v3774
          %v3793 = vpack.c.bf16 %v3601, %v3600
          %v3794 = vpack.c.bf16 %v3603, %v3602
          %v3795 = vpack.c.bf16 %v3605, %v3604
          %v3796 = vpack.c.bf16 %v3607, %v3606
          %v3797 = vpack.c.bf16 %v3609, %v3608
          %v3798 = vpack.c.bf16 %v3611, %v3610
          %v3799 = vpack.c.bf16 %v3613, %v3612
          %v3800 = vpack.c.bf16 %v3615, %v3614
          %v3809 = vunpack.c.l.b16 %v3793
          %v3810 = vunpack.c.h.b16 %v3793
          %v3811 = vunpack.c.l.b16 %v3794
          %v3812 = vunpack.c.h.b16 %v3794
          %v3813 = vunpack.c.l.b16 %v3795
          %v3814 = vunpack.c.h.b16 %v3795
          %v3815 = vunpack.c.l.b16 %v3796
          %v3816 = vunpack.c.h.b16 %v3796
          %v3817 = vunpack.c.l.b16 %v3797
          %v3818 = vunpack.c.h.b16 %v3797
          %v3819 = vunpack.c.l.b16 %v3798
          %v3820 = vunpack.c.h.b16 %v3798
          %v3821 = vunpack.c.l.b16 %v3799
          %v3822 = vunpack.c.h.b16 %v3799
          %v3823 = vunpack.c.l.b16 %v3800
          %v3824 = vunpack.c.h.b16 %v3800
          %v3825 = vpack.c.b16 %v3809, %v3809
          %v3826 = vpack.c.b16 %v3810, %v3810
          %v3827 = vpack.c.b16 %v3811, %v3811
          %v3828 = vpack.c.b16 %v3812, %v3812
          %v3829 = vpack.c.b16 %v3813, %v3813
          %v3830 = vpack.c.b16 %v3814, %v3814
          %v3831 = vpack.c.b16 %v3815, %v3815
          %v3832 = vpack.c.b16 %v3816, %v3816
          %v3833 = vpack.c.b16 %v3817, %v3817
          %v3834 = vpack.c.b16 %v3818, %v3818
          %v3835 = vpack.c.b16 %v3819, %v3819
          %v3836 = vpack.c.b16 %v3820, %v3820
          %v3837 = vpack.c.b16 %v3821, %v3821
          %v3838 = vpack.c.b16 %v3822, %v3822
          %v3839 = vpack.c.b16 %v3823, %v3823
          %v3840 = vpack.c.b16 %v3824, %v3824
          %3857 = vst [vmem:[%s497] sm:$0xf] %v3825
          %3858 = vst [vmem:[%s497 + $0x4] sm:$0xf] %v3826
          %3859 = vst [vmem:[%s497 + $0x8] sm:$0xf] %v3827
          %3860 = vst [vmem:[%s497 + $0xc] sm:$0xf] %v3828
          %3861 = vst [vmem:[%s497 + $0x10] sm:$0xf] %v3829
          %3862 = vst [vmem:[%s497 + $0x14] sm:$0xf] %v3830
          %3863 = vst [vmem:[%s497 + $0x18] sm:$0xf] %v3831
          %3864 = vst [vmem:[%s497 + $0x1c] sm:$0xf] %v3832
          %3865 = vst [vmem:[%s497 + $0x20] sm:$0xf] %v3833
          %3866 = vst [vmem:[%s497 + $0x24] sm:$0xf] %v3834
          %3867 = vst [vmem:[%s497 + $0x28] sm:$0xf] %v3835
          %3868 = vst [vmem:[%s497 + $0x2c] sm:$0xf] %v3836
          %3869 = vst [vmem:[%s497 + $0x30] sm:$0xf] %v3837
          %3870 = vst [vmem:[%s497 + $0x34] sm:$0xf] %v3838
          %3871 = vst [vmem:[%s497 + $0x38] sm:$0xf] %v3839
          %3872 = vst [vmem:[%s497 + $0x3c] sm:$0xf] %v3840
          %v3873 = vld [vmem:[%s8] sm:$0x1]
          %v3875 = vlaneseq
          %v3876 = vshrl.u32 %v3875, 7
          %v3877 = vsub.s32 0, %v3876
          %v3878 = vrot.slane %v3873, %v3877
          %v3880 = vadd.f32 %v3777, %v3878
          %v3881 = vadd.f32 %v3778, %v3878
          %v3882 = vadd.f32 %v3779, %v3878
          %v3883 = vadd.f32 %v3780, %v3878
          %v3884 = vadd.f32 %v3781, %v3878
          %v3885 = vadd.f32 %v3782, %v3878
          %v3886 = vadd.f32 %v3783, %v3878
          %v3887 = vadd.f32 %v3784, %v3878
          %v3888 = vadd.f32 %v3785, %v3878
          %v3889 = vadd.f32 %v3786, %v3878
          %v3890 = vadd.f32 %v3787, %v3878
          %v3891 = vadd.f32 %v3788, %v3878
          %v3892 = vadd.f32 %v3789, %v3878
          %v3893 = vadd.f32 %v3790, %v3878
          %v3894 = vadd.f32 %v3791, %v3878
          %v3895 = vadd.f32 %v3792, %v3878
          %3896 = vst [vmem:[%s504] sm:$0xff] %v3880
          %3897 = vst [vmem:[%s504 + $0x8] sm:$0xff] %v3881
          %3898 = vst [vmem:[%s504 + $0x10] sm:$0xff] %v3882
          %3899 = vst [vmem:[%s504 + $0x18] sm:$0xff] %v3883
          %3900 = vst [vmem:[%s504 + $0x20] sm:$0xff] %v3884
          %3901 = vst [vmem:[%s504 + $0x28] sm:$0xff] %v3885
          %3902 = vst [vmem:[%s504 + $0x30] sm:$0xff] %v3886
          %3903 = vst [vmem:[%s504 + $0x38] sm:$0xff] %v3887
          %3904 = vst [vmem:[%s504 + $0x40] sm:$0xff] %v3888
          %3905 = vst [vmem:[%s504 + $0x48] sm:$0xff] %v3889
          %3906 = vst [vmem:[%s504 + $0x50] sm:$0xff] %v3890
          %3907 = vst [vmem:[%s504 + $0x58] sm:$0xff] %v3891
          %3908 = vst [vmem:[%s504 + $0x60] sm:$0xff] %v3892
          %3909 = vst [vmem:[%s504 + $0x68] sm:$0xff] %v3893
          %3910 = vst [vmem:[%s504 + $0x70] sm:$0xff] %v3894
          %3911 = vst [vmem:[%s504 + $0x78] sm:$0xff] %v3895
        $region122: #{tpu_custom_call.1} parent=89 // pred_fallthru
          _
        %s3912 = sand.u32 %s247, 1
        %s3913 = scalar_lea.sflag [#allocation6], %s3912
        %s3914 = sand.u32 %s247, 1
        %s3915 = smul.addr %s3914, 64
        %s3916 = scalar_lea.vmem [#allocation13], %s3915
        %s3917 = sand.u32 %s273, 1
        %s3918 = scalar_lea.sflag [#allocation15], %s3917
        %s3919 = sand.u32 %s273, 1
        %s3920 = smul.addr %s3919, 128
        %s3921 = scalar_lea.vmem [#allocation14], %s3920
        // Predicated region
        $region123: #{tpu_custom_call.1} parent=89 // pred_check
          %p3922 = pneg %p257
        $region124: #{tpu_custom_call.1} parent=89 // pred_check_branch
          %3924 = sbr.rel (%p3922) target = $region126
        $region125: #{tpu_custom_call.1} parent=89 // pred_region
          %s3925 = smul.u32 16, %s35
          %s3927 = ssub.s32 1024, 1024
          %3928 = vsyncadd %s3913, %s3927
          %s3929 = smul.addr %s3925, 64
          %s3930 = scalar_lea.hbm %s9, %s3929
          %s3931 = sshll.u32 %s3916, 4
          %s3932 = int_to_ptr.vmem [resolvable:$true] %s3931
          %3937 = dma.vmem_to_hbm [thread:$0]  %s3932, 1024, %s3930, %s3913, 64, 64, 4
        $region126: #{tpu_custom_call.1} parent=89 // pred_fallthru
          _
        // Predicated region
        $region127: #{tpu_custom_call.1} parent=89 // pred_check
          %p3938 = pneg %p283
        $region128: #{tpu_custom_call.1} parent=89 // pred_check_branch
          %3940 = sbr.rel (%p3938) target = $region130
        $region129: #{tpu_custom_call.1} parent=89 // pred_region
          %s3941 = smul.u32 16, %s35
          %s3943 = ssub.s32 2048, 2048
          %3944 = vsyncadd %s3918, %s3943
          %s3945 = smul.addr %s3941, 128
          %s3946 = scalar_lea.hbm %s10, %s3945
          %s3947 = sshll.u32 %s3921, 4
          %s3948 = int_to_ptr.vmem [resolvable:$true] %s3947
          %3953 = dma.vmem_to_hbm [thread:$0]  %s3948, 2048, %s3946, %s3918, 128, 128, 8
        $region130: #{tpu_custom_call.1} parent=89 // pred_fallthru
          _
      $region90: #{tpu_custom_call.1} parent=5 // pred_fallthru
        _
      %p3954 = scmp.le.s32.totalorder 2, %s26
      // Predicated region
      $region131: #{tpu_custom_call.1} parent=5 // pred_check
        %p3955 = pneg %p3954
      $region132: #{tpu_custom_call.1} parent=5 // pred_check_branch
        %3957 = sbr.rel (%p3955) target = $region134
      $region133: #{tpu_custom_call.1} parent=5 // pred_region
        %s3958 = ssub.s32 %s26, 2
        // Predicated region
        $region135: #{tpu_custom_call.1} parent=133 // pred_check
          %p3959 = pneg %p263
        $region136: #{tpu_custom_call.1} parent=133 // pred_check_branch
          %3961 = sbr.rel (%p3959) target = $region138
        $region137: #{tpu_custom_call.1} parent=133 // pred_region
          %s3962 = sand.u32 %s248, 1
          %s3963 = scalar_lea.sflag [#allocation6], %s3962
          %s3964 = sand.u32 %s248, 1
          %s3965 = smul.addr %s3964, 64
          %s3966 = scalar_lea.vmem [#allocation13], %s3965
          %3967 = dma.done %s3963, 1024
        $region138: #{tpu_custom_call.1} parent=133 // pred_fallthru
          _
        // Predicated region
        $region139: #{tpu_custom_call.1} parent=133 // pred_check
          %p3968 = pneg %p289
        $region140: #{tpu_custom_call.1} parent=133 // pred_check_branch
          %3970 = sbr.rel (%p3968) target = $region142
        $region141: #{tpu_custom_call.1} parent=133 // pred_region
          %s3971 = sand.u32 %s274, 1
          %s3972 = scalar_lea.sflag [#allocation15], %s3971
          %s3973 = sand.u32 %s274, 1
          %s3974 = smul.addr %s3973, 128
          %s3975 = scalar_lea.vmem [#allocation14], %s3974
          %3976 = dma.done %s3972, 2048
        $region142: #{tpu_custom_call.1} parent=133 // pred_fallthru
          _
      $region134: #{tpu_custom_call.1} parent=5 // pred_fallthru
        _
    $region6: #{tpu_custom_call.1} parent=1 // loop_footer
      %s30 = sadd.s32 1, %s26
    $region7: #{tpu_custom_call.1} parent=1 // loop_footer_branch
      %25 = sbr.rel target = $region3
    $region8: #{tpu_custom_call.1} parent=1 // loop_exit
      _
    %3977 = vsyncpa [#allocation5], 1
    %s3978 = scalar_lea.sflag [#allocation5], 1
    %3979 = vsyncpa %s3978, 1
    %3980 = vsyncpa [#allocation8], 1
    %3981 = vsyncpa [#allocation11], 1
    %3982 = vsyncpa [#allocation6], 1
    %s3983 = scalar_lea.sflag [#allocation6], 1
    %3984 = vsyncpa %s3983, 1
    %3985 = vsyncpa [#allocation15], 1
    %s3986 = scalar_lea.sflag [#allocation15], 1
    %3987 = vsyncpa %s3986, 1

</llo_original>
